<compile_context>
chip_gen: v7x
topology: tpu7x:2x2x1
jax: 0.10.0
libtpu: 0.0.40
codegen_flags: <defaults>
</compile_context>

<pallas_src>
import jax
import jax.numpy as jnp
from jax import lax
from jax.experimental import pallas as pl
from jax.experimental.pallas import tpu as pltpu


def _make_kernel(num_layers, hidden_size, seq_len, eps=1e-5):
    H = hidden_size
    T = seq_len
    L = num_layers

    def kernel(*refs):
        # refs layout:
        #   x_ref                       (T, Bblk, I) bf16 time-major input block
        #   whh0 (H,4H) bf16, wih0 (I,4H) bf16, b0 (1,4H) f32   [g columns pre-scaled x2]
        #   for l in 1..L-1: whh_l (H,4H) bf16, wih_l (H,4H) bf16, b_l (1,4H) f32
        #   gamma (1,H), beta (1,H), wfc (1,H), bfc (1,1)        all f32
        #   out_ref (1, 1, Bblk) f32  (batch on the lane axis)
        x_ref = refs[0]
        whh0_ref, wih0_ref, b0_ref = refs[1], refs[2], refs[3]
        layer_refs = refs[4:4 + 3 * (L - 1)]
        gamma_ref, beta_ref, wfc_ref, bfc_ref = refs[4 + 3 * (L - 1):8 + 3 * (L - 1)]
        out_ref = refs[-1]

        _, B, I = x_ref.shape
        bf16 = jnp.bfloat16

        # ---- hoisted layer-0 input projection: one (T*B, I) matmul off the serial
        # recurrence. Cast to f32 first so the (T,B,I)->(T*B,I) collapse is
        # layout-trivial even when B is not a multiple of the 16-row bf16 tile,
        # then back to bf16 for the MXU. Bias (b_ih0 + b_hh0) folded in. ----
        x2 = x_ref[...].astype(jnp.float32).reshape(T * B, I).astype(bf16)
        xproj = jnp.dot(x2, wih0_ref[...], preferred_element_type=jnp.float32)
        xproj = xproj + b0_ref[...]                               # (T*B, 4H) f32

        whh0 = whh0_ref[...]                                               # bf16 (H,4H)
        whh = [layer_refs[3 * (l - 1) + 0][...] for l in range(1, L)]      # bf16 (H,4H)
        wih = [layer_refs[3 * (l - 1) + 1][...] for l in range(1, L)]      # bf16 (H,4H)
        # bias broadcasts hoisted out of the unrolled timestep loop
        bbc = [jnp.broadcast_to(layer_refs[3 * (l - 1) + 2][...], (B, 4 * H))
               for l in range(1, L)]                                       # f32 (B,4H)

        # per-layer state as separate (B, H) f32 arrays (no stack/unstack per step)
        h = [jnp.zeros((B, H), jnp.float32) for _ in range(L)]
        c = [jnp.zeros((B, H), jnp.float32) for _ in range(L)]

        def lstm_cell(gates, c_prev):
            # gates: (B, 4H) f32, PyTorch gate order [i, f, g, o]; the g columns carry
            # 2x the pre-activation, so tanh(g) = 2*sigmoid(2g) - 1 reuses the single
            # full-width sigmoid (one EUP pass per cell instead of two).
            s = jax.nn.sigmoid(gates)
            i_g = s[:, 0:H]
            f_g = s[:, H:2 * H]
            g_g = 2.0 * s[:, 2 * H:3 * H] - 1.0
            o_g = s[:, 3 * H:4 * H]
            c_new = f_g * c_prev + i_g * g_g
            h_new = o_g * (2.0 * jax.nn.sigmoid(2.0 * c_new) - 1.0)   # == tanh(c_new)
            return h_new, c_new

        # ---- fully unrolled timestep recurrence (T static & small) ----
        for t in range(T):
            # static, sublane-aligned row slice of the precomputed projection
            xg = xproj[t * B:(t + 1) * B, :]
            # layer 0: only the recurrent dot remains in the loop
            g0 = jnp.dot(h[0].astype(bf16), whh0,
                         preferred_element_type=jnp.float32) + xg
            h[0], c[0] = lstm_cell(g0, c[0])
            inp = h[0]
            for l in range(1, L):
                # two independent dots (no concat): the h-dot only needs last step's
                # h[l] and can issue while layer l-1 of this step is still in flight.
                gl = (jnp.dot(h[l].astype(bf16), whh[l - 1],
                              preferred_element_type=jnp.float32)
                      + jnp.dot(inp.astype(bf16), wih[l - 1],
                                preferred_element_type=jnp.float32)
                      + bbc[l - 1])
                h[l], c[l] = lstm_cell(gl, c[l])
                inp = h[l]

        h_top = h[L - 1]                                  # == lstm out[:, -1, :]

        # ---- LayerNorm over the hidden dim (f32) ----
        mean = jnp.mean(h_top, axis=-1, keepdims=True)
        var = jnp.mean(jnp.square(h_top - mean), axis=-1, keepdims=True)
        y = (h_top - mean) * lax.rsqrt(var + eps)
        y = y * gamma_ref[...] + beta_ref[...]

        # ---- fc (H -> 1) + sigmoid, lane-dense: one dot contracting H that lands the
        # batch on the lane axis (q @ k.T-style dimension numbers), so the store is a
        # dense lane-major write instead of a masked last-dim-1 store.
        logits = lax.dot_general(wfc_ref[...], y, (((1,), (1,)), ((), ())),
                                 preferred_element_type=jnp.float32)   # (1, B)
        logits = logits + bfc_ref[...]
        out_ref[...] = jax.nn.sigmoid(logits)[None, :, :].astype(out_ref.dtype)

    return kernel


def init_params(key, input_size, hidden_size, num_layers):
    """Deterministic synthetic params matching nn.LSTM / nn.LayerNorm / nn.Linear shapes.

    LSTM weights are stored already transposed for the kernel:
      w_ih_l: (in_dim, 4H), w_hh_l: (H, 4H), b_l: (1, 4H) = b_ih + b_hh.
    """
    H = hidden_size
    scale = 1.0 / jnp.sqrt(jnp.float32(H))
    params = {"hidden_size": H, "num_layers": num_layers}
    keys = jax.random.split(key, 4 * num_layers + 2)
    k_idx = 0
    for l in range(num_layers):
        in_dim = input_size if l == 0 else H
        w_ih = jax.random.uniform(keys[k_idx], (in_dim, 4 * H), jnp.float32, -scale, scale); k_idx += 1
        w_hh = jax.random.uniform(keys[k_idx], (H, 4 * H), jnp.float32, -scale, scale); k_idx += 1
        b_ih = jax.random.uniform(keys[k_idx], (1, 4 * H), jnp.float32, -scale, scale); k_idx += 1
        b_hh = jax.random.uniform(keys[k_idx], (1, 4 * H), jnp.float32, -scale, scale); k_idx += 1
        params[f"w_ih_{l}"] = w_ih
        params[f"w_hh_{l}"] = w_hh
        params[f"b_{l}"] = b_ih + b_hh
    params["ln_gamma"] = jnp.ones((1, H), jnp.float32)
    params["ln_beta"] = jnp.zeros((1, H), jnp.float32)
    params["w_fc"] = jax.random.uniform(keys[k_idx], (H, 1), jnp.float32, -scale, scale); k_idx += 1
    params["b_fc"] = jax.random.uniform(keys[k_idx], (1, 1), jnp.float32, -scale, scale)
    return params


def _scale_g_gate(w, H):
    """Pre-scale the g-gate (columns 2H:3H of the 4H axis) by 2 so the kernel can
    compute tanh(g) = 2*sigmoid(2g) - 1 from its single full-width sigmoid."""
    return w.at[..., 2 * H:3 * H].multiply(2.0)


def _default_b_block(B):
    # Largest 8-aligned divisor of B that is <= 256 and still yields >= 2 grid blocks
    # (so dimension_semantics=("parallel",) can shard across v7x's two TensorCores);
    # falls back to the whole batch for small B.
    for cand in (256, 128, 64, 32, 16, 8):
        if B % cand == 0 and B // cand >= 2:
            return cand
    return B


def bitcoin_predict_forward(x, params, *, b_block=None):
    """x: (B, T, I) float32 (PyTorch batch_first). Returns (B, 1) float32 in [0, 1]."""
    B, T, I = x.shape
    H = params["hidden_size"]
    L = params["num_layers"]

    if b_block is None:
        b_block = _default_b_block(B)
    assert B % b_block == 0 and (b_block % 8 == 0 or b_block == B), \
        "batch block must tile B and be sublane-aligned"
    nb = B // b_block

    bf16 = jnp.bfloat16
    # Time-major + bf16 input stream: each timestep is a contiguous row block of the
    # hoisted layer-0 projection inside the kernel; bf16 halves the only sizeable
    # HBM read (tiny one-off XLA transpose/cast).
    x_tm = jnp.transpose(x, (1, 0, 2)).astype(bf16)          # (T, B, I)

    args = [
        x_tm,
        _scale_g_gate(params["w_hh_0"], H).astype(bf16),     # (H, 4H)
        _scale_g_gate(params["w_ih_0"], H).astype(bf16),     # (I, 4H)
        _scale_g_gate(params["b_0"], H),                      # (1, 4H) f32
    ]
    for l in range(1, L):
        args += [_scale_g_gate(params[f"w_hh_{l}"], H).astype(bf16),   # (H, 4H)
                 _scale_g_gate(params[f"w_ih_{l}"], H).astype(bf16),   # (H, 4H)
                 _scale_g_gate(params[f"b_{l}"], H)]                   # (1, 4H) f32
    args += [params["ln_gamma"], params["ln_beta"],
             params["w_fc"].reshape(1, H), params["b_fc"]]

    def full_spec(a):
        n = a.ndim
        return pl.BlockSpec(a.shape, lambda b, _n=n: (0,) * _n)

    in_specs = [pl.BlockSpec((T, b_block, I), lambda b: (0, b, 0))]
    in_specs += [full_spec(a) for a in args[1:]]
    # lane-dense output: (block, 1, b_block) with the batch on the lane axis.
    out_specs = pl.BlockSpec((1, 1, b_block), lambda b: (b, 0, 0))

    kernel = _make_kernel(L, H, T)
    out = pl.pallas_call(
        kernel,
        out_shape=jax.ShapeDtypeStruct((nb, 1, b_block), jnp.float32),
        grid=(nb,),
        in_specs=in_specs,
        out_specs=out_specs,
        compiler_params=pltpu.CompilerParams(dimension_semantics=("parallel",)),
    )(*args)
    return out.reshape(B, 1)


def _reference_forward(x, params, eps=1e-5):
    """Pure-JAX eval-mode reference mimicking the kernel's bf16-matmul precision."""
    B, T, I = x.shape
    H = params["hidden_size"]
    L = params["num_layers"]
    bf16 = jnp.bfloat16
    layer_in = jnp.transpose(x, (1, 0, 2))                    # (T, B, I) f32
    for l in range(L):
        w_ih = params[f"w_ih_{l}"].astype(bf16)
        w_hh = params[f"w_hh_{l}"].astype(bf16)
        b = params[f"b_{l}"]
        h = jnp.zeros((B, H), jnp.float32)
        c = jnp.zeros((B, H), jnp.float32)
        outs = []
        for t in range(T):
            g = (jnp.dot(layer_in[t].astype(bf16), w_ih, preferred_element_type=jnp.float32)
                 + jnp.dot(h.astype(bf16), w_hh, preferred_element_type=jnp.float32)
                 + b)
            i_g = jax.nn.sigmoid(g[:, 0:H])
            f_g = jax.nn.sigmoid(g[:, H:2 * H])
            g_g = jnp.tanh(g[:, 2 * H:3 * H])
            o_g = jax.nn.sigmoid(g[:, 3 * H:4 * H])
            c = f_g * c + i_g * g_g
            h = o_g * jnp.tanh(c)
            outs.append(h)
        layer_in = jnp.stack(outs, axis=0)                    # (T, B, H) f32
    h_top = layer_in[-1]
    mean = jnp.mean(h_top, axis=-1, keepdims=True)
    var = jnp.mean(jnp.square(h_top - mean), axis=-1, keepdims=True)
    y = (h_top - mean) * lax.rsqrt(var + eps)
    y = y * params["ln_gamma"] + params["ln_beta"]
    logits = y @ params["w_fc"] + params["b_fc"]
    return jax.nn.sigmoid(logits)


if __name__ == "__main__":
    # Small shapes consistent with the module's forward:
    # batch=8, seq=8, input_size=16, hidden_size=32, num_stack=2
    B, T, INPUT_SIZE, HIDDEN_SIZE, NUM_STACK = 8, 8, 16, 32, 2

    key = jax.random.PRNGKey(0)
    k_x, k_p = jax.random.split(key)
    x = jax.random.normal(k_x, (B, T, INPUT_SIZE), jnp.float32)
    params = init_params(k_p, INPUT_SIZE, HIDDEN_SIZE, NUM_STACK)

    out = bitcoin_predict_forward(x, params)
    out = jax.block_until_ready(out)

    assert out.shape == (B, 1), out.shape
    assert bool(jnp.all(jnp.isfinite(out)))
    assert bool(jnp.all((out >= 0.0) & (out <= 1.0)))          # sigmoid output range

    ref = _reference_forward(x, params)
    assert bool(jnp.all(jnp.abs(out - ref) < 2e-2)), (out, ref)
    print("KERNEL_OK")
</pallas_src>

<mosaic_0001>
module attributes {stable_mosaic.version = 11 : i64} {
  func.func @kernel(%arg0: i32, %arg1: memref<8x8x16xbf16, #tpu.memory_space<vmem>>, %arg2: memref<32x128xbf16, #tpu.memory_space<vmem>>, %arg3: memref<16x128xbf16, #tpu.memory_space<vmem>>, %arg4: memref<1x128xf32, #tpu.memory_space<vmem>>, %arg5: memref<32x128xbf16, #tpu.memory_space<vmem>>, %arg6: memref<32x128xbf16, #tpu.memory_space<vmem>>, %arg7: memref<1x128xf32, #tpu.memory_space<vmem>>, %arg8: memref<1x32xf32, #tpu.memory_space<vmem>>, %arg9: memref<1x32xf32, #tpu.memory_space<vmem>>, %arg10: memref<1x32xf32, #tpu.memory_space<vmem>>, %arg11: memref<1x1xf32, #tpu.memory_space<vmem>>, %arg12: memref<1x1x8xf32, #tpu.memory_space<vmem>>) attributes {dimension_semantics = [#tpu.dimension_semantics<parallel>], iteration_bounds = array<i64: 1>, scalar_prefetch = 0 : i64, scratch_operands = 0 : i64, tpu.core_type = #tpu.core_type<tc>, window_params = [{transform_indices = @transform_0, window_bounds = array<i64: 8, 8, 16>}, {pipeline_mode = #tpu.pipeline_mode<synchronous>, transform_indices = @transform_1, window_bounds = array<i64: 32, 128>}, {pipeline_mode = #tpu.pipeline_mode<synchronous>, transform_indices = @transform_2, window_bounds = array<i64: 16, 128>}, {pipeline_mode = #tpu.pipeline_mode<synchronous>, transform_indices = @transform_3, window_bounds = array<i64: 1, 128>}, {pipeline_mode = #tpu.pipeline_mode<synchronous>, transform_indices = @transform_4, window_bounds = array<i64: 32, 128>}, {pipeline_mode = #tpu.pipeline_mode<synchronous>, transform_indices = @transform_5, window_bounds = array<i64: 32, 128>}, {pipeline_mode = #tpu.pipeline_mode<synchronous>, transform_indices = @transform_6, window_bounds = array<i64: 1, 128>}, {pipeline_mode = #tpu.pipeline_mode<synchronous>, transform_indices = @transform_7, window_bounds = array<i64: 1, 32>}, {pipeline_mode = #tpu.pipeline_mode<synchronous>, transform_indices = @transform_8, window_bounds = array<i64: 1, 32>}, {pipeline_mode = #tpu.pipeline_mode<synchronous>, transform_indices = @transform_9, window_bounds = array<i64: 1, 32>}, {pipeline_mode = #tpu.pipeline_mode<synchronous>, transform_indices = @transform_10, window_bounds = array<i64: 1, 1>}, {transform_indices = @transform_11, window_bounds = array<i64: 1, 1, 8>}]} {
    %c0 = arith.constant 0 : index
    %c0_0 = arith.constant 0 : index
    %c0_1 = arith.constant 0 : index
    %0 = vector.load %arg1[%c0, %c0_0, %c0_1] : memref<8x8x16xbf16, #tpu.memory_space<vmem>>, vector<8x8x16xbf16>
    %1 = arith.extf %0 : vector<8x8x16xbf16> to vector<8x8x16xf32>
    %2 = vector.shape_cast %1 : vector<8x8x16xf32> to vector<64x16xf32>
    %3 = arith.truncf %2 : vector<64x16xf32> to vector<64x16xbf16>
    %c0_2 = arith.constant 0 : index
    %c0_3 = arith.constant 0 : index
    %4 = vector.load %arg3[%c0_2, %c0_3] : memref<16x128xbf16, #tpu.memory_space<vmem>>, vector<16x128xbf16>
    %cst = arith.constant dense<0.000000e+00> : vector<64x128xf32>
    %5 = tpu.matmul %3, %4, %cst {dimension_numbers = #tpu.dot_dimension_numbers<[1], [0], [0], [1], [0, 0, 1, 1], [], []>} : vector<64x16xbf16>, vector<16x128xbf16>, vector<64x128xf32> -> vector<64x128xf32>
    %c0_4 = arith.constant 0 : index
    %c0_5 = arith.constant 0 : index
    %6 = vector.load %arg4[%c0_4, %c0_5] : memref<1x128xf32, #tpu.memory_space<vmem>>, vector<1x128xf32>
    %7 = vector.broadcast %6 : vector<1x128xf32> to vector<64x128xf32>
    %8 = arith.addf %5, %7 : vector<64x128xf32>
    %c0_6 = arith.constant 0 : index
    %c0_7 = arith.constant 0 : index
    %9 = vector.load %arg2[%c0_6, %c0_7] : memref<32x128xbf16, #tpu.memory_space<vmem>>, vector<32x128xbf16>
    %c0_8 = arith.constant 0 : index
    %c0_9 = arith.constant 0 : index
    %10 = vector.load %arg5[%c0_8, %c0_9] : memref<32x128xbf16, #tpu.memory_space<vmem>>, vector<32x128xbf16>
    %c0_10 = arith.constant 0 : index
    %c0_11 = arith.constant 0 : index
    %11 = vector.load %arg6[%c0_10, %c0_11] : memref<32x128xbf16, #tpu.memory_space<vmem>>, vector<32x128xbf16>
    %c0_12 = arith.constant 0 : index
    %c0_13 = arith.constant 0 : index
    %12 = vector.load %arg7[%c0_12, %c0_13] : memref<1x128xf32, #tpu.memory_space<vmem>>, vector<1x128xf32>
    %13 = vector.shape_cast %12 : vector<1x128xf32> to vector<1x128xf32>
    %14 = vector.broadcast %13 : vector<1x128xf32> to vector<8x128xf32>
    %cst_14 = arith.constant 0.000000e+00 : f32
    %15 = vector.broadcast %cst_14 : f32 to vector<8x32xf32>
    %cst_15 = arith.constant 0.000000e+00 : f32
    %16 = vector.broadcast %cst_15 : f32 to vector<8x32xf32>
    %cst_16 = arith.constant 0.000000e+00 : f32
    %17 = vector.broadcast %cst_16 : f32 to vector<8x32xf32>
    %cst_17 = arith.constant 0.000000e+00 : f32
    %18 = vector.broadcast %cst_17 : f32 to vector<8x32xf32>
    %19 = vector.extract_strided_slice %8 {offsets = [0, 0], sizes = [8, 128], strides = [1, 1]} : vector<64x128xf32> to vector<8x128xf32>
    %20 = arith.truncf %15 : vector<8x32xf32> to vector<8x32xbf16>
    %cst_18 = arith.constant dense<0.000000e+00> : vector<8x128xf32>
    %21 = tpu.matmul %20, %9, %cst_18 {dimension_numbers = #tpu.dot_dimension_numbers<[1], [0], [0], [1], [0, 0, 1, 1], [], []>} : vector<8x32xbf16>, vector<32x128xbf16>, vector<8x128xf32> -> vector<8x128xf32>
    %22 = arith.addf %21, %19 : vector<8x128xf32>
    %23 = arith.negf %22 : vector<8x128xf32>
    %24 = math.exp %23 : vector<8x128xf32>
    %cst_19 = arith.constant 1.000000e+00 : f32
    %25 = vector.broadcast %cst_19 : f32 to vector<8x128xf32>
    %26 = arith.addf %25, %24 : vector<8x128xf32>
    %27 = arith.divf %25, %26 : vector<8x128xf32>
    %28 = vector.extract_strided_slice %27 {offsets = [0, 0], sizes = [8, 32], strides = [1, 1]} : vector<8x128xf32> to vector<8x32xf32>
    %29 = vector.extract_strided_slice %27 {offsets = [0, 32], sizes = [8, 32], strides = [1, 1]} : vector<8x128xf32> to vector<8x32xf32>
    %30 = vector.extract_strided_slice %27 {offsets = [0, 64], sizes = [8, 32], strides = [1, 1]} : vector<8x128xf32> to vector<8x32xf32>
    %cst_20 = arith.constant 2.000000e+00 : f32
    %31 = vector.broadcast %cst_20 : f32 to vector<8x32xf32>
    %32 = arith.mulf %31, %30 : vector<8x32xf32>
    %cst_21 = arith.constant 1.000000e+00 : f32
    %33 = vector.broadcast %cst_21 : f32 to vector<8x32xf32>
    %34 = arith.subf %32, %33 : vector<8x32xf32>
    %35 = vector.extract_strided_slice %27 {offsets = [0, 96], sizes = [8, 32], strides = [1, 1]} : vector<8x128xf32> to vector<8x32xf32>
    %36 = arith.mulf %29, %17 : vector<8x32xf32>
    %37 = arith.mulf %28, %34 : vector<8x32xf32>
    %38 = arith.addf %36, %37 : vector<8x32xf32>
    %cst_22 = arith.constant 2.000000e+00 : f32
    %39 = vector.broadcast %cst_22 : f32 to vector<8x32xf32>
    %40 = arith.mulf %39, %38 : vector<8x32xf32>
    %41 = arith.negf %40 : vector<8x32xf32>
    %42 = math.exp %41 : vector<8x32xf32>
    %cst_23 = arith.constant 1.000000e+00 : f32
    %43 = vector.broadcast %cst_23 : f32 to vector<8x32xf32>
    %44 = arith.addf %43, %42 : vector<8x32xf32>
    %45 = arith.divf %43, %44 : vector<8x32xf32>
    %cst_24 = arith.constant 2.000000e+00 : f32
    %46 = vector.broadcast %cst_24 : f32 to vector<8x32xf32>
    %47 = arith.mulf %46, %45 : vector<8x32xf32>
    %cst_25 = arith.constant 1.000000e+00 : f32
    %48 = vector.broadcast %cst_25 : f32 to vector<8x32xf32>
    %49 = arith.subf %47, %48 : vector<8x32xf32>
    %50 = arith.mulf %35, %49 : vector<8x32xf32>
    %51 = arith.truncf %16 : vector<8x32xf32> to vector<8x32xbf16>
    %cst_26 = arith.constant dense<0.000000e+00> : vector<8x128xf32>
    %52 = tpu.matmul %51, %10, %cst_26 {dimension_numbers = #tpu.dot_dimension_numbers<[1], [0], [0], [1], [0, 0, 1, 1], [], []>} : vector<8x32xbf16>, vector<32x128xbf16>, vector<8x128xf32> -> vector<8x128xf32>
    %53 = arith.truncf %50 : vector<8x32xf32> to vector<8x32xbf16>
    %cst_27 = arith.constant dense<0.000000e+00> : vector<8x128xf32>
    %54 = tpu.matmul %53, %11, %cst_27 {dimension_numbers = #tpu.dot_dimension_numbers<[1], [0], [0], [1], [0, 0, 1, 1], [], []>} : vector<8x32xbf16>, vector<32x128xbf16>, vector<8x128xf32> -> vector<8x128xf32>
    %55 = arith.addf %52, %54 : vector<8x128xf32>
    %56 = arith.addf %55, %14 : vector<8x128xf32>
    %57 = arith.negf %56 : vector<8x128xf32>
    %58 = math.exp %57 : vector<8x128xf32>
    %cst_28 = arith.constant 1.000000e+00 : f32
    %59 = vector.broadcast %cst_28 : f32 to vector<8x128xf32>
    %60 = arith.addf %59, %58 : vector<8x128xf32>
    %61 = arith.divf %59, %60 : vector<8x128xf32>
    %62 = vector.extract_strided_slice %61 {offsets = [0, 0], sizes = [8, 32], strides = [1, 1]} : vector<8x128xf32> to vector<8x32xf32>
    %63 = vector.extract_strided_slice %61 {offsets = [0, 32], sizes = [8, 32], strides = [1, 1]} : vector<8x128xf32> to vector<8x32xf32>
    %64 = vector.extract_strided_slice %61 {offsets = [0, 64], sizes = [8, 32], strides = [1, 1]} : vector<8x128xf32> to vector<8x32xf32>
    %cst_29 = arith.constant 2.000000e+00 : f32
    %65 = vector.broadcast %cst_29 : f32 to vector<8x32xf32>
    %66 = arith.mulf %65, %64 : vector<8x32xf32>
    %cst_30 = arith.constant 1.000000e+00 : f32
    %67 = vector.broadcast %cst_30 : f32 to vector<8x32xf32>
    %68 = arith.subf %66, %67 : vector<8x32xf32>
    %69 = vector.extract_strided_slice %61 {offsets = [0, 96], sizes = [8, 32], strides = [1, 1]} : vector<8x128xf32> to vector<8x32xf32>
    %70 = arith.mulf %63, %18 : vector<8x32xf32>
    %71 = arith.mulf %62, %68 : vector<8x32xf32>
    %72 = arith.addf %70, %71 : vector<8x32xf32>
    %cst_31 = arith.constant 2.000000e+00 : f32
    %73 = vector.broadcast %cst_31 : f32 to vector<8x32xf32>
    %74 = arith.mulf %73, %72 : vector<8x32xf32>
    %75 = arith.negf %74 : vector<8x32xf32>
    %76 = math.exp %75 : vector<8x32xf32>
    %cst_32 = arith.constant 1.000000e+00 : f32
    %77 = vector.broadcast %cst_32 : f32 to vector<8x32xf32>
    %78 = arith.addf %77, %76 : vector<8x32xf32>
    %79 = arith.divf %77, %78 : vector<8x32xf32>
    %cst_33 = arith.constant 2.000000e+00 : f32
    %80 = vector.broadcast %cst_33 : f32 to vector<8x32xf32>
    %81 = arith.mulf %80, %79 : vector<8x32xf32>
    %cst_34 = arith.constant 1.000000e+00 : f32
    %82 = vector.broadcast %cst_34 : f32 to vector<8x32xf32>
    %83 = arith.subf %81, %82 : vector<8x32xf32>
    %84 = arith.mulf %69, %83 : vector<8x32xf32>
    %85 = vector.extract_strided_slice %8 {offsets = [8, 0], sizes = [8, 128], strides = [1, 1]} : vector<64x128xf32> to vector<8x128xf32>
    %86 = arith.truncf %50 : vector<8x32xf32> to vector<8x32xbf16>
    %cst_35 = arith.constant dense<0.000000e+00> : vector<8x128xf32>
    %87 = tpu.matmul %86, %9, %cst_35 {dimension_numbers = #tpu.dot_dimension_numbers<[1], [0], [0], [1], [0, 0, 1, 1], [], []>} : vector<8x32xbf16>, vector<32x128xbf16>, vector<8x128xf32> -> vector<8x128xf32>
    %88 = arith.addf %87, %85 : vector<8x128xf32>
    %89 = arith.negf %88 : vector<8x128xf32>
    %90 = math.exp %89 : vector<8x128xf32>
    %cst_36 = arith.constant 1.000000e+00 : f32
    %91 = vector.broadcast %cst_36 : f32 to vector<8x128xf32>
    %92 = arith.addf %91, %90 : vector<8x128xf32>
    %93 = arith.divf %91, %92 : vector<8x128xf32>
    %94 = vector.extract_strided_slice %93 {offsets = [0, 0], sizes = [8, 32], strides = [1, 1]} : vector<8x128xf32> to vector<8x32xf32>
    %95 = vector.extract_strided_slice %93 {offsets = [0, 32], sizes = [8, 32], strides = [1, 1]} : vector<8x128xf32> to vector<8x32xf32>
    %96 = vector.extract_strided_slice %93 {offsets = [0, 64], sizes = [8, 32], strides = [1, 1]} : vector<8x128xf32> to vector<8x32xf32>
    %cst_37 = arith.constant 2.000000e+00 : f32
    %97 = vector.broadcast %cst_37 : f32 to vector<8x32xf32>
    %98 = arith.mulf %97, %96 : vector<8x32xf32>
    %cst_38 = arith.constant 1.000000e+00 : f32
    %99 = vector.broadcast %cst_38 : f32 to vector<8x32xf32>
    %100 = arith.subf %98, %99 : vector<8x32xf32>
    %101 = vector.extract_strided_slice %93 {offsets = [0, 96], sizes = [8, 32], strides = [1, 1]} : vector<8x128xf32> to vector<8x32xf32>
    %102 = arith.mulf %95, %38 : vector<8x32xf32>
    %103 = arith.mulf %94, %100 : vector<8x32xf32>
    %104 = arith.addf %102, %103 : vector<8x32xf32>
    %cst_39 = arith.constant 2.000000e+00 : f32
    %105 = vector.broadcast %cst_39 : f32 to vector<8x32xf32>
    %106 = arith.mulf %105, %104 : vector<8x32xf32>
    %107 = arith.negf %106 : vector<8x32xf32>
    %108 = math.exp %107 : vector<8x32xf32>
    %cst_40 = arith.constant 1.000000e+00 : f32
    %109 = vector.broadcast %cst_40 : f32 to vector<8x32xf32>
    %110 = arith.addf %109, %108 : vector<8x32xf32>
    %111 = arith.divf %109, %110 : vector<8x32xf32>
    %cst_41 = arith.constant 2.000000e+00 : f32
    %112 = vector.broadcast %cst_41 : f32 to vector<8x32xf32>
    %113 = arith.mulf %112, %111 : vector<8x32xf32>
    %cst_42 = arith.constant 1.000000e+00 : f32
    %114 = vector.broadcast %cst_42 : f32 to vector<8x32xf32>
    %115 = arith.subf %113, %114 : vector<8x32xf32>
    %116 = arith.mulf %101, %115 : vector<8x32xf32>
    %117 = arith.truncf %84 : vector<8x32xf32> to vector<8x32xbf16>
    %cst_43 = arith.constant dense<0.000000e+00> : vector<8x128xf32>
    %118 = tpu.matmul %117, %10, %cst_43 {dimension_numbers = #tpu.dot_dimension_numbers<[1], [0], [0], [1], [0, 0, 1, 1], [], []>} : vector<8x32xbf16>, vector<32x128xbf16>, vector<8x128xf32> -> vector<8x128xf32>
    %119 = arith.truncf %116 : vector<8x32xf32> to vector<8x32xbf16>
    %cst_44 = arith.constant dense<0.000000e+00> : vector<8x128xf32>
    %120 = tpu.matmul %119, %11, %cst_44 {dimension_numbers = #tpu.dot_dimension_numbers<[1], [0], [0], [1], [0, 0, 1, 1], [], []>} : vector<8x32xbf16>, vector<32x128xbf16>, vector<8x128xf32> -> vector<8x128xf32>
    %121 = arith.addf %118, %120 : vector<8x128xf32>
    %122 = arith.addf %121, %14 : vector<8x128xf32>
    %123 = arith.negf %122 : vector<8x128xf32>
    %124 = math.exp %123 : vector<8x128xf32>
    %cst_45 = arith.constant 1.000000e+00 : f32
    %125 = vector.broadcast %cst_45 : f32 to vector<8x128xf32>
    %126 = arith.addf %125, %124 : vector<8x128xf32>
    %127 = arith.divf %125, %126 : vector<8x128xf32>
    %128 = vector.extract_strided_slice %127 {offsets = [0, 0], sizes = [8, 32], strides = [1, 1]} : vector<8x128xf32> to vector<8x32xf32>
    %129 = vector.extract_strided_slice %127 {offsets = [0, 32], sizes = [8, 32], strides = [1, 1]} : vector<8x128xf32> to vector<8x32xf32>
    %130 = vector.extract_strided_slice %127 {offsets = [0, 64], sizes = [8, 32], strides = [1, 1]} : vector<8x128xf32> to vector<8x32xf32>
    %cst_46 = arith.constant 2.000000e+00 : f32
    %131 = vector.broadcast %cst_46 : f32 to vector<8x32xf32>
    %132 = arith.mulf %131, %130 : vector<8x32xf32>
    %cst_47 = arith.constant 1.000000e+00 : f32
    %133 = vector.broadcast %cst_47 : f32 to vector<8x32xf32>
    %134 = arith.subf %132, %133 : vector<8x32xf32>
    %135 = vector.extract_strided_slice %127 {offsets = [0, 96], sizes = [8, 32], strides = [1, 1]} : vector<8x128xf32> to vector<8x32xf32>
    %136 = arith.mulf %129, %72 : vector<8x32xf32>
    %137 = arith.mulf %128, %134 : vector<8x32xf32>
    %138 = arith.addf %136, %137 : vector<8x32xf32>
    %cst_48 = arith.constant 2.000000e+00 : f32
    %139 = vector.broadcast %cst_48 : f32 to vector<8x32xf32>
    %140 = arith.mulf %139, %138 : vector<8x32xf32>
    %141 = arith.negf %140 : vector<8x32xf32>
    %142 = math.exp %141 : vector<8x32xf32>
    %cst_49 = arith.constant 1.000000e+00 : f32
    %143 = vector.broadcast %cst_49 : f32 to vector<8x32xf32>
    %144 = arith.addf %143, %142 : vector<8x32xf32>
    %145 = arith.divf %143, %144 : vector<8x32xf32>
    %cst_50 = arith.constant 2.000000e+00 : f32
    %146 = vector.broadcast %cst_50 : f32 to vector<8x32xf32>
    %147 = arith.mulf %146, %145 : vector<8x32xf32>
    %cst_51 = arith.constant 1.000000e+00 : f32
    %148 = vector.broadcast %cst_51 : f32 to vector<8x32xf32>
    %149 = arith.subf %147, %148 : vector<8x32xf32>
    %150 = arith.mulf %135, %149 : vector<8x32xf32>
    %151 = vector.extract_strided_slice %8 {offsets = [16, 0], sizes = [8, 128], strides = [1, 1]} : vector<64x128xf32> to vector<8x128xf32>
    %152 = arith.truncf %116 : vector<8x32xf32> to vector<8x32xbf16>
    %cst_52 = arith.constant dense<0.000000e+00> : vector<8x128xf32>
    %153 = tpu.matmul %152, %9, %cst_52 {dimension_numbers = #tpu.dot_dimension_numbers<[1], [0], [0], [1], [0, 0, 1, 1], [], []>} : vector<8x32xbf16>, vector<32x128xbf16>, vector<8x128xf32> -> vector<8x128xf32>
    %154 = arith.addf %153, %151 : vector<8x128xf32>
    %155 = arith.negf %154 : vector<8x128xf32>
    %156 = math.exp %155 : vector<8x128xf32>
    %cst_53 = arith.constant 1.000000e+00 : f32
    %157 = vector.broadcast %cst_53 : f32 to vector<8x128xf32>
    %158 = arith.addf %157, %156 : vector<8x128xf32>
    %159 = arith.divf %157, %158 : vector<8x128xf32>
    %160 = vector.extract_strided_slice %159 {offsets = [0, 0], sizes = [8, 32], strides = [1, 1]} : vector<8x128xf32> to vector<8x32xf32>
    %161 = vector.extract_strided_slice %159 {offsets = [0, 32], sizes = [8, 32], strides = [1, 1]} : vector<8x128xf32> to vector<8x32xf32>
    %162 = vector.extract_strided_slice %159 {offsets = [0, 64], sizes = [8, 32], strides = [1, 1]} : vector<8x128xf32> to vector<8x32xf32>
    %cst_54 = arith.constant 2.000000e+00 : f32
    %163 = vector.broadcast %cst_54 : f32 to vector<8x32xf32>
    %164 = arith.mulf %163, %162 : vector<8x32xf32>
    %cst_55 = arith.constant 1.000000e+00 : f32
    %165 = vector.broadcast %cst_55 : f32 to vector<8x32xf32>
    %166 = arith.subf %164, %165 : vector<8x32xf32>
    %167 = vector.extract_strided_slice %159 {offsets = [0, 96], sizes = [8, 32], strides = [1, 1]} : vector<8x128xf32> to vector<8x32xf32>
    %168 = arith.mulf %161, %104 : vector<8x32xf32>
    %169 = arith.mulf %160, %166 : vector<8x32xf32>
    %170 = arith.addf %168, %169 : vector<8x32xf32>
    %cst_56 = arith.constant 2.000000e+00 : f32
    %171 = vector.broadcast %cst_56 : f32 to vector<8x32xf32>
    %172 = arith.mulf %171, %170 : vector<8x32xf32>
    %173 = arith.negf %172 : vector<8x32xf32>
    %174 = math.exp %173 : vector<8x32xf32>
    %cst_57 = arith.constant 1.000000e+00 : f32
    %175 = vector.broadcast %cst_57 : f32 to vector<8x32xf32>
    %176 = arith.addf %175, %174 : vector<8x32xf32>
    %177 = arith.divf %175, %176 : vector<8x32xf32>
    %cst_58 = arith.constant 2.000000e+00 : f32
    %178 = vector.broadcast %cst_58 : f32 to vector<8x32xf32>
    %179 = arith.mulf %178, %177 : vector<8x32xf32>
    %cst_59 = arith.constant 1.000000e+00 : f32
    %180 = vector.broadcast %cst_59 : f32 to vector<8x32xf32>
    %181 = arith.subf %179, %180 : vector<8x32xf32>
    %182 = arith.mulf %167, %181 : vector<8x32xf32>
    %183 = arith.truncf %150 : vector<8x32xf32> to vector<8x32xbf16>
    %cst_60 = arith.constant dense<0.000000e+00> : vector<8x128xf32>
    %184 = tpu.matmul %183, %10, %cst_60 {dimension_numbers = #tpu.dot_dimension_numbers<[1], [0], [0], [1], [0, 0, 1, 1], [], []>} : vector<8x32xbf16>, vector<32x128xbf16>, vector<8x128xf32> -> vector<8x128xf32>
    %185 = arith.truncf %182 : vector<8x32xf32> to vector<8x32xbf16>
    %cst_61 = arith.constant dense<0.000000e+00> : vector<8x128xf32>
    %186 = tpu.matmul %185, %11, %cst_61 {dimension_numbers = #tpu.dot_dimension_numbers<[1], [0], [0], [1], [0, 0, 1, 1], [], []>} : vector<8x32xbf16>, vector<32x128xbf16>, vector<8x128xf32> -> vector<8x128xf32>
    %187 = arith.addf %184, %186 : vector<8x128xf32>
    %188 = arith.addf %187, %14 : vector<8x128xf32>
    %189 = arith.negf %188 : vector<8x128xf32>
    %190 = math.exp %189 : vector<8x128xf32>
    %cst_62 = arith.constant 1.000000e+00 : f32
    %191 = vector.broadcast %cst_62 : f32 to vector<8x128xf32>
    %192 = arith.addf %191, %190 : vector<8x128xf32>
    %193 = arith.divf %191, %192 : vector<8x128xf32>
    %194 = vector.extract_strided_slice %193 {offsets = [0, 0], sizes = [8, 32], strides = [1, 1]} : vector<8x128xf32> to vector<8x32xf32>
    %195 = vector.extract_strided_slice %193 {offsets = [0, 32], sizes = [8, 32], strides = [1, 1]} : vector<8x128xf32> to vector<8x32xf32>
    %196 = vector.extract_strided_slice %193 {offsets = [0, 64], sizes = [8, 32], strides = [1, 1]} : vector<8x128xf32> to vector<8x32xf32>
    %cst_63 = arith.constant 2.000000e+00 : f32
    %197 = vector.broadcast %cst_63 : f32 to vector<8x32xf32>
    %198 = arith.mulf %197, %196 : vector<8x32xf32>
    %cst_64 = arith.constant 1.000000e+00 : f32
    %199 = vector.broadcast %cst_64 : f32 to vector<8x32xf32>
    %200 = arith.subf %198, %199 : vector<8x32xf32>
    %201 = vector.extract_strided_slice %193 {offsets = [0, 96], sizes = [8, 32], strides = [1, 1]} : vector<8x128xf32> to vector<8x32xf32>
    %202 = arith.mulf %195, %138 : vector<8x32xf32>
    %203 = arith.mulf %194, %200 : vector<8x32xf32>
    %204 = arith.addf %202, %203 : vector<8x32xf32>
    %cst_65 = arith.constant 2.000000e+00 : f32
    %205 = vector.broadcast %cst_65 : f32 to vector<8x32xf32>
    %206 = arith.mulf %205, %204 : vector<8x32xf32>
    %207 = arith.negf %206 : vector<8x32xf32>
    %208 = math.exp %207 : vector<8x32xf32>
    %cst_66 = arith.constant 1.000000e+00 : f32
    %209 = vector.broadcast %cst_66 : f32 to vector<8x32xf32>
    %210 = arith.addf %209, %208 : vector<8x32xf32>
    %211 = arith.divf %209, %210 : vector<8x32xf32>
    %cst_67 = arith.constant 2.000000e+00 : f32
    %212 = vector.broadcast %cst_67 : f32 to vector<8x32xf32>
    %213 = arith.mulf %212, %211 : vector<8x32xf32>
    %cst_68 = arith.constant 1.000000e+00 : f32
    %214 = vector.broadcast %cst_68 : f32 to vector<8x32xf32>
    %215 = arith.subf %213, %214 : vector<8x32xf32>
    %216 = arith.mulf %201, %215 : vector<8x32xf32>
    %217 = vector.extract_strided_slice %8 {offsets = [24, 0], sizes = [8, 128], strides = [1, 1]} : vector<64x128xf32> to vector<8x128xf32>
    %218 = arith.truncf %182 : vector<8x32xf32> to vector<8x32xbf16>
    %cst_69 = arith.constant dense<0.000000e+00> : vector<8x128xf32>
    %219 = tpu.matmul %218, %9, %cst_69 {dimension_numbers = #tpu.dot_dimension_numbers<[1], [0], [0], [1], [0, 0, 1, 1], [], []>} : vector<8x32xbf16>, vector<32x128xbf16>, vector<8x128xf32> -> vector<8x128xf32>
    %220 = arith.addf %219, %217 : vector<8x128xf32>
    %221 = arith.negf %220 : vector<8x128xf32>
    %222 = math.exp %221 : vector<8x128xf32>
    %cst_70 = arith.constant 1.000000e+00 : f32
    %223 = vector.broadcast %cst_70 : f32 to vector<8x128xf32>
    %224 = arith.addf %223, %222 : vector<8x128xf32>
    %225 = arith.divf %223, %224 : vector<8x128xf32>
    %226 = vector.extract_strided_slice %225 {offsets = [0, 0], sizes = [8, 32], strides = [1, 1]} : vector<8x128xf32> to vector<8x32xf32>
    %227 = vector.extract_strided_slice %225 {offsets = [0, 32], sizes = [8, 32], strides = [1, 1]} : vector<8x128xf32> to vector<8x32xf32>
    %228 = vector.extract_strided_slice %225 {offsets = [0, 64], sizes = [8, 32], strides = [1, 1]} : vector<8x128xf32> to vector<8x32xf32>
    %cst_71 = arith.constant 2.000000e+00 : f32
    %229 = vector.broadcast %cst_71 : f32 to vector<8x32xf32>
    %230 = arith.mulf %229, %228 : vector<8x32xf32>
    %cst_72 = arith.constant 1.000000e+00 : f32
    %231 = vector.broadcast %cst_72 : f32 to vector<8x32xf32>
    %232 = arith.subf %230, %231 : vector<8x32xf32>
    %233 = vector.extract_strided_slice %225 {offsets = [0, 96], sizes = [8, 32], strides = [1, 1]} : vector<8x128xf32> to vector<8x32xf32>
    %234 = arith.mulf %227, %170 : vector<8x32xf32>
    %235 = arith.mulf %226, %232 : vector<8x32xf32>
    %236 = arith.addf %234, %235 : vector<8x32xf32>
    %cst_73 = arith.constant 2.000000e+00 : f32
    %237 = vector.broadcast %cst_73 : f32 to vector<8x32xf32>
    %238 = arith.mulf %237, %236 : vector<8x32xf32>
    %239 = arith.negf %238 : vector<8x32xf32>
    %240 = math.exp %239 : vector<8x32xf32>
    %cst_74 = arith.constant 1.000000e+00 : f32
    %241 = vector.broadcast %cst_74 : f32 to vector<8x32xf32>
    %242 = arith.addf %241, %240 : vector<8x32xf32>
    %243 = arith.divf %241, %242 : vector<8x32xf32>
    %cst_75 = arith.constant 2.000000e+00 : f32
    %244 = vector.broadcast %cst_75 : f32 to vector<8x32xf32>
    %245 = arith.mulf %244, %243 : vector<8x32xf32>
    %cst_76 = arith.constant 1.000000e+00 : f32
    %246 = vector.broadcast %cst_76 : f32 to vector<8x32xf32>
    %247 = arith.subf %245, %246 : vector<8x32xf32>
    %248 = arith.mulf %233, %247 : vector<8x32xf32>
    %249 = arith.truncf %216 : vector<8x32xf32> to vector<8x32xbf16>
    %cst_77 = arith.constant dense<0.000000e+00> : vector<8x128xf32>
    %250 = tpu.matmul %249, %10, %cst_77 {dimension_numbers = #tpu.dot_dimension_numbers<[1], [0], [0], [1], [0, 0, 1, 1], [], []>} : vector<8x32xbf16>, vector<32x128xbf16>, vector<8x128xf32> -> vector<8x128xf32>
    %251 = arith.truncf %248 : vector<8x32xf32> to vector<8x32xbf16>
    %cst_78 = arith.constant dense<0.000000e+00> : vector<8x128xf32>
    %252 = tpu.matmul %251, %11, %cst_78 {dimension_numbers = #tpu.dot_dimension_numbers<[1], [0], [0], [1], [0, 0, 1, 1], [], []>} : vector<8x32xbf16>, vector<32x128xbf16>, vector<8x128xf32> -> vector<8x128xf32>
    %253 = arith.addf %250, %252 : vector<8x128xf32>
    %254 = arith.addf %253, %14 : vector<8x128xf32>
    %255 = arith.negf %254 : vector<8x128xf32>
    %256 = math.exp %255 : vector<8x128xf32>
    %cst_79 = arith.constant 1.000000e+00 : f32
    %257 = vector.broadcast %cst_79 : f32 to vector<8x128xf32>
    %258 = arith.addf %257, %256 : vector<8x128xf32>
    %259 = arith.divf %257, %258 : vector<8x128xf32>
    %260 = vector.extract_strided_slice %259 {offsets = [0, 0], sizes = [8, 32], strides = [1, 1]} : vector<8x128xf32> to vector<8x32xf32>
    %261 = vector.extract_strided_slice %259 {offsets = [0, 32], sizes = [8, 32], strides = [1, 1]} : vector<8x128xf32> to vector<8x32xf32>
    %262 = vector.extract_strided_slice %259 {offsets = [0, 64], sizes = [8, 32], strides = [1, 1]} : vector<8x128xf32> to vector<8x32xf32>
    %cst_80 = arith.constant 2.000000e+00 : f32
    %263 = vector.broadcast %cst_80 : f32 to vector<8x32xf32>
    %264 = arith.mulf %263, %262 : vector<8x32xf32>
    %cst_81 = arith.constant 1.000000e+00 : f32
    %265 = vector.broadcast %cst_81 : f32 to vector<8x32xf32>
    %266 = arith.subf %264, %265 : vector<8x32xf32>
    %267 = vector.extract_strided_slice %259 {offsets = [0, 96], sizes = [8, 32], strides = [1, 1]} : vector<8x128xf32> to vector<8x32xf32>
    %268 = arith.mulf %261, %204 : vector<8x32xf32>
    %269 = arith.mulf %260, %266 : vector<8x32xf32>
    %270 = arith.addf %268, %269 : vector<8x32xf32>
    %cst_82 = arith.constant 2.000000e+00 : f32
    %271 = vector.broadcast %cst_82 : f32 to vector<8x32xf32>
    %272 = arith.mulf %271, %270 : vector<8x32xf32>
    %273 = arith.negf %272 : vector<8x32xf32>
    %274 = math.exp %273 : vector<8x32xf32>
    %cst_83 = arith.constant 1.000000e+00 : f32
    %275 = vector.broadcast %cst_83 : f32 to vector<8x32xf32>
    %276 = arith.addf %275, %274 : vector<8x32xf32>
    %277 = arith.divf %275, %276 : vector<8x32xf32>
    %cst_84 = arith.constant 2.000000e+00 : f32
    %278 = vector.broadcast %cst_84 : f32 to vector<8x32xf32>
    %279 = arith.mulf %278, %277 : vector<8x32xf32>
    %cst_85 = arith.constant 1.000000e+00 : f32
    %280 = vector.broadcast %cst_85 : f32 to vector<8x32xf32>
    %281 = arith.subf %279, %280 : vector<8x32xf32>
    %282 = arith.mulf %267, %281 : vector<8x32xf32>
    %283 = vector.extract_strided_slice %8 {offsets = [32, 0], sizes = [8, 128], strides = [1, 1]} : vector<64x128xf32> to vector<8x128xf32>
    %284 = arith.truncf %248 : vector<8x32xf32> to vector<8x32xbf16>
    %cst_86 = arith.constant dense<0.000000e+00> : vector<8x128xf32>
    %285 = tpu.matmul %284, %9, %cst_86 {dimension_numbers = #tpu.dot_dimension_numbers<[1], [0], [0], [1], [0, 0, 1, 1], [], []>} : vector<8x32xbf16>, vector<32x128xbf16>, vector<8x128xf32> -> vector<8x128xf32>
    %286 = arith.addf %285, %283 : vector<8x128xf32>
    %287 = arith.negf %286 : vector<8x128xf32>
    %288 = math.exp %287 : vector<8x128xf32>
    %cst_87 = arith.constant 1.000000e+00 : f32
    %289 = vector.broadcast %cst_87 : f32 to vector<8x128xf32>
    %290 = arith.addf %289, %288 : vector<8x128xf32>
    %291 = arith.divf %289, %290 : vector<8x128xf32>
    %292 = vector.extract_strided_slice %291 {offsets = [0, 0], sizes = [8, 32], strides = [1, 1]} : vector<8x128xf32> to vector<8x32xf32>
    %293 = vector.extract_strided_slice %291 {offsets = [0, 32], sizes = [8, 32], strides = [1, 1]} : vector<8x128xf32> to vector<8x32xf32>
    %294 = vector.extract_strided_slice %291 {offsets = [0, 64], sizes = [8, 32], strides = [1, 1]} : vector<8x128xf32> to vector<8x32xf32>
    %cst_88 = arith.constant 2.000000e+00 : f32
    %295 = vector.broadcast %cst_88 : f32 to vector<8x32xf32>
    %296 = arith.mulf %295, %294 : vector<8x32xf32>
    %cst_89 = arith.constant 1.000000e+00 : f32
    %297 = vector.broadcast %cst_89 : f32 to vector<8x32xf32>
    %298 = arith.subf %296, %297 : vector<8x32xf32>
    %299 = vector.extract_strided_slice %291 {offsets = [0, 96], sizes = [8, 32], strides = [1, 1]} : vector<8x128xf32> to vector<8x32xf32>
    %300 = arith.mulf %293, %236 : vector<8x32xf32>
    %301 = arith.mulf %292, %298 : vector<8x32xf32>
    %302 = arith.addf %300, %301 : vector<8x32xf32>
    %cst_90 = arith.constant 2.000000e+00 : f32
    %303 = vector.broadcast %cst_90 : f32 to vector<8x32xf32>
    %304 = arith.mulf %303, %302 : vector<8x32xf32>
    %305 = arith.negf %304 : vector<8x32xf32>
    %306 = math.exp %305 : vector<8x32xf32>
    %cst_91 = arith.constant 1.000000e+00 : f32
    %307 = vector.broadcast %cst_91 : f32 to vector<8x32xf32>
    %308 = arith.addf %307, %306 : vector<8x32xf32>
    %309 = arith.divf %307, %308 : vector<8x32xf32>
    %cst_92 = arith.constant 2.000000e+00 : f32
    %310 = vector.broadcast %cst_92 : f32 to vector<8x32xf32>
    %311 = arith.mulf %310, %309 : vector<8x32xf32>
    %cst_93 = arith.constant 1.000000e+00 : f32
    %312 = vector.broadcast %cst_93 : f32 to vector<8x32xf32>
    %313 = arith.subf %311, %312 : vector<8x32xf32>
    %314 = arith.mulf %299, %313 : vector<8x32xf32>
    %315 = arith.truncf %282 : vector<8x32xf32> to vector<8x32xbf16>
    %cst_94 = arith.constant dense<0.000000e+00> : vector<8x128xf32>
    %316 = tpu.matmul %315, %10, %cst_94 {dimension_numbers = #tpu.dot_dimension_numbers<[1], [0], [0], [1], [0, 0, 1, 1], [], []>} : vector<8x32xbf16>, vector<32x128xbf16>, vector<8x128xf32> -> vector<8x128xf32>
    %317 = arith.truncf %314 : vector<8x32xf32> to vector<8x32xbf16>
    %cst_95 = arith.constant dense<0.000000e+00> : vector<8x128xf32>
    %318 = tpu.matmul %317, %11, %cst_95 {dimension_numbers = #tpu.dot_dimension_numbers<[1], [0], [0], [1], [0, 0, 1, 1], [], []>} : vector<8x32xbf16>, vector<32x128xbf16>, vector<8x128xf32> -> vector<8x128xf32>
    %319 = arith.addf %316, %318 : vector<8x128xf32>
    %320 = arith.addf %319, %14 : vector<8x128xf32>
    %321 = arith.negf %320 : vector<8x128xf32>
    %322 = math.exp %321 : vector<8x128xf32>
    %cst_96 = arith.constant 1.000000e+00 : f32
    %323 = vector.broadcast %cst_96 : f32 to vector<8x128xf32>
    %324 = arith.addf %323, %322 : vector<8x128xf32>
    %325 = arith.divf %323, %324 : vector<8x128xf32>
    %326 = vector.extract_strided_slice %325 {offsets = [0, 0], sizes = [8, 32], strides = [1, 1]} : vector<8x128xf32> to vector<8x32xf32>
    %327 = vector.extract_strided_slice %325 {offsets = [0, 32], sizes = [8, 32], strides = [1, 1]} : vector<8x128xf32> to vector<8x32xf32>
    %328 = vector.extract_strided_slice %325 {offsets = [0, 64], sizes = [8, 32], strides = [1, 1]} : vector<8x128xf32> to vector<8x32xf32>
    %cst_97 = arith.constant 2.000000e+00 : f32
    %329 = vector.broadcast %cst_97 : f32 to vector<8x32xf32>
    %330 = arith.mulf %329, %328 : vector<8x32xf32>
    %cst_98 = arith.constant 1.000000e+00 : f32
    %331 = vector.broadcast %cst_98 : f32 to vector<8x32xf32>
    %332 = arith.subf %330, %331 : vector<8x32xf32>
    %333 = vector.extract_strided_slice %325 {offsets = [0, 96], sizes = [8, 32], strides = [1, 1]} : vector<8x128xf32> to vector<8x32xf32>
    %334 = arith.mulf %327, %270 : vector<8x32xf32>
    %335 = arith.mulf %326, %332 : vector<8x32xf32>
    %336 = arith.addf %334, %335 : vector<8x32xf32>
    %cst_99 = arith.constant 2.000000e+00 : f32
    %337 = vector.broadcast %cst_99 : f32 to vector<8x32xf32>
    %338 = arith.mulf %337, %336 : vector<8x32xf32>
    %339 = arith.negf %338 : vector<8x32xf32>
    %340 = math.exp %339 : vector<8x32xf32>
    %cst_100 = arith.constant 1.000000e+00 : f32
    %341 = vector.broadcast %cst_100 : f32 to vector<8x32xf32>
    %342 = arith.addf %341, %340 : vector<8x32xf32>
    %343 = arith.divf %341, %342 : vector<8x32xf32>
    %cst_101 = arith.constant 2.000000e+00 : f32
    %344 = vector.broadcast %cst_101 : f32 to vector<8x32xf32>
    %345 = arith.mulf %344, %343 : vector<8x32xf32>
    %cst_102 = arith.constant 1.000000e+00 : f32
    %346 = vector.broadcast %cst_102 : f32 to vector<8x32xf32>
    %347 = arith.subf %345, %346 : vector<8x32xf32>
    %348 = arith.mulf %333, %347 : vector<8x32xf32>
    %349 = vector.extract_strided_slice %8 {offsets = [40, 0], sizes = [8, 128], strides = [1, 1]} : vector<64x128xf32> to vector<8x128xf32>
    %350 = arith.truncf %314 : vector<8x32xf32> to vector<8x32xbf16>
    %cst_103 = arith.constant dense<0.000000e+00> : vector<8x128xf32>
    %351 = tpu.matmul %350, %9, %cst_103 {dimension_numbers = #tpu.dot_dimension_numbers<[1], [0], [0], [1], [0, 0, 1, 1], [], []>} : vector<8x32xbf16>, vector<32x128xbf16>, vector<8x128xf32> -> vector<8x128xf32>
    %352 = arith.addf %351, %349 : vector<8x128xf32>
    %353 = arith.negf %352 : vector<8x128xf32>
    %354 = math.exp %353 : vector<8x128xf32>
    %cst_104 = arith.constant 1.000000e+00 : f32
    %355 = vector.broadcast %cst_104 : f32 to vector<8x128xf32>
    %356 = arith.addf %355, %354 : vector<8x128xf32>
    %357 = arith.divf %355, %356 : vector<8x128xf32>
    %358 = vector.extract_strided_slice %357 {offsets = [0, 0], sizes = [8, 32], strides = [1, 1]} : vector<8x128xf32> to vector<8x32xf32>
    %359 = vector.extract_strided_slice %357 {offsets = [0, 32], sizes = [8, 32], strides = [1, 1]} : vector<8x128xf32> to vector<8x32xf32>
    %360 = vector.extract_strided_slice %357 {offsets = [0, 64], sizes = [8, 32], strides = [1, 1]} : vector<8x128xf32> to vector<8x32xf32>
    %cst_105 = arith.constant 2.000000e+00 : f32
    %361 = vector.broadcast %cst_105 : f32 to vector<8x32xf32>
    %362 = arith.mulf %361, %360 : vector<8x32xf32>
    %cst_106 = arith.constant 1.000000e+00 : f32
    %363 = vector.broadcast %cst_106 : f32 to vector<8x32xf32>
    %364 = arith.subf %362, %363 : vector<8x32xf32>
    %365 = vector.extract_strided_slice %357 {offsets = [0, 96], sizes = [8, 32], strides = [1, 1]} : vector<8x128xf32> to vector<8x32xf32>
    %366 = arith.mulf %359, %302 : vector<8x32xf32>
    %367 = arith.mulf %358, %364 : vector<8x32xf32>
    %368 = arith.addf %366, %367 : vector<8x32xf32>
    %cst_107 = arith.constant 2.000000e+00 : f32
    %369 = vector.broadcast %cst_107 : f32 to vector<8x32xf32>
    %370 = arith.mulf %369, %368 : vector<8x32xf32>
    %371 = arith.negf %370 : vector<8x32xf32>
    %372 = math.exp %371 : vector<8x32xf32>
    %cst_108 = arith.constant 1.000000e+00 : f32
    %373 = vector.broadcast %cst_108 : f32 to vector<8x32xf32>
    %374 = arith.addf %373, %372 : vector<8x32xf32>
    %375 = arith.divf %373, %374 : vector<8x32xf32>
    %cst_109 = arith.constant 2.000000e+00 : f32
    %376 = vector.broadcast %cst_109 : f32 to vector<8x32xf32>
    %377 = arith.mulf %376, %375 : vector<8x32xf32>
    %cst_110 = arith.constant 1.000000e+00 : f32
    %378 = vector.broadcast %cst_110 : f32 to vector<8x32xf32>
    %379 = arith.subf %377, %378 : vector<8x32xf32>
    %380 = arith.mulf %365, %379 : vector<8x32xf32>
    %381 = arith.truncf %348 : vector<8x32xf32> to vector<8x32xbf16>
    %cst_111 = arith.constant dense<0.000000e+00> : vector<8x128xf32>
    %382 = tpu.matmul %381, %10, %cst_111 {dimension_numbers = #tpu.dot_dimension_numbers<[1], [0], [0], [1], [0, 0, 1, 1], [], []>} : vector<8x32xbf16>, vector<32x128xbf16>, vector<8x128xf32> -> vector<8x128xf32>
    %383 = arith.truncf %380 : vector<8x32xf32> to vector<8x32xbf16>
    %cst_112 = arith.constant dense<0.000000e+00> : vector<8x128xf32>
    %384 = tpu.matmul %383, %11, %cst_112 {dimension_numbers = #tpu.dot_dimension_numbers<[1], [0], [0], [1], [0, 0, 1, 1], [], []>} : vector<8x32xbf16>, vector<32x128xbf16>, vector<8x128xf32> -> vector<8x128xf32>
    %385 = arith.addf %382, %384 : vector<8x128xf32>
    %386 = arith.addf %385, %14 : vector<8x128xf32>
    %387 = arith.negf %386 : vector<8x128xf32>
    %388 = math.exp %387 : vector<8x128xf32>
    %cst_113 = arith.constant 1.000000e+00 : f32
    %389 = vector.broadcast %cst_113 : f32 to vector<8x128xf32>
    %390 = arith.addf %389, %388 : vector<8x128xf32>
    %391 = arith.divf %389, %390 : vector<8x128xf32>
    %392 = vector.extract_strided_slice %391 {offsets = [0, 0], sizes = [8, 32], strides = [1, 1]} : vector<8x128xf32> to vector<8x32xf32>
    %393 = vector.extract_strided_slice %391 {offsets = [0, 32], sizes = [8, 32], strides = [1, 1]} : vector<8x128xf32> to vector<8x32xf32>
    %394 = vector.extract_strided_slice %391 {offsets = [0, 64], sizes = [8, 32], strides = [1, 1]} : vector<8x128xf32> to vector<8x32xf32>
    %cst_114 = arith.constant 2.000000e+00 : f32
    %395 = vector.broadcast %cst_114 : f32 to vector<8x32xf32>
    %396 = arith.mulf %395, %394 : vector<8x32xf32>
    %cst_115 = arith.constant 1.000000e+00 : f32
    %397 = vector.broadcast %cst_115 : f32 to vector<8x32xf32>
    %398 = arith.subf %396, %397 : vector<8x32xf32>
    %399 = vector.extract_strided_slice %391 {offsets = [0, 96], sizes = [8, 32], strides = [1, 1]} : vector<8x128xf32> to vector<8x32xf32>
    %400 = arith.mulf %393, %336 : vector<8x32xf32>
    %401 = arith.mulf %392, %398 : vector<8x32xf32>
    %402 = arith.addf %400, %401 : vector<8x32xf32>
    %cst_116 = arith.constant 2.000000e+00 : f32
    %403 = vector.broadcast %cst_116 : f32 to vector<8x32xf32>
    %404 = arith.mulf %403, %402 : vector<8x32xf32>
    %405 = arith.negf %404 : vector<8x32xf32>
    %406 = math.exp %405 : vector<8x32xf32>
    %cst_117 = arith.constant 1.000000e+00 : f32
    %407 = vector.broadcast %cst_117 : f32 to vector<8x32xf32>
    %408 = arith.addf %407, %406 : vector<8x32xf32>
    %409 = arith.divf %407, %408 : vector<8x32xf32>
    %cst_118 = arith.constant 2.000000e+00 : f32
    %410 = vector.broadcast %cst_118 : f32 to vector<8x32xf32>
    %411 = arith.mulf %410, %409 : vector<8x32xf32>
    %cst_119 = arith.constant 1.000000e+00 : f32
    %412 = vector.broadcast %cst_119 : f32 to vector<8x32xf32>
    %413 = arith.subf %411, %412 : vector<8x32xf32>
    %414 = arith.mulf %399, %413 : vector<8x32xf32>
    %415 = vector.extract_strided_slice %8 {offsets = [48, 0], sizes = [8, 128], strides = [1, 1]} : vector<64x128xf32> to vector<8x128xf32>
    %416 = arith.truncf %380 : vector<8x32xf32> to vector<8x32xbf16>
    %cst_120 = arith.constant dense<0.000000e+00> : vector<8x128xf32>
    %417 = tpu.matmul %416, %9, %cst_120 {dimension_numbers = #tpu.dot_dimension_numbers<[1], [0], [0], [1], [0, 0, 1, 1], [], []>} : vector<8x32xbf16>, vector<32x128xbf16>, vector<8x128xf32> -> vector<8x128xf32>
    %418 = arith.addf %417, %415 : vector<8x128xf32>
    %419 = arith.negf %418 : vector<8x128xf32>
    %420 = math.exp %419 : vector<8x128xf32>
    %cst_121 = arith.constant 1.000000e+00 : f32
    %421 = vector.broadcast %cst_121 : f32 to vector<8x128xf32>
    %422 = arith.addf %421, %420 : vector<8x128xf32>
    %423 = arith.divf %421, %422 : vector<8x128xf32>
    %424 = vector.extract_strided_slice %423 {offsets = [0, 0], sizes = [8, 32], strides = [1, 1]} : vector<8x128xf32> to vector<8x32xf32>
    %425 = vector.extract_strided_slice %423 {offsets = [0, 32], sizes = [8, 32], strides = [1, 1]} : vector<8x128xf32> to vector<8x32xf32>
    %426 = vector.extract_strided_slice %423 {offsets = [0, 64], sizes = [8, 32], strides = [1, 1]} : vector<8x128xf32> to vector<8x32xf32>
    %cst_122 = arith.constant 2.000000e+00 : f32
    %427 = vector.broadcast %cst_122 : f32 to vector<8x32xf32>
    %428 = arith.mulf %427, %426 : vector<8x32xf32>
    %cst_123 = arith.constant 1.000000e+00 : f32
    %429 = vector.broadcast %cst_123 : f32 to vector<8x32xf32>
    %430 = arith.subf %428, %429 : vector<8x32xf32>
    %431 = vector.extract_strided_slice %423 {offsets = [0, 96], sizes = [8, 32], strides = [1, 1]} : vector<8x128xf32> to vector<8x32xf32>
    %432 = arith.mulf %425, %368 : vector<8x32xf32>
    %433 = arith.mulf %424, %430 : vector<8x32xf32>
    %434 = arith.addf %432, %433 : vector<8x32xf32>
    %cst_124 = arith.constant 2.000000e+00 : f32
    %435 = vector.broadcast %cst_124 : f32 to vector<8x32xf32>
    %436 = arith.mulf %435, %434 : vector<8x32xf32>
    %437 = arith.negf %436 : vector<8x32xf32>
    %438 = math.exp %437 : vector<8x32xf32>
    %cst_125 = arith.constant 1.000000e+00 : f32
    %439 = vector.broadcast %cst_125 : f32 to vector<8x32xf32>
    %440 = arith.addf %439, %438 : vector<8x32xf32>
    %441 = arith.divf %439, %440 : vector<8x32xf32>
    %cst_126 = arith.constant 2.000000e+00 : f32
    %442 = vector.broadcast %cst_126 : f32 to vector<8x32xf32>
    %443 = arith.mulf %442, %441 : vector<8x32xf32>
    %cst_127 = arith.constant 1.000000e+00 : f32
    %444 = vector.broadcast %cst_127 : f32 to vector<8x32xf32>
    %445 = arith.subf %443, %444 : vector<8x32xf32>
    %446 = arith.mulf %431, %445 : vector<8x32xf32>
    %447 = arith.truncf %414 : vector<8x32xf32> to vector<8x32xbf16>
    %cst_128 = arith.constant dense<0.000000e+00> : vector<8x128xf32>
    %448 = tpu.matmul %447, %10, %cst_128 {dimension_numbers = #tpu.dot_dimension_numbers<[1], [0], [0], [1], [0, 0, 1, 1], [], []>} : vector<8x32xbf16>, vector<32x128xbf16>, vector<8x128xf32> -> vector<8x128xf32>
    %449 = arith.truncf %446 : vector<8x32xf32> to vector<8x32xbf16>
    %cst_129 = arith.constant dense<0.000000e+00> : vector<8x128xf32>
    %450 = tpu.matmul %449, %11, %cst_129 {dimension_numbers = #tpu.dot_dimension_numbers<[1], [0], [0], [1], [0, 0, 1, 1], [], []>} : vector<8x32xbf16>, vector<32x128xbf16>, vector<8x128xf32> -> vector<8x128xf32>
    %451 = arith.addf %448, %450 : vector<8x128xf32>
    %452 = arith.addf %451, %14 : vector<8x128xf32>
    %453 = arith.negf %452 : vector<8x128xf32>
    %454 = math.exp %453 : vector<8x128xf32>
    %cst_130 = arith.constant 1.000000e+00 : f32
    %455 = vector.broadcast %cst_130 : f32 to vector<8x128xf32>
    %456 = arith.addf %455, %454 : vector<8x128xf32>
    %457 = arith.divf %455, %456 : vector<8x128xf32>
    %458 = vector.extract_strided_slice %457 {offsets = [0, 0], sizes = [8, 32], strides = [1, 1]} : vector<8x128xf32> to vector<8x32xf32>
    %459 = vector.extract_strided_slice %457 {offsets = [0, 32], sizes = [8, 32], strides = [1, 1]} : vector<8x128xf32> to vector<8x32xf32>
    %460 = vector.extract_strided_slice %457 {offsets = [0, 64], sizes = [8, 32], strides = [1, 1]} : vector<8x128xf32> to vector<8x32xf32>
    %cst_131 = arith.constant 2.000000e+00 : f32
    %461 = vector.broadcast %cst_131 : f32 to vector<8x32xf32>
    %462 = arith.mulf %461, %460 : vector<8x32xf32>
    %cst_132 = arith.constant 1.000000e+00 : f32
    %463 = vector.broadcast %cst_132 : f32 to vector<8x32xf32>
    %464 = arith.subf %462, %463 : vector<8x32xf32>
    %465 = vector.extract_strided_slice %457 {offsets = [0, 96], sizes = [8, 32], strides = [1, 1]} : vector<8x128xf32> to vector<8x32xf32>
    %466 = arith.mulf %459, %402 : vector<8x32xf32>
    %467 = arith.mulf %458, %464 : vector<8x32xf32>
    %468 = arith.addf %466, %467 : vector<8x32xf32>
    %cst_133 = arith.constant 2.000000e+00 : f32
    %469 = vector.broadcast %cst_133 : f32 to vector<8x32xf32>
    %470 = arith.mulf %469, %468 : vector<8x32xf32>
    %471 = arith.negf %470 : vector<8x32xf32>
    %472 = math.exp %471 : vector<8x32xf32>
    %cst_134 = arith.constant 1.000000e+00 : f32
    %473 = vector.broadcast %cst_134 : f32 to vector<8x32xf32>
    %474 = arith.addf %473, %472 : vector<8x32xf32>
    %475 = arith.divf %473, %474 : vector<8x32xf32>
    %cst_135 = arith.constant 2.000000e+00 : f32
    %476 = vector.broadcast %cst_135 : f32 to vector<8x32xf32>
    %477 = arith.mulf %476, %475 : vector<8x32xf32>
    %cst_136 = arith.constant 1.000000e+00 : f32
    %478 = vector.broadcast %cst_136 : f32 to vector<8x32xf32>
    %479 = arith.subf %477, %478 : vector<8x32xf32>
    %480 = arith.mulf %465, %479 : vector<8x32xf32>
    %481 = vector.extract_strided_slice %8 {offsets = [56, 0], sizes = [8, 128], strides = [1, 1]} : vector<64x128xf32> to vector<8x128xf32>
    %482 = arith.truncf %446 : vector<8x32xf32> to vector<8x32xbf16>
    %cst_137 = arith.constant dense<0.000000e+00> : vector<8x128xf32>
    %483 = tpu.matmul %482, %9, %cst_137 {dimension_numbers = #tpu.dot_dimension_numbers<[1], [0], [0], [1], [0, 0, 1, 1], [], []>} : vector<8x32xbf16>, vector<32x128xbf16>, vector<8x128xf32> -> vector<8x128xf32>
    %484 = arith.addf %483, %481 : vector<8x128xf32>
    %485 = arith.negf %484 : vector<8x128xf32>
    %486 = math.exp %485 : vector<8x128xf32>
    %cst_138 = arith.constant 1.000000e+00 : f32
    %487 = vector.broadcast %cst_138 : f32 to vector<8x128xf32>
    %488 = arith.addf %487, %486 : vector<8x128xf32>
    %489 = arith.divf %487, %488 : vector<8x128xf32>
    %490 = vector.extract_strided_slice %489 {offsets = [0, 0], sizes = [8, 32], strides = [1, 1]} : vector<8x128xf32> to vector<8x32xf32>
    %491 = vector.extract_strided_slice %489 {offsets = [0, 32], sizes = [8, 32], strides = [1, 1]} : vector<8x128xf32> to vector<8x32xf32>
    %492 = vector.extract_strided_slice %489 {offsets = [0, 64], sizes = [8, 32], strides = [1, 1]} : vector<8x128xf32> to vector<8x32xf32>
    %cst_139 = arith.constant 2.000000e+00 : f32
    %493 = vector.broadcast %cst_139 : f32 to vector<8x32xf32>
    %494 = arith.mulf %493, %492 : vector<8x32xf32>
    %cst_140 = arith.constant 1.000000e+00 : f32
    %495 = vector.broadcast %cst_140 : f32 to vector<8x32xf32>
    %496 = arith.subf %494, %495 : vector<8x32xf32>
    %497 = vector.extract_strided_slice %489 {offsets = [0, 96], sizes = [8, 32], strides = [1, 1]} : vector<8x128xf32> to vector<8x32xf32>
    %498 = arith.mulf %491, %434 : vector<8x32xf32>
    %499 = arith.mulf %490, %496 : vector<8x32xf32>
    %500 = arith.addf %498, %499 : vector<8x32xf32>
    %cst_141 = arith.constant 2.000000e+00 : f32
    %501 = vector.broadcast %cst_141 : f32 to vector<8x32xf32>
    %502 = arith.mulf %501, %500 : vector<8x32xf32>
    %503 = arith.negf %502 : vector<8x32xf32>
    %504 = math.exp %503 : vector<8x32xf32>
    %cst_142 = arith.constant 1.000000e+00 : f32
    %505 = vector.broadcast %cst_142 : f32 to vector<8x32xf32>
    %506 = arith.addf %505, %504 : vector<8x32xf32>
    %507 = arith.divf %505, %506 : vector<8x32xf32>
    %cst_143 = arith.constant 2.000000e+00 : f32
    %508 = vector.broadcast %cst_143 : f32 to vector<8x32xf32>
    %509 = arith.mulf %508, %507 : vector<8x32xf32>
    %cst_144 = arith.constant 1.000000e+00 : f32
    %510 = vector.broadcast %cst_144 : f32 to vector<8x32xf32>
    %511 = arith.subf %509, %510 : vector<8x32xf32>
    %512 = arith.mulf %497, %511 : vector<8x32xf32>
    %513 = arith.truncf %480 : vector<8x32xf32> to vector<8x32xbf16>
    %cst_145 = arith.constant dense<0.000000e+00> : vector<8x128xf32>
    %514 = tpu.matmul %513, %10, %cst_145 {dimension_numbers = #tpu.dot_dimension_numbers<[1], [0], [0], [1], [0, 0, 1, 1], [], []>} : vector<8x32xbf16>, vector<32x128xbf16>, vector<8x128xf32> -> vector<8x128xf32>
    %515 = arith.truncf %512 : vector<8x32xf32> to vector<8x32xbf16>
    %cst_146 = arith.constant dense<0.000000e+00> : vector<8x128xf32>
    %516 = tpu.matmul %515, %11, %cst_146 {dimension_numbers = #tpu.dot_dimension_numbers<[1], [0], [0], [1], [0, 0, 1, 1], [], []>} : vector<8x32xbf16>, vector<32x128xbf16>, vector<8x128xf32> -> vector<8x128xf32>
    %517 = arith.addf %514, %516 : vector<8x128xf32>
    %518 = arith.addf %517, %14 : vector<8x128xf32>
    %519 = arith.negf %518 : vector<8x128xf32>
    %520 = math.exp %519 : vector<8x128xf32>
    %cst_147 = arith.constant 1.000000e+00 : f32
    %521 = vector.broadcast %cst_147 : f32 to vector<8x128xf32>
    %522 = arith.addf %521, %520 : vector<8x128xf32>
    %523 = arith.divf %521, %522 : vector<8x128xf32>
    %524 = vector.extract_strided_slice %523 {offsets = [0, 0], sizes = [8, 32], strides = [1, 1]} : vector<8x128xf32> to vector<8x32xf32>
    %525 = vector.extract_strided_slice %523 {offsets = [0, 32], sizes = [8, 32], strides = [1, 1]} : vector<8x128xf32> to vector<8x32xf32>
    %526 = vector.extract_strided_slice %523 {offsets = [0, 64], sizes = [8, 32], strides = [1, 1]} : vector<8x128xf32> to vector<8x32xf32>
    %cst_148 = arith.constant 2.000000e+00 : f32
    %527 = vector.broadcast %cst_148 : f32 to vector<8x32xf32>
    %528 = arith.mulf %527, %526 : vector<8x32xf32>
    %cst_149 = arith.constant 1.000000e+00 : f32
    %529 = vector.broadcast %cst_149 : f32 to vector<8x32xf32>
    %530 = arith.subf %528, %529 : vector<8x32xf32>
    %531 = vector.extract_strided_slice %523 {offsets = [0, 96], sizes = [8, 32], strides = [1, 1]} : vector<8x128xf32> to vector<8x32xf32>
    %532 = arith.mulf %525, %468 : vector<8x32xf32>
    %533 = arith.mulf %524, %530 : vector<8x32xf32>
    %534 = arith.addf %532, %533 : vector<8x32xf32>
    %cst_150 = arith.constant 2.000000e+00 : f32
    %535 = vector.broadcast %cst_150 : f32 to vector<8x32xf32>
    %536 = arith.mulf %535, %534 : vector<8x32xf32>
    %537 = arith.negf %536 : vector<8x32xf32>
    %538 = math.exp %537 : vector<8x32xf32>
    %cst_151 = arith.constant 1.000000e+00 : f32
    %539 = vector.broadcast %cst_151 : f32 to vector<8x32xf32>
    %540 = arith.addf %539, %538 : vector<8x32xf32>
    %541 = arith.divf %539, %540 : vector<8x32xf32>
    %cst_152 = arith.constant 2.000000e+00 : f32
    %542 = vector.broadcast %cst_152 : f32 to vector<8x32xf32>
    %543 = arith.mulf %542, %541 : vector<8x32xf32>
    %cst_153 = arith.constant 1.000000e+00 : f32
    %544 = vector.broadcast %cst_153 : f32 to vector<8x32xf32>
    %545 = arith.subf %543, %544 : vector<8x32xf32>
    %546 = arith.mulf %531, %545 : vector<8x32xf32>
    %cst_154 = arith.constant dense<0.000000e+00> : vector<8xf32>
    %547 = vector.multi_reduction <add>, %546, %cst_154 [1] : vector<8x32xf32> to vector<8xf32>
    %548 = vector.shape_cast %547 : vector<8xf32> to vector<8x1xf32>
    %cst_155 = arith.constant 3.200000e+01 : f32
    %549 = vector.broadcast %cst_155 : f32 to vector<8x1xf32>
    %550 = arith.divf %548, %549 : vector<8x1xf32>
    %551 = vector.broadcast %550 : vector<8x1xf32> to vector<8x32xf32>
    %552 = arith.subf %546, %551 : vector<8x32xf32>
    %553 = arith.mulf %552, %552 : vector<8x32xf32>
    %cst_156 = arith.constant dense<0.000000e+00> : vector<8xf32>
    %554 = vector.multi_reduction <add>, %553, %cst_156 [1] : vector<8x32xf32> to vector<8xf32>
    %555 = vector.shape_cast %554 : vector<8xf32> to vector<8x1xf32>
    %cst_157 = arith.constant 3.200000e+01 : f32
    %556 = vector.broadcast %cst_157 : f32 to vector<8x1xf32>
    %557 = arith.divf %555, %556 : vector<8x1xf32>
    %558 = vector.broadcast %550 : vector<8x1xf32> to vector<8x32xf32>
    %559 = arith.subf %546, %558 : vector<8x32xf32>
    %cst_158 = arith.constant 9.99999974E-6 : f32
    %560 = vector.broadcast %cst_158 : f32 to vector<8x1xf32>
    %561 = arith.addf %557, %560 : vector<8x1xf32>
    %562 = math.rsqrt %561 : vector<8x1xf32>
    %563 = vector.broadcast %562 : vector<8x1xf32> to vector<8x32xf32>
    %564 = arith.mulf %559, %563 : vector<8x32xf32>
    %c0_159 = arith.constant 0 : index
    %c0_160 = arith.constant 0 : index
    %565 = vector.load %arg8[%c0_159, %c0_160] : memref<1x32xf32, #tpu.memory_space<vmem>>, vector<1x32xf32>
    %566 = vector.broadcast %565 : vector<1x32xf32> to vector<8x32xf32>
    %567 = arith.mulf %564, %566 : vector<8x32xf32>
    %c0_161 = arith.constant 0 : index
    %c0_162 = arith.constant 0 : index
    %568 = vector.load %arg9[%c0_161, %c0_162] : memref<1x32xf32, #tpu.memory_space<vmem>>, vector<1x32xf32>
    %569 = vector.broadcast %568 : vector<1x32xf32> to vector<8x32xf32>
    %570 = arith.addf %567, %569 : vector<8x32xf32>
    %c0_163 = arith.constant 0 : index
    %c0_164 = arith.constant 0 : index
    %571 = vector.load %arg10[%c0_163, %c0_164] : memref<1x32xf32, #tpu.memory_space<vmem>>, vector<1x32xf32>
    %cst_165 = arith.constant dense<0.000000e+00> : vector<1x8xf32>
    %572 = tpu.matmul %571, %570, %cst_165 {dimension_numbers = #tpu.dot_dimension_numbers<[1], [1], [0], [0], [0, 0, 1, 0], [], []>} : vector<1x32xf32>, vector<8x32xf32>, vector<1x8xf32> -> vector<1x8xf32>
    %c0_166 = arith.constant 0 : index
    %c0_167 = arith.constant 0 : index
    %573 = vector.load %arg11[%c0_166, %c0_167] : memref<1x1xf32, #tpu.memory_space<vmem>>, vector<1x1xf32>
    %574 = vector.broadcast %573 : vector<1x1xf32> to vector<1x8xf32>
    %575 = arith.addf %572, %574 : vector<1x8xf32>
    %576 = arith.negf %575 : vector<1x8xf32>
    %577 = math.exp %576 : vector<1x8xf32>
    %cst_168 = arith.constant 1.000000e+00 : f32
    %578 = vector.broadcast %cst_168 : f32 to vector<1x8xf32>
    %579 = arith.addf %578, %577 : vector<1x8xf32>
    %580 = arith.divf %578, %579 : vector<1x8xf32>
    %581 = vector.shape_cast %580 : vector<1x8xf32> to vector<1x1x8xf32>
    %c0_169 = arith.constant 0 : index
    %c0_170 = arith.constant 0 : index
    %c0_171 = arith.constant 0 : index
    %582 = vector.load %arg12[%c0_169, %c0_170, %c0_171] : memref<1x1x8xf32, #tpu.memory_space<vmem>>, vector<1x1x8xf32>
    tpu.vector_store %arg12[%c0_169, %c0_170, %c0_171], %581 {strides = array<i32>} : memref<1x1x8xf32, #tpu.memory_space<vmem>>, vector<1x1x8xf32>,
    return
  }
  func.func @transform_0(%arg0: i32) -> (i32, i32, i32) {
    %c0_i32 = arith.constant 0 : i32
    %c0_i32_0 = arith.constant 0 : i32
    %c0_i32_1 = arith.constant 0 : i32
    return %c0_i32, %arg0, %c0_i32_0 : i32, i32, i32
  }
  func.func @transform_1(%arg0: i32) -> (i32, i32) {
    %c0_i32 = arith.constant 0 : i32
    %c0_i32_0 = arith.constant 0 : i32
    %c0_i32_1 = arith.constant 0 : i32
    return %c0_i32, %c0_i32_0 : i32, i32
  }
  func.func @transform_2(%arg0: i32) -> (i32, i32) {
    %c0_i32 = arith.constant 0 : i32
    %c0_i32_0 = arith.constant 0 : i32
    %c0_i32_1 = arith.constant 0 : i32
    return %c0_i32, %c0_i32_0 : i32, i32
  }
  func.func @transform_3(%arg0: i32) -> (i32, i32) {
    %c0_i32 = arith.constant 0 : i32
    %c0_i32_0 = arith.constant 0 : i32
    %c0_i32_1 = arith.constant 0 : i32
    return %c0_i32, %c0_i32_0 : i32, i32
  }
  func.func @transform_4(%arg0: i32) -> (i32, i32) {
    %c0_i32 = arith.constant 0 : i32
    %c0_i32_0 = arith.constant 0 : i32
    %c0_i32_1 = arith.constant 0 : i32
    return %c0_i32, %c0_i32_0 : i32, i32
  }
  func.func @transform_5(%arg0: i32) -> (i32, i32) {
    %c0_i32 = arith.constant 0 : i32
    %c0_i32_0 = arith.constant 0 : i32
    %c0_i32_1 = arith.constant 0 : i32
    return %c0_i32, %c0_i32_0 : i32, i32
  }
  func.func @transform_6(%arg0: i32) -> (i32, i32) {
    %c0_i32 = arith.constant 0 : i32
    %c0_i32_0 = arith.constant 0 : i32
    %c0_i32_1 = arith.constant 0 : i32
    return %c0_i32, %c0_i32_0 : i32, i32
  }
  func.func @transform_7(%arg0: i32) -> (i32, i32) {
    %c0_i32 = arith.constant 0 : i32
    %c0_i32_0 = arith.constant 0 : i32
    %c0_i32_1 = arith.constant 0 : i32
    return %c0_i32, %c0_i32_0 : i32, i32
  }
  func.func @transform_8(%arg0: i32) -> (i32, i32) {
    %c0_i32 = arith.constant 0 : i32
    %c0_i32_0 = arith.constant 0 : i32
    %c0_i32_1 = arith.constant 0 : i32
    return %c0_i32, %c0_i32_0 : i32, i32
  }
  func.func @transform_9(%arg0: i32) -> (i32, i32) {
    %c0_i32 = arith.constant 0 : i32
    %c0_i32_0 = arith.constant 0 : i32
    %c0_i32_1 = arith.constant 0 : i32
    return %c0_i32, %c0_i32_0 : i32, i32
  }
  func.func @transform_10(%arg0: i32) -> (i32, i32) {
    %c0_i32 = arith.constant 0 : i32
    %c0_i32_0 = arith.constant 0 : i32
    %c0_i32_1 = arith.constant 0 : i32
    return %c0_i32, %c0_i32_0 : i32, i32
  }
  func.func @transform_11(%arg0: i32) -> (i32, i32, i32) {
    %c0_i32 = arith.constant 0 : i32
    %c0_i32_0 = arith.constant 0 : i32
    %c0_i32_1 = arith.constant 0 : i32
    return %arg0, %c0_i32, %c0_i32_0 : i32, i32, i32
  }
}

</mosaic_0001>

<llo_original>
// kernel: tpu_custom_call.1
$region0: #{tpu_custom_call.1}
  #allocation0 [shape = 'u32[]', space=smem, size = 0x4, offset = 0x4, fixed_abs, tag = 'smem constant byte address 0x4 - core index']
  #allocation1 [shape = 'u32[144,128]{1,0:T(1,128)}', space=vmem, size = 0x12000, scoped, tag = 'internal scratch']
  #allocation2 [shape = 'f32[1,1]{1,0:T(1,128)S(1)}', space=vmem, size = 0x200, scoped, tag = 'scoped memory for tpu_custom_call.1']
  %s0 = inlined_call_operand.hbm [shape: bf16[8,8,16], index: 0, kind: input, shape index: {}]
  %s1 = inlined_call_operand.hbm [shape: bf16[32,128], index: 1, kind: input, shape index: {}]
  %s2 = inlined_call_operand.hbm [shape: bf16[16,128], index: 2, kind: input, shape index: {}]
  %s3 = inlined_call_operand.vmem [shape: f32[1,128], index: 3, kind: input, shape index: {}]
  %s4 = inlined_call_operand.vmem [shape: bf16[32,128], index: 4, kind: input, shape index: {}]
  %s5 = inlined_call_operand.hbm [shape: bf16[32,128], index: 5, kind: input, shape index: {}]
  %s6 = inlined_call_operand.vmem [shape: f32[1,128], index: 6, kind: input, shape index: {}]
  %s7 = inlined_call_operand.vmem [shape: f32[1,32], index: 7, kind: input, shape index: {}]
  %s8 = inlined_call_operand.vmem [shape: f32[1,32], index: 8, kind: input, shape index: {}]
  %s9 = inlined_call_operand.vmem [shape: f32[1,32], index: 9, kind: input, shape index: {}]
  %s10 = inlined_call_operand.<no memory space> [shape: f32[1,1], index: 10, kind: input, shape index: {}]
  %s11 = inlined_call_operand.hbm [shape: f32[1,1,8], index: 11, kind: output, shape index: {}]
  %s12 = sld [smem:[#allocation0]]
  $region70: #{tpu_custom_call.1} parent=0
    _
  %s14 = ssub.s32 1, %s12
  %s15 = scalar_select 0, %s14, %s12
  %v16 = vstv %s10
  %17 = vst [vmem:[#allocation2] sm:$0x1] %v16
  $region1: #{tpu_custom_call.1} parent=0
    #allocation3 [shape = 'u8[16384]{0}', space=vmem, size = 0x4000, scoped, tag = 'input window, operand 0, single buffered']
    #allocation4 [shape = 's32[1]{0}', space=sflag, size = 0x4, scoped, tag = 'scoped memory for tpu_custom_call.1']
    #allocation5 [shape = 's32[1]{0}', space=sflag, size = 0x4, scoped, tag = 'scoped memory for tpu_custom_call.1']
    #allocation6 [shape = 'u8[8192]{0}', space=vmem, size = 0x2000, scoped, tag = 'input window, operand 1, single buffered']
    #allocation7 [shape = 's32[1]{0}', space=sflag, size = 0x4, scoped, tag = 'scoped memory for tpu_custom_call.1']
    #allocation8 [shape = 'u8[4096]{0}', space=vmem, size = 0x1000, scoped, tag = 'input window, operand 2, single buffered']
    #allocation9 [shape = 'u8[8192]{0}', space=vmem, size = 0x2000, scoped, tag = 'input window, operand 5, single buffered']
    #allocation10 [shape = 's32[1]{0}', space=sflag, size = 0x4, scoped, tag = 'scoped memory for tpu_custom_call.1']
    #allocation11 [shape = 'u8[512]{0}', space=vmem, size = 0x400, scoped, tag = 'output window, operand 0, single buffered']
    %18 = vsyncpa [#allocation4], 0
    %19 = vsyncpa [#allocation7], 0
    %20 = vsyncpa [#allocation10], 0
    %21 = vsyncpa [#allocation5], 0
    // Predicated region
    $region2: #{tpu_custom_call.1} parent=1 // pred_check
      _
    $region3: #{tpu_custom_call.1} parent=1 // pred_check_branch
      %23 = sbr.rel (0) target = $region5
    $region4: #{tpu_custom_call.1} parent=1 // pred_region
      %s25 = ssub.s32 512, 512
      %26 = vsyncadd [#allocation4], %s25
      %s27 = sshll.u32 [#allocation3], 4
      %s28 = int_to_ptr.vmem [resolvable:$true] %s27
      %33 = dma.hbm_to_vmem [thread:$0]  %s0, 512, %s28, [#allocation4], 64, 64, 4
    $region5: #{tpu_custom_call.1} parent=1 // pred_fallthru
      _
    // Predicated region
    $region6: #{tpu_custom_call.1} parent=1 // pred_check
      _
    $region7: #{tpu_custom_call.1} parent=1 // pred_check_branch
      %35 = sbr.rel (0) target = $region9
    $region8: #{tpu_custom_call.1} parent=1 // pred_region
      %s37 = ssub.s32 256, 256
      %38 = vsyncadd [#allocation7], %s37
      %s39 = sshll.u32 [#allocation6], 4
      %s40 = int_to_ptr.vmem [resolvable:$true] %s39
      %45 = dma.hbm_to_vmem [thread:$0]  %s1, 256, %s40, [#allocation7], 64, 64, 4
    $region9: #{tpu_custom_call.1} parent=1 // pred_fallthru
      _
    // Predicated region
    $region10: #{tpu_custom_call.1} parent=1 // pred_check
      _
    $region11: #{tpu_custom_call.1} parent=1 // pred_check_branch
      %47 = sbr.rel (0) target = $region13
    $region12: #{tpu_custom_call.1} parent=1 // pred_region
      %s49 = ssub.s32 128, 128
      %50 = vsyncadd [#allocation7], %s49
      %s51 = sshll.u32 [#allocation8], 4
      %s52 = int_to_ptr.vmem [resolvable:$true] %s51
      %57 = dma.hbm_to_vmem [thread:$0]  %s2, 128, %s52, [#allocation7], 64, 64, 4
    $region13: #{tpu_custom_call.1} parent=1 // pred_fallthru
      _
    // Predicated region
    $region14: #{tpu_custom_call.1} parent=1 // pred_check
      _
    $region15: #{tpu_custom_call.1} parent=1 // pred_check_branch
      %59 = sbr.rel (0) target = $region17
    $region16: #{tpu_custom_call.1} parent=1 // pred_region
      _
    $region17: #{tpu_custom_call.1} parent=1 // pred_fallthru
      _
    // Predicated region
    $region18: #{tpu_custom_call.1} parent=1 // pred_check
      _
    $region19: #{tpu_custom_call.1} parent=1 // pred_check_branch
      %61 = sbr.rel (0) target = $region21
    $region20: #{tpu_custom_call.1} parent=1 // pred_region
      _
    $region21: #{tpu_custom_call.1} parent=1 // pred_fallthru
      _
    // Predicated region
    $region22: #{tpu_custom_call.1} parent=1 // pred_check
      _
    $region23: #{tpu_custom_call.1} parent=1 // pred_check_branch
      %63 = sbr.rel (0) target = $region25
    $region24: #{tpu_custom_call.1} parent=1 // pred_region
      %s65 = ssub.s32 256, 256
      %66 = vsyncadd [#allocation10], %s65
      %s67 = sshll.u32 [#allocation9], 4
      %s68 = int_to_ptr.vmem [resolvable:$true] %s67
      %73 = dma.hbm_to_vmem [thread:$0]  %s5, 256, %s68, [#allocation10], 64, 64, 4
    $region25: #{tpu_custom_call.1} parent=1 // pred_fallthru
      _
    // Predicated region
    $region26: #{tpu_custom_call.1} parent=1 // pred_check
      _
    $region27: #{tpu_custom_call.1} parent=1 // pred_check_branch
      %75 = sbr.rel (0) target = $region29
    $region28: #{tpu_custom_call.1} parent=1 // pred_region
      _
    $region29: #{tpu_custom_call.1} parent=1 // pred_fallthru
      _
    // Predicated region
    $region30: #{tpu_custom_call.1} parent=1 // pred_check
      _
    $region31: #{tpu_custom_call.1} parent=1 // pred_check_branch
      %77 = sbr.rel (0) target = $region33
    $region32: #{tpu_custom_call.1} parent=1 // pred_region
      _
    $region33: #{tpu_custom_call.1} parent=1 // pred_fallthru
      _
    // Predicated region
    $region34: #{tpu_custom_call.1} parent=1 // pred_check
      _
    $region35: #{tpu_custom_call.1} parent=1 // pred_check_branch
      %79 = sbr.rel (0) target = $region37
    $region36: #{tpu_custom_call.1} parent=1 // pred_region
      _
    $region37: #{tpu_custom_call.1} parent=1 // pred_fallthru
      _
    // Predicated region
    $region38: #{tpu_custom_call.1} parent=1 // pred_check
      _
    $region39: #{tpu_custom_call.1} parent=1 // pred_check_branch
      %81 = sbr.rel (0) target = $region41
    $region40: #{tpu_custom_call.1} parent=1 // pred_region
      _
    $region41: #{tpu_custom_call.1} parent=1 // pred_fallthru
      _
    // Predicated region
    $region42: #{tpu_custom_call.1} parent=1 // pred_check
      _
    $region43: #{tpu_custom_call.1} parent=1 // pred_check_branch
      %83 = sbr.rel (0) target = $region45
    $region44: #{tpu_custom_call.1} parent=1 // pred_region
      _
    $region45: #{tpu_custom_call.1} parent=1 // pred_fallthru
      _
    // Predicated region
    $region46: #{tpu_custom_call.1} parent=1 // pred_check
      _
    $region47: #{tpu_custom_call.1} parent=1 // pred_check_branch
      %85 = sbr.rel (0) target = $region49
    $region48: #{tpu_custom_call.1} parent=1 // pred_region
      %86 = dma.done [#allocation4], 512
    $region49: #{tpu_custom_call.1} parent=1 // pred_fallthru
      _
    // Predicated region
    $region50: #{tpu_custom_call.1} parent=1 // pred_check
      _
    $region51: #{tpu_custom_call.1} parent=1 // pred_check_branch
      %88 = sbr.rel (0) target = $region53
    $region52: #{tpu_custom_call.1} parent=1 // pred_region
      %89 = dma.done [#allocation7], 256
    $region53: #{tpu_custom_call.1} parent=1 // pred_fallthru
      _
    // Predicated region
    $region54: #{tpu_custom_call.1} parent=1 // pred_check
      _
    $region55: #{tpu_custom_call.1} parent=1 // pred_check_branch
      %91 = sbr.rel (0) target = $region57
    $region56: #{tpu_custom_call.1} parent=1 // pred_region
      %92 = dma.done [#allocation7], 128
    $region57: #{tpu_custom_call.1} parent=1 // pred_fallthru
      _
    // Predicated region
    $region58: #{tpu_custom_call.1} parent=1 // pred_check
      _
    $region59: #{tpu_custom_call.1} parent=1 // pred_check_branch
      %94 = sbr.rel (0) target = $region61
    $region60: #{tpu_custom_call.1} parent=1 // pred_region
      %95 = dma.done [#allocation10], 256
    $region61: #{tpu_custom_call.1} parent=1 // pred_fallthru
      _
    %v97 = vld [vmem:[#allocation3] sm:$0xf]
    %v98 = vld [vmem:[#allocation3 + $0x4] sm:$0xf]
    %v99 = vld [vmem:[#allocation3 + $0x8] sm:$0xf]
    %v100 = vld [vmem:[#allocation3 + $0xc] sm:$0xf]
    %v101 = vld [vmem:[#allocation3 + $0x10] sm:$0xf]
    %v102 = vld [vmem:[#allocation3 + $0x14] sm:$0xf]
    %v103 = vld [vmem:[#allocation3 + $0x18] sm:$0xf]
    %v104 = vld [vmem:[#allocation3 + $0x1c] sm:$0xf]
    %v105 = vunpack.c.l.bf16 %v97
    %v106 = vunpack.c.l.bf16 %v98
    %v107 = vunpack.c.l.bf16 %v99
    %v108 = vunpack.c.l.bf16 %v100
    %v109 = vunpack.c.l.bf16 %v101
    %v110 = vunpack.c.l.bf16 %v102
    %v111 = vunpack.c.l.bf16 %v103
    %v112 = vunpack.c.l.bf16 %v104
    %v113 = vpack.c.bf16 %v106, %v105
    %v114 = vpack.c.bf16 %v108, %v107
    %v115 = vpack.c.bf16 %v110, %v109
    %v116 = vpack.c.bf16 %v112, %v111
    %v117 = vld [vmem:[#allocation8] sm:$0xf]
    %v118 = vld [vmem:[#allocation8 + $0x4] sm:$0xf]
    %v119 = vld [vmem:[%s3] sm:$0x1]
    %v121 = vlaneseq
    %v122 = vshrl.u32 %v121, 7
    %v123 = vsub.s32 0, %v122
    %v124 = vrot.slane %v119, %v123
    %v128 = vunpack.c.l.b16 %v117
    %v129 = vunpack.c.l.b16 %v118
    %v130 = vpack.c.b16 %v129, %v128
    %vm132 = vcmask 130048
    %v134 = vsel %vm132, %v113, 0
    %v137 = vsel %vm132, %v114, 0
    %v140 = vsel %vm132, %v115, 0
    %v143 = vsel %vm132, %v116, 0
    %145 = vmatprep.subr.bf16.mxu0 0
    %146 = vmatpush1.bf16.msra.mxu0 %v130
    %147 = vmatprep.subr.bf16.mxu0 0
    %148 = vmatpush1.bf16.msra.mxu0 0
    %149 = vmatprep.subr.bf16.mxu0 0
    %150 = vmatpush1.bf16.msra.mxu0 0
    %151 = vmatprep.subr.bf16.mxu0 0
    %152 = vmatpush1.bf16.msra.mxu0 0
    %153 = vmatprep.subr.bf16.mxu0 0
    %154 = vmatpush1.bf16.msra.mxu0 0
    %155 = vmatprep.subr.bf16.mxu0 0
    %156 = vmatpush1.bf16.msra.mxu0 0
    %157 = vmatprep.subr.bf16.mxu0 0
    %158 = vmatpush1.bf16.msra.mxu0 0
    %159 = vmatprep.subr.bf16.mxu0 0
    %160 = vmatpush1.bf16.msra.mxu0 0
    %161 = vmatprep.subr.bf16.mxu0 0
    %162 = vmatpush1.bf16.msra.mxu0 0
    %163 = vmatprep.subr.bf16.mxu0 0
    %164 = vmatpush1.bf16.msra.mxu0 0
    %165 = vmatprep.subr.bf16.mxu0 0
    %166 = vmatpush1.bf16.msra.mxu0 0
    %167 = vmatprep.subr.bf16.mxu0 0
    %168 = vmatpush1.bf16.msra.mxu0 0
    %169 = vmatprep.subr.bf16.mxu0 0
    %170 = vmatpush1.bf16.msra.mxu0 0
    %171 = vmatprep.subr.bf16.mxu0 0
    %172 = vmatpush1.bf16.msra.mxu0 0
    %173 = vmatprep.subr.bf16.mxu0 0
    %174 = vmatpush1.bf16.msra.mxu0 0
    %175 = vmatprep.subr.bf16.mxu0 0
    %176 = vmatpush1.bf16.msra.mxu0 0
    %177 = vmatprep.mubr.bf16.mxu0 0
    %178 = vmatmul.mubr.bf16.gmra.mrb[0].mxu0 %v134
    %v179 = vpop.f32.mrb[0].mxu0
    %v180 = vadd.f32 %v124, %v179
    %v181 = vpop.f32.mrb[0].mxu0
    %v182 = vpop.f32.mrb[0].mxu0
    %v183 = vadd.f32 %v124, %v182
    %v184 = vpop.f32.mrb[0].mxu0
    %185 = vmatprep.mubr.bf16.mxu0 0
    %186 = vmatmul.mubr.bf16.gmra.mrb[0].mxu0 %v137
    %v187 = vpop.f32.mrb[0].mxu0
    %v188 = vadd.f32 %v124, %v187
    %v189 = vpop.f32.mrb[0].mxu0
    %v190 = vpop.f32.mrb[0].mxu0
    %v191 = vadd.f32 %v124, %v190
    %v192 = vpop.f32.mrb[0].mxu0
    %193 = vmatprep.mubr.bf16.mxu0 0
    %194 = vmatmul.mubr.bf16.gmra.mrb[0].mxu0 %v140
    %v195 = vpop.f32.mrb[0].mxu0
    %v196 = vadd.f32 %v124, %v195
    %v197 = vpop.f32.mrb[0].mxu0
    %v198 = vpop.f32.mrb[0].mxu0
    %v199 = vadd.f32 %v124, %v198
    %v200 = vpop.f32.mrb[0].mxu0
    %201 = vmatprep.mubr.bf16.mxu0 0
    %202 = vmatmul.mubr.bf16.gmra.mrb[0].mxu0 %v143
    %v203 = vpop.f32.mrb[0].mxu0
    %v204 = vadd.f32 %v124, %v203
    %v205 = vpop.f32.mrb[0].mxu0
    %v206 = vpop.f32.mrb[0].mxu0
    %v207 = vadd.f32 %v124, %v206
    %v208 = vpop.f32.mrb[0].mxu0
    %209 = vdwg.mxu0
    %v210 = vld [vmem:[#allocation6] sm:$0xf]
    %v211 = vld [vmem:[#allocation6 + $0x4] sm:$0xf]
    %v212 = vld [vmem:[#allocation6 + $0x8] sm:$0xf]
    %v213 = vld [vmem:[#allocation6 + $0xc] sm:$0xf]
    %v214 = vld [vmem:[%s4] sm:$0xf]
    %v215 = vld [vmem:[%s4 + $0x4] sm:$0xf]
    %v216 = vld [vmem:[%s4 + $0x8] sm:$0xf]
    %v217 = vld [vmem:[%s4 + $0xc] sm:$0xf]
    %v218 = vld [vmem:[#allocation9] sm:$0xf]
    %v219 = vld [vmem:[#allocation9 + $0x4] sm:$0xf]
    %v220 = vld [vmem:[#allocation9 + $0x8] sm:$0xf]
    %v221 = vld [vmem:[#allocation9 + $0xc] sm:$0xf]
    %v222 = vld [vmem:[%s6] sm:$0x1]
    %v224 = vlaneseq
    %v225 = vshrl.u32 %v224, 7
    %v226 = vsub.s32 0, %v225
    %v227 = vrot.slane %v222, %v226
    %v233 = vunpack.c.l.b16 %v210
    %v234 = vunpack.c.l.b16 %v211
    %v235 = vunpack.c.l.b16 %v212
    %v236 = vunpack.c.l.b16 %v213
    %v237 = vpack.c.b16 %v234, %v233
    %v238 = vpack.c.b16 %v236, %v235
    %vm241 = vcmask 261120
    %v243 = vsel %vm241, 0, 0
    %245 = vmatprep.subr.bf16.mxu0 0
    %246 = vmatpush1.bf16.msra.mxu0 %v237
    %247 = vmatprep.subr.bf16.mxu0 0
    %248 = vmatpush1.bf16.msra.mxu0 %v238
    %249 = vmatprep.subr.bf16.mxu0 0
    %250 = vmatpush1.bf16.msra.mxu0 0
    %251 = vmatprep.subr.bf16.mxu0 0
    %252 = vmatpush1.bf16.msra.mxu0 0
    %253 = vmatprep.subr.bf16.mxu0 0
    %254 = vmatpush1.bf16.msra.mxu0 0
    %255 = vmatprep.subr.bf16.mxu0 0
    %256 = vmatpush1.bf16.msra.mxu0 0
    %257 = vmatprep.subr.bf16.mxu0 0
    %258 = vmatpush1.bf16.msra.mxu0 0
    %259 = vmatprep.subr.bf16.mxu0 0
    %260 = vmatpush1.bf16.msra.mxu0 0
    %261 = vmatprep.subr.bf16.mxu0 0
    %262 = vmatpush1.bf16.msra.mxu0 0
    %263 = vmatprep.subr.bf16.mxu0 0
    %264 = vmatpush1.bf16.msra.mxu0 0
    %265 = vmatprep.subr.bf16.mxu0 0
    %266 = vmatpush1.bf16.msra.mxu0 0
    %267 = vmatprep.subr.bf16.mxu0 0
    %268 = vmatpush1.bf16.msra.mxu0 0
    %269 = vmatprep.subr.bf16.mxu0 0
    %270 = vmatpush1.bf16.msra.mxu0 0
    %271 = vmatprep.subr.bf16.mxu0 0
    %272 = vmatpush1.bf16.msra.mxu0 0
    %273 = vmatprep.subr.bf16.mxu0 0
    %274 = vmatpush1.bf16.msra.mxu0 0
    %275 = vmatprep.subr.bf16.mxu0 0
    %276 = vmatpush1.bf16.msra.mxu0 0
    %277 = vmatprep.mubr.bf16.mxu0 0
    %278 = vmatmul.mubr.bf16.gmra.mrb[0].mxu0 %v243
    %v279 = vpop.f32.mrb[0].mxu0
    %v280 = vadd.f32 %v180, %v279
    %v281 = vpop.f32.mrb[0].mxu0
    %v282 = vpop.f32.mrb[0].mxu0
    %v283 = vpop.f32.mrb[0].mxu0
    %284 = vdwg.mxu0
    %v285 = vxor.u32 %v280, 2147483648
    %v286 = vmul.f32 %v285, 1.442695
    %v287 = vpow.pop %v286
    %v288 = vadd.f32 %v287, 1.0
    %v289 = vrcp.pop %v288
    %v290 = vmul.f32 1.0, %v289
    %v291 = vmul.f32 %v290, 2.0
    %v292 = vsub.f32 %v291, 1.0
    %v293 = vmul.f32 %v290, 0.0
    %295 = vrot.lane.b32.xlu0 %v292, 64
    %v296 = vpop.permute.xlu0 %295
    %v298 = vmul.f32 %v290, %v296
    %300 = vrot.lane.b32.xlu0 %v298, 32
    %v301 = vpop.permute.xlu0 %300
    %v303 = vadd.f32 %v293, %v301
    %v304 = vmul.f32 %v303, 2.0
    %v305 = vxor.u32 %v304, 2147483648
    %v306 = vmul.f32 %v305, 1.442695
    %v307 = vpow.pop %v306
    %v308 = vadd.f32 %v307, 1.0
    %v309 = vrcp.pop %v308
    %v310 = vmul.f32 1.0, %v309
    %v311 = vmul.f32 %v310, 2.0
    %v312 = vsub.f32 %v311, 1.0
    %314 = vrot.lane.b32.xlu0 %v312, 64
    %v315 = vpop.permute.xlu0 %314
    %v317 = vmul.f32 %v290, %v315
    %v318 = vpack.c.bf16 %v317, %v317
    %320 = vrot.lane.b32.xlu0 %v318, 32
    %v321 = vpop.permute.xlu0 %320
    %v326 = vunpack.c.l.b16 %v218
    %v327 = vunpack.c.l.b16 %v219
    %v328 = vunpack.c.l.b16 %v220
    %v329 = vunpack.c.l.b16 %v221
    %v330 = vpack.c.b16 %v327, %v326
    %v331 = vpack.c.b16 %v329, %v328
    %v335 = vsel %vm241, %v321, 0
    %337 = vmatprep.subr.bf16.mxu0 0
    %338 = vmatpush1.bf16.msra.mxu0 %v330
    %339 = vmatprep.subr.bf16.mxu0 0
    %340 = vmatpush1.bf16.msra.mxu0 %v331
    %341 = vmatprep.subr.bf16.mxu0 0
    %342 = vmatpush1.bf16.msra.mxu0 0
    %343 = vmatprep.subr.bf16.mxu0 0
    %344 = vmatpush1.bf16.msra.mxu0 0
    %345 = vmatprep.subr.bf16.mxu0 0
    %346 = vmatpush1.bf16.msra.mxu0 0
    %347 = vmatprep.subr.bf16.mxu0 0
    %348 = vmatpush1.bf16.msra.mxu0 0
    %349 = vmatprep.subr.bf16.mxu0 0
    %350 = vmatpush1.bf16.msra.mxu0 0
    %351 = vmatprep.subr.bf16.mxu0 0
    %352 = vmatpush1.bf16.msra.mxu0 0
    %353 = vmatprep.subr.bf16.mxu0 0
    %354 = vmatpush1.bf16.msra.mxu0 0
    %355 = vmatprep.subr.bf16.mxu0 0
    %356 = vmatpush1.bf16.msra.mxu0 0
    %357 = vmatprep.subr.bf16.mxu0 0
    %358 = vmatpush1.bf16.msra.mxu0 0
    %359 = vmatprep.subr.bf16.mxu0 0
    %360 = vmatpush1.bf16.msra.mxu0 0
    %361 = vmatprep.subr.bf16.mxu0 0
    %362 = vmatpush1.bf16.msra.mxu0 0
    %363 = vmatprep.subr.bf16.mxu0 0
    %364 = vmatpush1.bf16.msra.mxu0 0
    %365 = vmatprep.subr.bf16.mxu0 0
    %366 = vmatpush1.bf16.msra.mxu0 0
    %367 = vmatprep.subr.bf16.mxu0 0
    %368 = vmatpush1.bf16.msra.mxu0 0
    %369 = vmatprep.mubr.bf16.mxu0 0
    %370 = vmatmul.mubr.bf16.gmra.mrb[0].mxu0 %v335
    %v371 = vpop.f32.mrb[0].mxu0
    %v372 = vadd.f32 0.0, %v371
    %v373 = vpop.f32.mrb[0].mxu0
    %v374 = vpop.f32.mrb[0].mxu0
    %v375 = vpop.f32.mrb[0].mxu0
    %376 = vdwg.mxu0
    %v381 = vunpack.c.l.b16 %v214
    %v382 = vunpack.c.l.b16 %v215
    %v383 = vunpack.c.l.b16 %v216
    %v384 = vunpack.c.l.b16 %v217
    %v385 = vpack.c.b16 %v382, %v381
    %v386 = vpack.c.b16 %v384, %v383
    %389 = vmatprep.subr.bf16.mxu0 0
    %390 = vmatpush1.bf16.msra.mxu0 %v385
    %391 = vmatprep.subr.bf16.mxu0 0
    %392 = vmatpush1.bf16.msra.mxu0 %v386
    %393 = vmatprep.subr.bf16.mxu0 0
    %394 = vmatpush1.bf16.msra.mxu0 0
    %395 = vmatprep.subr.bf16.mxu0 0
    %396 = vmatpush1.bf16.msra.mxu0 0
    %397 = vmatprep.subr.bf16.mxu0 0
    %398 = vmatpush1.bf16.msra.mxu0 0
    %399 = vmatprep.subr.bf16.mxu0 0
    %400 = vmatpush1.bf16.msra.mxu0 0
    %401 = vmatprep.subr.bf16.mxu0 0
    %402 = vmatpush1.bf16.msra.mxu0 0
    %403 = vmatprep.subr.bf16.mxu0 0
    %404 = vmatpush1.bf16.msra.mxu0 0
    %405 = vmatprep.subr.bf16.mxu0 0
    %406 = vmatpush1.bf16.msra.mxu0 0
    %407 = vmatprep.subr.bf16.mxu0 0
    %408 = vmatpush1.bf16.msra.mxu0 0
    %409 = vmatprep.subr.bf16.mxu0 0
    %410 = vmatpush1.bf16.msra.mxu0 0
    %411 = vmatprep.subr.bf16.mxu0 0
    %412 = vmatpush1.bf16.msra.mxu0 0
    %413 = vmatprep.subr.bf16.mxu0 0
    %414 = vmatpush1.bf16.msra.mxu0 0
    %415 = vmatprep.subr.bf16.mxu0 0
    %416 = vmatpush1.bf16.msra.mxu0 0
    %417 = vmatprep.subr.bf16.mxu0 0
    %418 = vmatpush1.bf16.msra.mxu0 0
    %419 = vmatprep.subr.bf16.mxu0 0
    %420 = vmatpush1.bf16.msra.mxu0 0
    %421 = vmatprep.mubr.bf16.mxu0 0
    %422 = vmatmul.mubr.bf16.gmra.mrb[0].mxu0 %v243
    %v423 = vpop.f32.mrb[0].mxu0
    %v424 = vadd.f32 %v372, %v423
    %v425 = vpop.f32.mrb[0].mxu0
    %v426 = vpop.f32.mrb[0].mxu0
    %v427 = vpop.f32.mrb[0].mxu0
    %428 = vdwg.mxu0
    %v429 = vadd.f32 %v424, %v227
    %v430 = vxor.u32 %v429, 2147483648
    %v431 = vmul.f32 %v430, 1.442695
    %v432 = vpow.pop %v431
    %v433 = vadd.f32 %v432, 1.0
    %v434 = vrcp.pop %v433
    %v435 = vmul.f32 1.0, %v434
    %v436 = vmul.f32 %v435, 2.0
    %v437 = vsub.f32 %v436, 1.0
    %v438 = vmul.f32 %v435, 0.0
    %440 = vrot.lane.b32.xlu0 %v437, 64
    %v441 = vpop.permute.xlu0 %440
    %v443 = vmul.f32 %v435, %v441
    %445 = vrot.lane.b32.xlu0 %v443, 32
    %v446 = vpop.permute.xlu0 %445
    %v448 = vadd.f32 %v438, %v446
    %v449 = vmul.f32 %v448, 2.0
    %v450 = vxor.u32 %v449, 2147483648
    %v451 = vmul.f32 %v450, 1.442695
    %v452 = vpow.pop %v451
    %v453 = vadd.f32 %v452, 1.0
    %v454 = vrcp.pop %v453
    %v455 = vmul.f32 1.0, %v454
    %v456 = vmul.f32 %v455, 2.0
    %v457 = vsub.f32 %v456, 1.0
    %459 = vrot.lane.b32.xlu0 %v457, 64
    %v460 = vpop.permute.xlu0 %459
    %v462 = vmul.f32 %v435, %v460
    %463 = vmatprep.subr.bf16.mxu0 0
    %464 = vmatpush1.bf16.msra.mxu0 %v237
    %465 = vmatprep.subr.bf16.mxu0 0
    %466 = vmatpush1.bf16.msra.mxu0 %v238
    %467 = vmatprep.subr.bf16.mxu0 0
    %468 = vmatpush1.bf16.msra.mxu0 0
    %469 = vmatprep.subr.bf16.mxu0 0
    %470 = vmatpush1.bf16.msra.mxu0 0
    %471 = vmatprep.subr.bf16.mxu0 0
    %472 = vmatpush1.bf16.msra.mxu0 0
    %473 = vmatprep.subr.bf16.mxu0 0
    %474 = vmatpush1.bf16.msra.mxu0 0
    %475 = vmatprep.subr.bf16.mxu0 0
    %476 = vmatpush1.bf16.msra.mxu0 0
    %477 = vmatprep.subr.bf16.mxu0 0
    %478 = vmatpush1.bf16.msra.mxu0 0
    %479 = vmatprep.subr.bf16.mxu0 0
    %480 = vmatpush1.bf16.msra.mxu0 0
    %481 = vmatprep.subr.bf16.mxu0 0
    %482 = vmatpush1.bf16.msra.mxu0 0
    %483 = vmatprep.subr.bf16.mxu0 0
    %484 = vmatpush1.bf16.msra.mxu0 0
    %485 = vmatprep.subr.bf16.mxu0 0
    %486 = vmatpush1.bf16.msra.mxu0 0
    %487 = vmatprep.subr.bf16.mxu0 0
    %488 = vmatpush1.bf16.msra.mxu0 0
    %489 = vmatprep.subr.bf16.mxu0 0
    %490 = vmatpush1.bf16.msra.mxu0 0
    %491 = vmatprep.subr.bf16.mxu0 0
    %492 = vmatpush1.bf16.msra.mxu0 0
    %493 = vmatprep.subr.bf16.mxu0 0
    %494 = vmatpush1.bf16.msra.mxu0 0
    %495 = vmatprep.mubr.bf16.mxu0 0
    %496 = vmatmul.mubr.bf16.gmra.mrb[0].mxu0 %v335
    %v497 = vpop.f32.mrb[0].mxu0
    %v498 = vadd.f32 %v183, %v497
    %v499 = vpop.f32.mrb[0].mxu0
    %v500 = vpop.f32.mrb[0].mxu0
    %v501 = vpop.f32.mrb[0].mxu0
    %502 = vdwg.mxu0
    %v503 = vxor.u32 %v498, 2147483648
    %v504 = vmul.f32 %v503, 1.442695
    %v505 = vpow.pop %v504
    %v506 = vadd.f32 %v505, 1.0
    %v507 = vrcp.pop %v506
    %v508 = vmul.f32 1.0, %v507
    %v509 = vmul.f32 %v508, 2.0
    %v510 = vsub.f32 %v509, 1.0
    %v511 = vmul.f32 %v508, %v303
    %513 = vrot.lane.b32.xlu0 %v510, 64
    %v514 = vpop.permute.xlu0 %513
    %v516 = vmul.f32 %v508, %v514
    %518 = vrot.lane.b32.xlu0 %v516, 32
    %v519 = vpop.permute.xlu0 %518
    %v521 = vadd.f32 %v511, %v519
    %v522 = vmul.f32 %v521, 2.0
    %v523 = vxor.u32 %v522, 2147483648
    %v524 = vmul.f32 %v523, 1.442695
    %v525 = vpow.pop %v524
    %v526 = vadd.f32 %v525, 1.0
    %v527 = vrcp.pop %v526
    %v528 = vmul.f32 1.0, %v527
    %v529 = vmul.f32 %v528, 2.0
    %v530 = vsub.f32 %v529, 1.0
    %532 = vrot.lane.b32.xlu0 %v530, 64
    %v533 = vpop.permute.xlu0 %532
    %v535 = vmul.f32 %v508, %v533
    %v536 = vpack.c.bf16 %v462, %v462
    %v537 = vpack.c.bf16 %v535, %v535
    %539 = vrot.lane.b32.xlu0 %v537, 32
    %v540 = vpop.permute.xlu0 %539
    %v542 = vsel %vm241, %v540, 0
    %544 = vmatprep.subr.bf16.mxu0 0
    %545 = vmatpush1.bf16.msra.mxu0 %v330
    %546 = vmatprep.subr.bf16.mxu0 0
    %547 = vmatpush1.bf16.msra.mxu0 %v331
    %548 = vmatprep.subr.bf16.mxu0 0
    %549 = vmatpush1.bf16.msra.mxu0 0
    %550 = vmatprep.subr.bf16.mxu0 0
    %551 = vmatpush1.bf16.msra.mxu0 0
    %552 = vmatprep.subr.bf16.mxu0 0
    %553 = vmatpush1.bf16.msra.mxu0 0
    %554 = vmatprep.subr.bf16.mxu0 0
    %555 = vmatpush1.bf16.msra.mxu0 0
    %556 = vmatprep.subr.bf16.mxu0 0
    %557 = vmatpush1.bf16.msra.mxu0 0
    %558 = vmatprep.subr.bf16.mxu0 0
    %559 = vmatpush1.bf16.msra.mxu0 0
    %560 = vmatprep.subr.bf16.mxu0 0
    %561 = vmatpush1.bf16.msra.mxu0 0
    %562 = vmatprep.subr.bf16.mxu0 0
    %563 = vmatpush1.bf16.msra.mxu0 0
    %564 = vmatprep.subr.bf16.mxu0 0
    %565 = vmatpush1.bf16.msra.mxu0 0
    %566 = vmatprep.subr.bf16.mxu0 0
    %567 = vmatpush1.bf16.msra.mxu0 0
    %568 = vmatprep.subr.bf16.mxu0 0
    %569 = vmatpush1.bf16.msra.mxu0 0
    %570 = vmatprep.subr.bf16.mxu0 0
    %571 = vmatpush1.bf16.msra.mxu0 0
    %572 = vmatprep.subr.bf16.mxu0 0
    %573 = vmatpush1.bf16.msra.mxu0 0
    %574 = vmatprep.subr.bf16.mxu0 0
    %575 = vmatpush1.bf16.msra.mxu0 0
    %576 = vmatprep.mubr.bf16.mxu0 0
    %577 = vmatmul.mubr.bf16.gmra.mrb[0].mxu0 %v542
    %v578 = vpop.f32.mrb[0].mxu0
    %v579 = vadd.f32 0.0, %v578
    %v580 = vpop.f32.mrb[0].mxu0
    %v581 = vpop.f32.mrb[0].mxu0
    %v582 = vpop.f32.mrb[0].mxu0
    %583 = vdwg.mxu0
    %585 = vrot.lane.b32.xlu0 %v536, 32
    %v586 = vpop.permute.xlu0 %585
    %v588 = vsel %vm241, %v586, 0
    %590 = vmatprep.subr.bf16.mxu0 0
    %591 = vmatpush1.bf16.msra.mxu0 %v385
    %592 = vmatprep.subr.bf16.mxu0 0
    %593 = vmatpush1.bf16.msra.mxu0 %v386
    %594 = vmatprep.subr.bf16.mxu0 0
    %595 = vmatpush1.bf16.msra.mxu0 0
    %596 = vmatprep.subr.bf16.mxu0 0
    %597 = vmatpush1.bf16.msra.mxu0 0
    %598 = vmatprep.subr.bf16.mxu0 0
    %599 = vmatpush1.bf16.msra.mxu0 0
    %600 = vmatprep.subr.bf16.mxu0 0
    %601 = vmatpush1.bf16.msra.mxu0 0
    %602 = vmatprep.subr.bf16.mxu0 0
    %603 = vmatpush1.bf16.msra.mxu0 0
    %604 = vmatprep.subr.bf16.mxu0 0
    %605 = vmatpush1.bf16.msra.mxu0 0
    %606 = vmatprep.subr.bf16.mxu0 0
    %607 = vmatpush1.bf16.msra.mxu0 0
    %608 = vmatprep.subr.bf16.mxu0 0
    %609 = vmatpush1.bf16.msra.mxu0 0
    %610 = vmatprep.subr.bf16.mxu0 0
    %611 = vmatpush1.bf16.msra.mxu0 0
    %612 = vmatprep.subr.bf16.mxu0 0
    %613 = vmatpush1.bf16.msra.mxu0 0
    %614 = vmatprep.subr.bf16.mxu0 0
    %615 = vmatpush1.bf16.msra.mxu0 0
    %616 = vmatprep.subr.bf16.mxu0 0
    %617 = vmatpush1.bf16.msra.mxu0 0
    %618 = vmatprep.subr.bf16.mxu0 0
    %619 = vmatpush1.bf16.msra.mxu0 0
    %620 = vmatprep.subr.bf16.mxu0 0
    %621 = vmatpush1.bf16.msra.mxu0 0
    %622 = vmatprep.mubr.bf16.mxu0 0
    %623 = vmatmul.mubr.bf16.gmra.mrb[0].mxu0 %v588
    %v624 = vpop.f32.mrb[0].mxu0
    %v625 = vadd.f32 %v579, %v624
    %v626 = vpop.f32.mrb[0].mxu0
    %v627 = vpop.f32.mrb[0].mxu0
    %v628 = vpop.f32.mrb[0].mxu0
    %629 = vdwg.mxu0
    %v630 = vadd.f32 %v625, %v227
    %v631 = vxor.u32 %v630, 2147483648
    %v632 = vmul.f32 %v631, 1.442695
    %v633 = vpow.pop %v632
    %v634 = vadd.f32 %v633, 1.0
    %v635 = vrcp.pop %v634
    %v636 = vmul.f32 1.0, %v635
    %v637 = vmul.f32 %v636, 2.0
    %v638 = vsub.f32 %v637, 1.0
    %v639 = vmul.f32 %v636, %v448
    %641 = vrot.lane.b32.xlu0 %v638, 64
    %v642 = vpop.permute.xlu0 %641
    %v644 = vmul.f32 %v636, %v642
    %646 = vrot.lane.b32.xlu0 %v644, 32
    %v647 = vpop.permute.xlu0 %646
    %v649 = vadd.f32 %v639, %v647
    %v650 = vmul.f32 %v649, 2.0
    %v651 = vxor.u32 %v650, 2147483648
    %v652 = vmul.f32 %v651, 1.442695
    %v653 = vpow.pop %v652
    %v654 = vadd.f32 %v653, 1.0
    %v655 = vrcp.pop %v654
    %v656 = vmul.f32 1.0, %v655
    %v657 = vmul.f32 %v656, 2.0
    %v658 = vsub.f32 %v657, 1.0
    %660 = vrot.lane.b32.xlu0 %v658, 64
    %v661 = vpop.permute.xlu0 %660
    %v663 = vmul.f32 %v636, %v661
    %664 = vmatprep.subr.bf16.mxu0 0
    %665 = vmatpush1.bf16.msra.mxu0 %v237
    %666 = vmatprep.subr.bf16.mxu0 0
    %667 = vmatpush1.bf16.msra.mxu0 %v238
    %668 = vmatprep.subr.bf16.mxu0 0
    %669 = vmatpush1.bf16.msra.mxu0 0
    %670 = vmatprep.subr.bf16.mxu0 0
    %671 = vmatpush1.bf16.msra.mxu0 0
    %672 = vmatprep.subr.bf16.mxu0 0
    %673 = vmatpush1.bf16.msra.mxu0 0
    %674 = vmatprep.subr.bf16.mxu0 0
    %675 = vmatpush1.bf16.msra.mxu0 0
    %676 = vmatprep.subr.bf16.mxu0 0
    %677 = vmatpush1.bf16.msra.mxu0 0
    %678 = vmatprep.subr.bf16.mxu0 0
    %679 = vmatpush1.bf16.msra.mxu0 0
    %680 = vmatprep.subr.bf16.mxu0 0
    %681 = vmatpush1.bf16.msra.mxu0 0
    %682 = vmatprep.subr.bf16.mxu0 0
    %683 = vmatpush1.bf16.msra.mxu0 0
    %684 = vmatprep.subr.bf16.mxu0 0
    %685 = vmatpush1.bf16.msra.mxu0 0
    %686 = vmatprep.subr.bf16.mxu0 0
    %687 = vmatpush1.bf16.msra.mxu0 0
    %688 = vmatprep.subr.bf16.mxu0 0
    %689 = vmatpush1.bf16.msra.mxu0 0
    %690 = vmatprep.subr.bf16.mxu0 0
    %691 = vmatpush1.bf16.msra.mxu0 0
    %692 = vmatprep.subr.bf16.mxu0 0
    %693 = vmatpush1.bf16.msra.mxu0 0
    %694 = vmatprep.subr.bf16.mxu0 0
    %695 = vmatpush1.bf16.msra.mxu0 0
    %696 = vmatprep.mubr.bf16.mxu0 0
    %697 = vmatmul.mubr.bf16.gmra.mrb[0].mxu0 %v542
    %v698 = vpop.f32.mrb[0].mxu0
    %v699 = vadd.f32 %v188, %v698
    %v700 = vpop.f32.mrb[0].mxu0
    %v701 = vpop.f32.mrb[0].mxu0
    %v702 = vpop.f32.mrb[0].mxu0
    %703 = vdwg.mxu0
    %v704 = vxor.u32 %v699, 2147483648
    %v705 = vmul.f32 %v704, 1.442695
    %v706 = vpow.pop %v705
    %v707 = vadd.f32 %v706, 1.0
    %v708 = vrcp.pop %v707
    %v709 = vmul.f32 1.0, %v708
    %v710 = vmul.f32 %v709, 2.0
    %v711 = vsub.f32 %v710, 1.0
    %v712 = vmul.f32 %v709, %v521
    %714 = vrot.lane.b32.xlu0 %v711, 64
    %v715 = vpop.permute.xlu0 %714
    %v717 = vmul.f32 %v709, %v715
    %719 = vrot.lane.b32.xlu0 %v717, 32
    %v720 = vpop.permute.xlu0 %719
    %v722 = vadd.f32 %v712, %v720
    %v723 = vmul.f32 %v722, 2.0
    %v724 = vxor.u32 %v723, 2147483648
    %v725 = vmul.f32 %v724, 1.442695
    %v726 = vpow.pop %v725
    %v727 = vadd.f32 %v726, 1.0
    %v728 = vrcp.pop %v727
    %v729 = vmul.f32 1.0, %v728
    %v730 = vmul.f32 %v729, 2.0
    %v731 = vsub.f32 %v730, 1.0
    %733 = vrot.lane.b32.xlu0 %v731, 64
    %v734 = vpop.permute.xlu0 %733
    %v736 = vmul.f32 %v709, %v734
    %v737 = vpack.c.bf16 %v663, %v663
    %v738 = vpack.c.bf16 %v736, %v736
    %740 = vrot.lane.b32.xlu0 %v738, 32
    %v741 = vpop.permute.xlu0 %740
    %v743 = vsel %vm241, %v741, 0
    %745 = vmatprep.subr.bf16.mxu0 0
    %746 = vmatpush1.bf16.msra.mxu0 %v330
    %747 = vmatprep.subr.bf16.mxu0 0
    %748 = vmatpush1.bf16.msra.mxu0 %v331
    %749 = vmatprep.subr.bf16.mxu0 0
    %750 = vmatpush1.bf16.msra.mxu0 0
    %751 = vmatprep.subr.bf16.mxu0 0
    %752 = vmatpush1.bf16.msra.mxu0 0
    %753 = vmatprep.subr.bf16.mxu0 0
    %754 = vmatpush1.bf16.msra.mxu0 0
    %755 = vmatprep.subr.bf16.mxu0 0
    %756 = vmatpush1.bf16.msra.mxu0 0
    %757 = vmatprep.subr.bf16.mxu0 0
    %758 = vmatpush1.bf16.msra.mxu0 0
    %759 = vmatprep.subr.bf16.mxu0 0
    %760 = vmatpush1.bf16.msra.mxu0 0
    %761 = vmatprep.subr.bf16.mxu0 0
    %762 = vmatpush1.bf16.msra.mxu0 0
    %763 = vmatprep.subr.bf16.mxu0 0
    %764 = vmatpush1.bf16.msra.mxu0 0
    %765 = vmatprep.subr.bf16.mxu0 0
    %766 = vmatpush1.bf16.msra.mxu0 0
    %767 = vmatprep.subr.bf16.mxu0 0
    %768 = vmatpush1.bf16.msra.mxu0 0
    %769 = vmatprep.subr.bf16.mxu0 0
    %770 = vmatpush1.bf16.msra.mxu0 0
    %771 = vmatprep.subr.bf16.mxu0 0
    %772 = vmatpush1.bf16.msra.mxu0 0
    %773 = vmatprep.subr.bf16.mxu0 0
    %774 = vmatpush1.bf16.msra.mxu0 0
    %775 = vmatprep.subr.bf16.mxu0 0
    %776 = vmatpush1.bf16.msra.mxu0 0
    %777 = vmatprep.mubr.bf16.mxu0 0
    %778 = vmatmul.mubr.bf16.gmra.mrb[0].mxu0 %v743
    %v779 = vpop.f32.mrb[0].mxu0
    %v780 = vadd.f32 0.0, %v779
    %v781 = vpop.f32.mrb[0].mxu0
    %v782 = vpop.f32.mrb[0].mxu0
    %v783 = vpop.f32.mrb[0].mxu0
    %784 = vdwg.mxu0
    %786 = vrot.lane.b32.xlu0 %v737, 32
    %v787 = vpop.permute.xlu0 %786
    %v789 = vsel %vm241, %v787, 0
    %791 = vmatprep.subr.bf16.mxu0 0
    %792 = vmatpush1.bf16.msra.mxu0 %v385
    %793 = vmatprep.subr.bf16.mxu0 0
    %794 = vmatpush1.bf16.msra.mxu0 %v386
    %795 = vmatprep.subr.bf16.mxu0 0
    %796 = vmatpush1.bf16.msra.mxu0 0
    %797 = vmatprep.subr.bf16.mxu0 0
    %798 = vmatpush1.bf16.msra.mxu0 0
    %799 = vmatprep.subr.bf16.mxu0 0
    %800 = vmatpush1.bf16.msra.mxu0 0
    %801 = vmatprep.subr.bf16.mxu0 0
    %802 = vmatpush1.bf16.msra.mxu0 0
    %803 = vmatprep.subr.bf16.mxu0 0
    %804 = vmatpush1.bf16.msra.mxu0 0
    %805 = vmatprep.subr.bf16.mxu0 0
    %806 = vmatpush1.bf16.msra.mxu0 0
    %807 = vmatprep.subr.bf16.mxu0 0
    %808 = vmatpush1.bf16.msra.mxu0 0
    %809 = vmatprep.subr.bf16.mxu0 0
    %810 = vmatpush1.bf16.msra.mxu0 0
    %811 = vmatprep.subr.bf16.mxu0 0
    %812 = vmatpush1.bf16.msra.mxu0 0
    %813 = vmatprep.subr.bf16.mxu0 0
    %814 = vmatpush1.bf16.msra.mxu0 0
    %815 = vmatprep.subr.bf16.mxu0 0
    %816 = vmatpush1.bf16.msra.mxu0 0
    %817 = vmatprep.subr.bf16.mxu0 0
    %818 = vmatpush1.bf16.msra.mxu0 0
    %819 = vmatprep.subr.bf16.mxu0 0
    %820 = vmatpush1.bf16.msra.mxu0 0
    %821 = vmatprep.subr.bf16.mxu0 0
    %822 = vmatpush1.bf16.msra.mxu0 0
    %823 = vmatprep.mubr.bf16.mxu0 0
    %824 = vmatmul.mubr.bf16.gmra.mrb[0].mxu0 %v789
    %v825 = vpop.f32.mrb[0].mxu0
    %v826 = vadd.f32 %v780, %v825
    %v827 = vpop.f32.mrb[0].mxu0
    %v828 = vpop.f32.mrb[0].mxu0
    %v829 = vpop.f32.mrb[0].mxu0
    %830 = vdwg.mxu0
    %v831 = vadd.f32 %v826, %v227
    %v832 = vxor.u32 %v831, 2147483648
    %v833 = vmul.f32 %v832, 1.442695
    %v834 = vpow.pop %v833
    %v835 = vadd.f32 %v834, 1.0
    %v836 = vrcp.pop %v835
    %v837 = vmul.f32 1.0, %v836
    %v838 = vmul.f32 %v837, 2.0
    %v839 = vsub.f32 %v838, 1.0
    %v840 = vmul.f32 %v837, %v649
    %842 = vrot.lane.b32.xlu0 %v839, 64
    %v843 = vpop.permute.xlu0 %842
    %v845 = vmul.f32 %v837, %v843
    %847 = vrot.lane.b32.xlu0 %v845, 32
    %v848 = vpop.permute.xlu0 %847
    %v850 = vadd.f32 %v840, %v848
    %v851 = vmul.f32 %v850, 2.0
    %v852 = vxor.u32 %v851, 2147483648
    %v853 = vmul.f32 %v852, 1.442695
    %v854 = vpow.pop %v853
    %v855 = vadd.f32 %v854, 1.0
    %v856 = vrcp.pop %v855
    %v857 = vmul.f32 1.0, %v856
    %v858 = vmul.f32 %v857, 2.0
    %v859 = vsub.f32 %v858, 1.0
    %861 = vrot.lane.b32.xlu0 %v859, 64
    %v862 = vpop.permute.xlu0 %861
    %v864 = vmul.f32 %v837, %v862
    %865 = vmatprep.subr.bf16.mxu0 0
    %866 = vmatpush1.bf16.msra.mxu0 %v237
    %867 = vmatprep.subr.bf16.mxu0 0
    %868 = vmatpush1.bf16.msra.mxu0 %v238
    %869 = vmatprep.subr.bf16.mxu0 0
    %870 = vmatpush1.bf16.msra.mxu0 0
    %871 = vmatprep.subr.bf16.mxu0 0
    %872 = vmatpush1.bf16.msra.mxu0 0
    %873 = vmatprep.subr.bf16.mxu0 0
    %874 = vmatpush1.bf16.msra.mxu0 0
    %875 = vmatprep.subr.bf16.mxu0 0
    %876 = vmatpush1.bf16.msra.mxu0 0
    %877 = vmatprep.subr.bf16.mxu0 0
    %878 = vmatpush1.bf16.msra.mxu0 0
    %879 = vmatprep.subr.bf16.mxu0 0
    %880 = vmatpush1.bf16.msra.mxu0 0
    %881 = vmatprep.subr.bf16.mxu0 0
    %882 = vmatpush1.bf16.msra.mxu0 0
    %883 = vmatprep.subr.bf16.mxu0 0
    %884 = vmatpush1.bf16.msra.mxu0 0
    %885 = vmatprep.subr.bf16.mxu0 0
    %886 = vmatpush1.bf16.msra.mxu0 0
    %887 = vmatprep.subr.bf16.mxu0 0
    %888 = vmatpush1.bf16.msra.mxu0 0
    %889 = vmatprep.subr.bf16.mxu0 0
    %890 = vmatpush1.bf16.msra.mxu0 0
    %891 = vmatprep.subr.bf16.mxu0 0
    %892 = vmatpush1.bf16.msra.mxu0 0
    %893 = vmatprep.subr.bf16.mxu0 0
    %894 = vmatpush1.bf16.msra.mxu0 0
    %895 = vmatprep.subr.bf16.mxu0 0
    %896 = vmatpush1.bf16.msra.mxu0 0
    %897 = vmatprep.mubr.bf16.mxu0 0
    %898 = vmatmul.mubr.bf16.gmra.mrb[0].mxu0 %v743
    %v899 = vpop.f32.mrb[0].mxu0
    %v900 = vadd.f32 %v191, %v899
    %v901 = vpop.f32.mrb[0].mxu0
    %v902 = vpop.f32.mrb[0].mxu0
    %v903 = vpop.f32.mrb[0].mxu0
    %904 = vdwg.mxu0
    %v905 = vxor.u32 %v900, 2147483648
    %v906 = vmul.f32 %v905, 1.442695
    %v907 = vpow.pop %v906
    %v908 = vadd.f32 %v907, 1.0
    %v909 = vrcp.pop %v908
    %v910 = vmul.f32 1.0, %v909
    %v911 = vmul.f32 %v910, 2.0
    %v912 = vsub.f32 %v911, 1.0
    %v913 = vmul.f32 %v910, %v722
    %915 = vrot.lane.b32.xlu0 %v912, 64
    %v916 = vpop.permute.xlu0 %915
    %v918 = vmul.f32 %v910, %v916
    %920 = vrot.lane.b32.xlu0 %v918, 32
    %v921 = vpop.permute.xlu0 %920
    %v923 = vadd.f32 %v913, %v921
    %v924 = vmul.f32 %v923, 2.0
    %v925 = vxor.u32 %v924, 2147483648
    %v926 = vmul.f32 %v925, 1.442695
    %v927 = vpow.pop %v926
    %v928 = vadd.f32 %v927, 1.0
    %v929 = vrcp.pop %v928
    %v930 = vmul.f32 1.0, %v929
    %v931 = vmul.f32 %v930, 2.0
    %v932 = vsub.f32 %v931, 1.0
    %934 = vrot.lane.b32.xlu0 %v932, 64
    %v935 = vpop.permute.xlu0 %934
    %v937 = vmul.f32 %v910, %v935
    %v938 = vpack.c.bf16 %v864, %v864
    %v939 = vpack.c.bf16 %v937, %v937
    %941 = vrot.lane.b32.xlu0 %v939, 32
    %v942 = vpop.permute.xlu0 %941
    %v944 = vsel %vm241, %v942, 0
    %946 = vmatprep.subr.bf16.mxu0 0
    %947 = vmatpush1.bf16.msra.mxu0 %v330
    %948 = vmatprep.subr.bf16.mxu0 0
    %949 = vmatpush1.bf16.msra.mxu0 %v331
    %950 = vmatprep.subr.bf16.mxu0 0
    %951 = vmatpush1.bf16.msra.mxu0 0
    %952 = vmatprep.subr.bf16.mxu0 0
    %953 = vmatpush1.bf16.msra.mxu0 0
    %954 = vmatprep.subr.bf16.mxu0 0
    %955 = vmatpush1.bf16.msra.mxu0 0
    %956 = vmatprep.subr.bf16.mxu0 0
    %957 = vmatpush1.bf16.msra.mxu0 0
    %958 = vmatprep.subr.bf16.mxu0 0
    %959 = vmatpush1.bf16.msra.mxu0 0
    %960 = vmatprep.subr.bf16.mxu0 0
    %961 = vmatpush1.bf16.msra.mxu0 0
    %962 = vmatprep.subr.bf16.mxu0 0
    %963 = vmatpush1.bf16.msra.mxu0 0
    %964 = vmatprep.subr.bf16.mxu0 0
    %965 = vmatpush1.bf16.msra.mxu0 0
    %966 = vmatprep.subr.bf16.mxu0 0
    %967 = vmatpush1.bf16.msra.mxu0 0
    %968 = vmatprep.subr.bf16.mxu0 0
    %969 = vmatpush1.bf16.msra.mxu0 0
    %970 = vmatprep.subr.bf16.mxu0 0
    %971 = vmatpush1.bf16.msra.mxu0 0
    %972 = vmatprep.subr.bf16.mxu0 0
    %973 = vmatpush1.bf16.msra.mxu0 0
    %974 = vmatprep.subr.bf16.mxu0 0
    %975 = vmatpush1.bf16.msra.mxu0 0
    %976 = vmatprep.subr.bf16.mxu0 0
    %977 = vmatpush1.bf16.msra.mxu0 0
    %978 = vmatprep.mubr.bf16.mxu0 0
    %979 = vmatmul.mubr.bf16.gmra.mrb[0].mxu0 %v944
    %v980 = vpop.f32.mrb[0].mxu0
    %v981 = vadd.f32 0.0, %v980
    %v982 = vpop.f32.mrb[0].mxu0
    %v983 = vpop.f32.mrb[0].mxu0
    %v984 = vpop.f32.mrb[0].mxu0
    %985 = vdwg.mxu0
    %987 = vrot.lane.b32.xlu0 %v938, 32
    %v988 = vpop.permute.xlu0 %987
    %v990 = vsel %vm241, %v988, 0
    %992 = vmatprep.subr.bf16.mxu0 0
    %993 = vmatpush1.bf16.msra.mxu0 %v385
    %994 = vmatprep.subr.bf16.mxu0 0
    %995 = vmatpush1.bf16.msra.mxu0 %v386
    %996 = vmatprep.subr.bf16.mxu0 0
    %997 = vmatpush1.bf16.msra.mxu0 0
    %998 = vmatprep.subr.bf16.mxu0 0
    %999 = vmatpush1.bf16.msra.mxu0 0
    %1000 = vmatprep.subr.bf16.mxu0 0
    %1001 = vmatpush1.bf16.msra.mxu0 0
    %1002 = vmatprep.subr.bf16.mxu0 0
    %1003 = vmatpush1.bf16.msra.mxu0 0
    %1004 = vmatprep.subr.bf16.mxu0 0
    %1005 = vmatpush1.bf16.msra.mxu0 0
    %1006 = vmatprep.subr.bf16.mxu0 0
    %1007 = vmatpush1.bf16.msra.mxu0 0
    %1008 = vmatprep.subr.bf16.mxu0 0
    %1009 = vmatpush1.bf16.msra.mxu0 0
    %1010 = vmatprep.subr.bf16.mxu0 0
    %1011 = vmatpush1.bf16.msra.mxu0 0
    %1012 = vmatprep.subr.bf16.mxu0 0
    %1013 = vmatpush1.bf16.msra.mxu0 0
    %1014 = vmatprep.subr.bf16.mxu0 0
    %1015 = vmatpush1.bf16.msra.mxu0 0
    %1016 = vmatprep.subr.bf16.mxu0 0
    %1017 = vmatpush1.bf16.msra.mxu0 0
    %1018 = vmatprep.subr.bf16.mxu0 0
    %1019 = vmatpush1.bf16.msra.mxu0 0
    %1020 = vmatprep.subr.bf16.mxu0 0
    %1021 = vmatpush1.bf16.msra.mxu0 0
    %1022 = vmatprep.subr.bf16.mxu0 0
    %1023 = vmatpush1.bf16.msra.mxu0 0
    %1024 = vmatprep.mubr.bf16.mxu0 0
    %1025 = vmatmul.mubr.bf16.gmra.mrb[0].mxu0 %v990
    %v1026 = vpop.f32.mrb[0].mxu0
    %v1027 = vadd.f32 %v981, %v1026
    %v1028 = vpop.f32.mrb[0].mxu0
    %v1029 = vpop.f32.mrb[0].mxu0
    %v1030 = vpop.f32.mrb[0].mxu0
    %1031 = vdwg.mxu0
    %v1032 = vadd.f32 %v1027, %v227
    %v1033 = vxor.u32 %v1032, 2147483648
    %v1034 = vmul.f32 %v1033, 1.442695
    %v1035 = vpow.pop %v1034
    %v1036 = vadd.f32 %v1035, 1.0
    %v1037 = vrcp.pop %v1036
    %v1038 = vmul.f32 1.0, %v1037
    %v1039 = vmul.f32 %v1038, 2.0
    %v1040 = vsub.f32 %v1039, 1.0
    %v1041 = vmul.f32 %v1038, %v850
    %1043 = vrot.lane.b32.xlu0 %v1040, 64
    %v1044 = vpop.permute.xlu0 %1043
    %v1046 = vmul.f32 %v1038, %v1044
    %1048 = vrot.lane.b32.xlu0 %v1046, 32
    %v1049 = vpop.permute.xlu0 %1048
    %v1051 = vadd.f32 %v1041, %v1049
    %v1052 = vmul.f32 %v1051, 2.0
    %v1053 = vxor.u32 %v1052, 2147483648
    %v1054 = vmul.f32 %v1053, 1.442695
    %v1055 = vpow.pop %v1054
    %v1056 = vadd.f32 %v1055, 1.0
    %v1057 = vrcp.pop %v1056
    %v1058 = vmul.f32 1.0, %v1057
    %v1059 = vmul.f32 %v1058, 2.0
    %v1060 = vsub.f32 %v1059, 1.0
    %1062 = vrot.lane.b32.xlu0 %v1060, 64
    %v1063 = vpop.permute.xlu0 %1062
    %v1065 = vmul.f32 %v1038, %v1063
    %1066 = vmatprep.subr.bf16.mxu0 0
    %1067 = vmatpush1.bf16.msra.mxu0 %v237
    %1068 = vmatprep.subr.bf16.mxu0 0
    %1069 = vmatpush1.bf16.msra.mxu0 %v238
    %1070 = vmatprep.subr.bf16.mxu0 0
    %1071 = vmatpush1.bf16.msra.mxu0 0
    %1072 = vmatprep.subr.bf16.mxu0 0
    %1073 = vmatpush1.bf16.msra.mxu0 0
    %1074 = vmatprep.subr.bf16.mxu0 0
    %1075 = vmatpush1.bf16.msra.mxu0 0
    %1076 = vmatprep.subr.bf16.mxu0 0
    %1077 = vmatpush1.bf16.msra.mxu0 0
    %1078 = vmatprep.subr.bf16.mxu0 0
    %1079 = vmatpush1.bf16.msra.mxu0 0
    %1080 = vmatprep.subr.bf16.mxu0 0
    %1081 = vmatpush1.bf16.msra.mxu0 0
    %1082 = vmatprep.subr.bf16.mxu0 0
    %1083 = vmatpush1.bf16.msra.mxu0 0
    %1084 = vmatprep.subr.bf16.mxu0 0
    %1085 = vmatpush1.bf16.msra.mxu0 0
    %1086 = vmatprep.subr.bf16.mxu0 0
    %1087 = vmatpush1.bf16.msra.mxu0 0
    %1088 = vmatprep.subr.bf16.mxu0 0
    %1089 = vmatpush1.bf16.msra.mxu0 0
    %1090 = vmatprep.subr.bf16.mxu0 0
    %1091 = vmatpush1.bf16.msra.mxu0 0
    %1092 = vmatprep.subr.bf16.mxu0 0
    %1093 = vmatpush1.bf16.msra.mxu0 0
    %1094 = vmatprep.subr.bf16.mxu0 0
    %1095 = vmatpush1.bf16.msra.mxu0 0
    %1096 = vmatprep.subr.bf16.mxu0 0
    %1097 = vmatpush1.bf16.msra.mxu0 0
    %1098 = vmatprep.mubr.bf16.mxu0 0
    %1099 = vmatmul.mubr.bf16.gmra.mrb[0].mxu0 %v944
    %v1100 = vpop.f32.mrb[0].mxu0
    %v1101 = vadd.f32 %v196, %v1100
    %v1102 = vpop.f32.mrb[0].mxu0
    %v1103 = vpop.f32.mrb[0].mxu0
    %v1104 = vpop.f32.mrb[0].mxu0
    %1105 = vdwg.mxu0
    %v1106 = vxor.u32 %v1101, 2147483648
    %v1107 = vmul.f32 %v1106, 1.442695
    %v1108 = vpow.pop %v1107
    %v1109 = vadd.f32 %v1108, 1.0
    %v1110 = vrcp.pop %v1109
    %v1111 = vmul.f32 1.0, %v1110
    %v1112 = vmul.f32 %v1111, 2.0
    %v1113 = vsub.f32 %v1112, 1.0
    %v1114 = vmul.f32 %v1111, %v923
    %1116 = vrot.lane.b32.xlu0 %v1113, 64
    %v1117 = vpop.permute.xlu0 %1116
    %v1119 = vmul.f32 %v1111, %v1117
    %1121 = vrot.lane.b32.xlu0 %v1119, 32
    %v1122 = vpop.permute.xlu0 %1121
    %v1124 = vadd.f32 %v1114, %v1122
    %v1125 = vmul.f32 %v1124, 2.0
    %v1126 = vxor.u32 %v1125, 2147483648
    %v1127 = vmul.f32 %v1126, 1.442695
    %v1128 = vpow.pop %v1127
    %v1129 = vadd.f32 %v1128, 1.0
    %v1130 = vrcp.pop %v1129
    %v1131 = vmul.f32 1.0, %v1130
    %v1132 = vmul.f32 %v1131, 2.0
    %v1133 = vsub.f32 %v1132, 1.0
    %1135 = vrot.lane.b32.xlu0 %v1133, 64
    %v1136 = vpop.permute.xlu0 %1135
    %v1138 = vmul.f32 %v1111, %v1136
    %v1139 = vpack.c.bf16 %v1065, %v1065
    %v1140 = vpack.c.bf16 %v1138, %v1138
    %1142 = vrot.lane.b32.xlu0 %v1140, 32
    %v1143 = vpop.permute.xlu0 %1142
    %v1145 = vsel %vm241, %v1143, 0
    %1147 = vmatprep.subr.bf16.mxu0 0
    %1148 = vmatpush1.bf16.msra.mxu0 %v330
    %1149 = vmatprep.subr.bf16.mxu0 0
    %1150 = vmatpush1.bf16.msra.mxu0 %v331
    %1151 = vmatprep.subr.bf16.mxu0 0
    %1152 = vmatpush1.bf16.msra.mxu0 0
    %1153 = vmatprep.subr.bf16.mxu0 0
    %1154 = vmatpush1.bf16.msra.mxu0 0
    %1155 = vmatprep.subr.bf16.mxu0 0
    %1156 = vmatpush1.bf16.msra.mxu0 0
    %1157 = vmatprep.subr.bf16.mxu0 0
    %1158 = vmatpush1.bf16.msra.mxu0 0
    %1159 = vmatprep.subr.bf16.mxu0 0
    %1160 = vmatpush1.bf16.msra.mxu0 0
    %1161 = vmatprep.subr.bf16.mxu0 0
    %1162 = vmatpush1.bf16.msra.mxu0 0
    %1163 = vmatprep.subr.bf16.mxu0 0
    %1164 = vmatpush1.bf16.msra.mxu0 0
    %1165 = vmatprep.subr.bf16.mxu0 0
    %1166 = vmatpush1.bf16.msra.mxu0 0
    %1167 = vmatprep.subr.bf16.mxu0 0
    %1168 = vmatpush1.bf16.msra.mxu0 0
    %1169 = vmatprep.subr.bf16.mxu0 0
    %1170 = vmatpush1.bf16.msra.mxu0 0
    %1171 = vmatprep.subr.bf16.mxu0 0
    %1172 = vmatpush1.bf16.msra.mxu0 0
    %1173 = vmatprep.subr.bf16.mxu0 0
    %1174 = vmatpush1.bf16.msra.mxu0 0
    %1175 = vmatprep.subr.bf16.mxu0 0
    %1176 = vmatpush1.bf16.msra.mxu0 0
    %1177 = vmatprep.subr.bf16.mxu0 0
    %1178 = vmatpush1.bf16.msra.mxu0 0
    %1179 = vmatprep.mubr.bf16.mxu0 0
    %1180 = vmatmul.mubr.bf16.gmra.mrb[0].mxu0 %v1145
    %v1181 = vpop.f32.mrb[0].mxu0
    %v1182 = vadd.f32 0.0, %v1181
    %v1183 = vpop.f32.mrb[0].mxu0
    %v1184 = vpop.f32.mrb[0].mxu0
    %v1185 = vpop.f32.mrb[0].mxu0
    %1186 = vdwg.mxu0
    %1188 = vrot.lane.b32.xlu0 %v1139, 32
    %v1189 = vpop.permute.xlu0 %1188
    %v1191 = vsel %vm241, %v1189, 0
    %1193 = vmatprep.subr.bf16.mxu0 0
    %1194 = vmatpush1.bf16.msra.mxu0 %v385
    %1195 = vmatprep.subr.bf16.mxu0 0
    %1196 = vmatpush1.bf16.msra.mxu0 %v386
    %1197 = vmatprep.subr.bf16.mxu0 0
    %1198 = vmatpush1.bf16.msra.mxu0 0
    %1199 = vmatprep.subr.bf16.mxu0 0
    %1200 = vmatpush1.bf16.msra.mxu0 0
    %1201 = vmatprep.subr.bf16.mxu0 0
    %1202 = vmatpush1.bf16.msra.mxu0 0
    %1203 = vmatprep.subr.bf16.mxu0 0
    %1204 = vmatpush1.bf16.msra.mxu0 0
    %1205 = vmatprep.subr.bf16.mxu0 0
    %1206 = vmatpush1.bf16.msra.mxu0 0
    %1207 = vmatprep.subr.bf16.mxu0 0
    %1208 = vmatpush1.bf16.msra.mxu0 0
    %1209 = vmatprep.subr.bf16.mxu0 0
    %1210 = vmatpush1.bf16.msra.mxu0 0
    %1211 = vmatprep.subr.bf16.mxu0 0
    %1212 = vmatpush1.bf16.msra.mxu0 0
    %1213 = vmatprep.subr.bf16.mxu0 0
    %1214 = vmatpush1.bf16.msra.mxu0 0
    %1215 = vmatprep.subr.bf16.mxu0 0
    %1216 = vmatpush1.bf16.msra.mxu0 0
    %1217 = vmatprep.subr.bf16.mxu0 0
    %1218 = vmatpush1.bf16.msra.mxu0 0
    %1219 = vmatprep.subr.bf16.mxu0 0
    %1220 = vmatpush1.bf16.msra.mxu0 0
    %1221 = vmatprep.subr.bf16.mxu0 0
    %1222 = vmatpush1.bf16.msra.mxu0 0
    %1223 = vmatprep.subr.bf16.mxu0 0
    %1224 = vmatpush1.bf16.msra.mxu0 0
    %1225 = vmatprep.mubr.bf16.mxu0 0
    %1226 = vmatmul.mubr.bf16.gmra.mrb[0].mxu0 %v1191
    %v1227 = vpop.f32.mrb[0].mxu0
    %v1228 = vadd.f32 %v1182, %v1227
    %v1229 = vpop.f32.mrb[0].mxu0
    %v1230 = vpop.f32.mrb[0].mxu0
    %v1231 = vpop.f32.mrb[0].mxu0
    %1232 = vdwg.mxu0
    %v1233 = vadd.f32 %v1228, %v227
    %v1234 = vxor.u32 %v1233, 2147483648
    %v1235 = vmul.f32 %v1234, 1.442695
    %v1236 = vpow.pop %v1235
    %v1237 = vadd.f32 %v1236, 1.0
    %v1238 = vrcp.pop %v1237
    %v1239 = vmul.f32 1.0, %v1238
    %v1240 = vmul.f32 %v1239, 2.0
    %v1241 = vsub.f32 %v1240, 1.0
    %v1242 = vmul.f32 %v1239, %v1051
    %1244 = vrot.lane.b32.xlu0 %v1241, 64
    %v1245 = vpop.permute.xlu0 %1244
    %v1247 = vmul.f32 %v1239, %v1245
    %1249 = vrot.lane.b32.xlu0 %v1247, 32
    %v1250 = vpop.permute.xlu0 %1249
    %v1252 = vadd.f32 %v1242, %v1250
    %v1253 = vmul.f32 %v1252, 2.0
    %v1254 = vxor.u32 %v1253, 2147483648
    %v1255 = vmul.f32 %v1254, 1.442695
    %v1256 = vpow.pop %v1255
    %v1257 = vadd.f32 %v1256, 1.0
    %v1258 = vrcp.pop %v1257
    %v1259 = vmul.f32 1.0, %v1258
    %v1260 = vmul.f32 %v1259, 2.0
    %v1261 = vsub.f32 %v1260, 1.0
    %1263 = vrot.lane.b32.xlu0 %v1261, 64
    %v1264 = vpop.permute.xlu0 %1263
    %v1266 = vmul.f32 %v1239, %v1264
    %1267 = vmatprep.subr.bf16.mxu0 0
    %1268 = vmatpush1.bf16.msra.mxu0 %v237
    %1269 = vmatprep.subr.bf16.mxu0 0
    %1270 = vmatpush1.bf16.msra.mxu0 %v238
    %1271 = vmatprep.subr.bf16.mxu0 0
    %1272 = vmatpush1.bf16.msra.mxu0 0
    %1273 = vmatprep.subr.bf16.mxu0 0
    %1274 = vmatpush1.bf16.msra.mxu0 0
    %1275 = vmatprep.subr.bf16.mxu0 0
    %1276 = vmatpush1.bf16.msra.mxu0 0
    %1277 = vmatprep.subr.bf16.mxu0 0
    %1278 = vmatpush1.bf16.msra.mxu0 0
    %1279 = vmatprep.subr.bf16.mxu0 0
    %1280 = vmatpush1.bf16.msra.mxu0 0
    %1281 = vmatprep.subr.bf16.mxu0 0
    %1282 = vmatpush1.bf16.msra.mxu0 0
    %1283 = vmatprep.subr.bf16.mxu0 0
    %1284 = vmatpush1.bf16.msra.mxu0 0
    %1285 = vmatprep.subr.bf16.mxu0 0
    %1286 = vmatpush1.bf16.msra.mxu0 0
    %1287 = vmatprep.subr.bf16.mxu0 0
    %1288 = vmatpush1.bf16.msra.mxu0 0
    %1289 = vmatprep.subr.bf16.mxu0 0
    %1290 = vmatpush1.bf16.msra.mxu0 0
    %1291 = vmatprep.subr.bf16.mxu0 0
    %1292 = vmatpush1.bf16.msra.mxu0 0
    %1293 = vmatprep.subr.bf16.mxu0 0
    %1294 = vmatpush1.bf16.msra.mxu0 0
    %1295 = vmatprep.subr.bf16.mxu0 0
    %1296 = vmatpush1.bf16.msra.mxu0 0
    %1297 = vmatprep.subr.bf16.mxu0 0
    %1298 = vmatpush1.bf16.msra.mxu0 0
    %1299 = vmatprep.mubr.bf16.mxu0 0
    %1300 = vmatmul.mubr.bf16.gmra.mrb[0].mxu0 %v1145
    %v1301 = vpop.f32.mrb[0].mxu0
    %v1302 = vadd.f32 %v199, %v1301
    %v1303 = vpop.f32.mrb[0].mxu0
    %v1304 = vpop.f32.mrb[0].mxu0
    %v1305 = vpop.f32.mrb[0].mxu0
    %1306 = vdwg.mxu0
    %v1307 = vxor.u32 %v1302, 2147483648
    %v1308 = vmul.f32 %v1307, 1.442695
    %v1309 = vpow.pop %v1308
    %v1310 = vadd.f32 %v1309, 1.0
    %v1311 = vrcp.pop %v1310
    %v1312 = vmul.f32 1.0, %v1311
    %v1313 = vmul.f32 %v1312, 2.0
    %v1314 = vsub.f32 %v1313, 1.0
    %v1315 = vmul.f32 %v1312, %v1124
    %1317 = vrot.lane.b32.xlu0 %v1314, 64
    %v1318 = vpop.permute.xlu0 %1317
    %v1320 = vmul.f32 %v1312, %v1318
    %1322 = vrot.lane.b32.xlu0 %v1320, 32
    %v1323 = vpop.permute.xlu0 %1322
    %v1325 = vadd.f32 %v1315, %v1323
    %v1326 = vmul.f32 %v1325, 2.0
    %v1327 = vxor.u32 %v1326, 2147483648
    %v1328 = vmul.f32 %v1327, 1.442695
    %v1329 = vpow.pop %v1328
    %v1330 = vadd.f32 %v1329, 1.0
    %v1331 = vrcp.pop %v1330
    %v1332 = vmul.f32 1.0, %v1331
    %v1333 = vmul.f32 %v1332, 2.0
    %v1334 = vsub.f32 %v1333, 1.0
    %1336 = vrot.lane.b32.xlu0 %v1334, 64
    %v1337 = vpop.permute.xlu0 %1336
    %v1339 = vmul.f32 %v1312, %v1337
    %v1340 = vpack.c.bf16 %v1266, %v1266
    %v1341 = vpack.c.bf16 %v1339, %v1339
    %1343 = vrot.lane.b32.xlu0 %v1341, 32
    %v1344 = vpop.permute.xlu0 %1343
    %v1346 = vsel %vm241, %v1344, 0
    %1348 = vmatprep.subr.bf16.mxu0 0
    %1349 = vmatpush1.bf16.msra.mxu0 %v330
    %1350 = vmatprep.subr.bf16.mxu0 0
    %1351 = vmatpush1.bf16.msra.mxu0 %v331
    %1352 = vmatprep.subr.bf16.mxu0 0
    %1353 = vmatpush1.bf16.msra.mxu0 0
    %1354 = vmatprep.subr.bf16.mxu0 0
    %1355 = vmatpush1.bf16.msra.mxu0 0
    %1356 = vmatprep.subr.bf16.mxu0 0
    %1357 = vmatpush1.bf16.msra.mxu0 0
    %1358 = vmatprep.subr.bf16.mxu0 0
    %1359 = vmatpush1.bf16.msra.mxu0 0
    %1360 = vmatprep.subr.bf16.mxu0 0
    %1361 = vmatpush1.bf16.msra.mxu0 0
    %1362 = vmatprep.subr.bf16.mxu0 0
    %1363 = vmatpush1.bf16.msra.mxu0 0
    %1364 = vmatprep.subr.bf16.mxu0 0
    %1365 = vmatpush1.bf16.msra.mxu0 0
    %1366 = vmatprep.subr.bf16.mxu0 0
    %1367 = vmatpush1.bf16.msra.mxu0 0
    %1368 = vmatprep.subr.bf16.mxu0 0
    %1369 = vmatpush1.bf16.msra.mxu0 0
    %1370 = vmatprep.subr.bf16.mxu0 0
    %1371 = vmatpush1.bf16.msra.mxu0 0
    %1372 = vmatprep.subr.bf16.mxu0 0
    %1373 = vmatpush1.bf16.msra.mxu0 0
    %1374 = vmatprep.subr.bf16.mxu0 0
    %1375 = vmatpush1.bf16.msra.mxu0 0
    %1376 = vmatprep.subr.bf16.mxu0 0
    %1377 = vmatpush1.bf16.msra.mxu0 0
    %1378 = vmatprep.subr.bf16.mxu0 0
    %1379 = vmatpush1.bf16.msra.mxu0 0
    %1380 = vmatprep.mubr.bf16.mxu0 0
    %1381 = vmatmul.mubr.bf16.gmra.mrb[0].mxu0 %v1346
    %v1382 = vpop.f32.mrb[0].mxu0
    %v1383 = vadd.f32 0.0, %v1382
    %v1384 = vpop.f32.mrb[0].mxu0
    %v1385 = vpop.f32.mrb[0].mxu0
    %v1386 = vpop.f32.mrb[0].mxu0
    %1387 = vdwg.mxu0
    %1389 = vrot.lane.b32.xlu0 %v1340, 32
    %v1390 = vpop.permute.xlu0 %1389
    %v1392 = vsel %vm241, %v1390, 0
    %1394 = vmatprep.subr.bf16.mxu0 0
    %1395 = vmatpush1.bf16.msra.mxu0 %v385
    %1396 = vmatprep.subr.bf16.mxu0 0
    %1397 = vmatpush1.bf16.msra.mxu0 %v386
    %1398 = vmatprep.subr.bf16.mxu0 0
    %1399 = vmatpush1.bf16.msra.mxu0 0
    %1400 = vmatprep.subr.bf16.mxu0 0
    %1401 = vmatpush1.bf16.msra.mxu0 0
    %1402 = vmatprep.subr.bf16.mxu0 0
    %1403 = vmatpush1.bf16.msra.mxu0 0
    %1404 = vmatprep.subr.bf16.mxu0 0
    %1405 = vmatpush1.bf16.msra.mxu0 0
    %1406 = vmatprep.subr.bf16.mxu0 0
    %1407 = vmatpush1.bf16.msra.mxu0 0
    %1408 = vmatprep.subr.bf16.mxu0 0
    %1409 = vmatpush1.bf16.msra.mxu0 0
    %1410 = vmatprep.subr.bf16.mxu0 0
    %1411 = vmatpush1.bf16.msra.mxu0 0
    %1412 = vmatprep.subr.bf16.mxu0 0
    %1413 = vmatpush1.bf16.msra.mxu0 0
    %1414 = vmatprep.subr.bf16.mxu0 0
    %1415 = vmatpush1.bf16.msra.mxu0 0
    %1416 = vmatprep.subr.bf16.mxu0 0
    %1417 = vmatpush1.bf16.msra.mxu0 0
    %1418 = vmatprep.subr.bf16.mxu0 0
    %1419 = vmatpush1.bf16.msra.mxu0 0
    %1420 = vmatprep.subr.bf16.mxu0 0
    %1421 = vmatpush1.bf16.msra.mxu0 0
    %1422 = vmatprep.subr.bf16.mxu0 0
    %1423 = vmatpush1.bf16.msra.mxu0 0
    %1424 = vmatprep.subr.bf16.mxu0 0
    %1425 = vmatpush1.bf16.msra.mxu0 0
    %1426 = vmatprep.mubr.bf16.mxu0 0
    %1427 = vmatmul.mubr.bf16.gmra.mrb[0].mxu0 %v1392
    %v1428 = vpop.f32.mrb[0].mxu0
    %v1429 = vadd.f32 %v1383, %v1428
    %v1430 = vpop.f32.mrb[0].mxu0
    %v1431 = vpop.f32.mrb[0].mxu0
    %v1432 = vpop.f32.mrb[0].mxu0
    %1433 = vdwg.mxu0
    %v1434 = vadd.f32 %v1429, %v227
    %v1435 = vxor.u32 %v1434, 2147483648
    %v1436 = vmul.f32 %v1435, 1.442695
    %v1437 = vpow.pop %v1436
    %v1438 = vadd.f32 %v1437, 1.0
    %v1439 = vrcp.pop %v1438
    %v1440 = vmul.f32 1.0, %v1439
    %v1441 = vmul.f32 %v1440, 2.0
    %v1442 = vsub.f32 %v1441, 1.0
    %v1443 = vmul.f32 %v1440, %v1252
    %1445 = vrot.lane.b32.xlu0 %v1442, 64
    %v1446 = vpop.permute.xlu0 %1445
    %v1448 = vmul.f32 %v1440, %v1446
    %1450 = vrot.lane.b32.xlu0 %v1448, 32
    %v1451 = vpop.permute.xlu0 %1450
    %v1453 = vadd.f32 %v1443, %v1451
    %v1454 = vmul.f32 %v1453, 2.0
    %v1455 = vxor.u32 %v1454, 2147483648
    %v1456 = vmul.f32 %v1455, 1.442695
    %v1457 = vpow.pop %v1456
    %v1458 = vadd.f32 %v1457, 1.0
    %v1459 = vrcp.pop %v1458
    %v1460 = vmul.f32 1.0, %v1459
    %v1461 = vmul.f32 %v1460, 2.0
    %v1462 = vsub.f32 %v1461, 1.0
    %1464 = vrot.lane.b32.xlu0 %v1462, 64
    %v1465 = vpop.permute.xlu0 %1464
    %v1467 = vmul.f32 %v1440, %v1465
    %1468 = vmatprep.subr.bf16.mxu0 0
    %1469 = vmatpush1.bf16.msra.mxu0 %v237
    %1470 = vmatprep.subr.bf16.mxu0 0
    %1471 = vmatpush1.bf16.msra.mxu0 %v238
    %1472 = vmatprep.subr.bf16.mxu0 0
    %1473 = vmatpush1.bf16.msra.mxu0 0
    %1474 = vmatprep.subr.bf16.mxu0 0
    %1475 = vmatpush1.bf16.msra.mxu0 0
    %1476 = vmatprep.subr.bf16.mxu0 0
    %1477 = vmatpush1.bf16.msra.mxu0 0
    %1478 = vmatprep.subr.bf16.mxu0 0
    %1479 = vmatpush1.bf16.msra.mxu0 0
    %1480 = vmatprep.subr.bf16.mxu0 0
    %1481 = vmatpush1.bf16.msra.mxu0 0
    %1482 = vmatprep.subr.bf16.mxu0 0
    %1483 = vmatpush1.bf16.msra.mxu0 0
    %1484 = vmatprep.subr.bf16.mxu0 0
    %1485 = vmatpush1.bf16.msra.mxu0 0
    %1486 = vmatprep.subr.bf16.mxu0 0
    %1487 = vmatpush1.bf16.msra.mxu0 0
    %1488 = vmatprep.subr.bf16.mxu0 0
    %1489 = vmatpush1.bf16.msra.mxu0 0
    %1490 = vmatprep.subr.bf16.mxu0 0
    %1491 = vmatpush1.bf16.msra.mxu0 0
    %1492 = vmatprep.subr.bf16.mxu0 0
    %1493 = vmatpush1.bf16.msra.mxu0 0
    %1494 = vmatprep.subr.bf16.mxu0 0
    %1495 = vmatpush1.bf16.msra.mxu0 0
    %1496 = vmatprep.subr.bf16.mxu0 0
    %1497 = vmatpush1.bf16.msra.mxu0 0
    %1498 = vmatprep.subr.bf16.mxu0 0
    %1499 = vmatpush1.bf16.msra.mxu0 0
    %1500 = vmatprep.mubr.bf16.mxu0 0
    %1501 = vmatmul.mubr.bf16.gmra.mrb[0].mxu0 %v1346
    %v1502 = vpop.f32.mrb[0].mxu0
    %v1503 = vadd.f32 %v204, %v1502
    %v1504 = vpop.f32.mrb[0].mxu0
    %v1505 = vpop.f32.mrb[0].mxu0
    %v1506 = vpop.f32.mrb[0].mxu0
    %1507 = vdwg.mxu0
    %v1508 = vxor.u32 %v1503, 2147483648
    %v1509 = vmul.f32 %v1508, 1.442695
    %v1510 = vpow.pop %v1509
    %v1511 = vadd.f32 %v1510, 1.0
    %v1512 = vrcp.pop %v1511
    %v1513 = vmul.f32 1.0, %v1512
    %v1514 = vmul.f32 %v1513, 2.0
    %v1515 = vsub.f32 %v1514, 1.0
    %v1516 = vmul.f32 %v1513, %v1325
    %1518 = vrot.lane.b32.xlu0 %v1515, 64
    %v1519 = vpop.permute.xlu0 %1518
    %v1521 = vmul.f32 %v1513, %v1519
    %1523 = vrot.lane.b32.xlu0 %v1521, 32
    %v1524 = vpop.permute.xlu0 %1523
    %v1526 = vadd.f32 %v1516, %v1524
    %v1527 = vmul.f32 %v1526, 2.0
    %v1528 = vxor.u32 %v1527, 2147483648
    %v1529 = vmul.f32 %v1528, 1.442695
    %v1530 = vpow.pop %v1529
    %v1531 = vadd.f32 %v1530, 1.0
    %v1532 = vrcp.pop %v1531
    %v1533 = vmul.f32 1.0, %v1532
    %v1534 = vmul.f32 %v1533, 2.0
    %v1535 = vsub.f32 %v1534, 1.0
    %1537 = vrot.lane.b32.xlu0 %v1535, 64
    %v1538 = vpop.permute.xlu0 %1537
    %v1540 = vmul.f32 %v1513, %v1538
    %v1541 = vpack.c.bf16 %v1467, %v1467
    %v1542 = vpack.c.bf16 %v1540, %v1540
    %1544 = vrot.lane.b32.xlu0 %v1542, 32
    %v1545 = vpop.permute.xlu0 %1544
    %v1547 = vsel %vm241, %v1545, 0
    %1549 = vmatprep.subr.bf16.mxu0 0
    %1550 = vmatpush1.bf16.msra.mxu0 %v330
    %1551 = vmatprep.subr.bf16.mxu0 0
    %1552 = vmatpush1.bf16.msra.mxu0 %v331
    %1553 = vmatprep.subr.bf16.mxu0 0
    %1554 = vmatpush1.bf16.msra.mxu0 0
    %1555 = vmatprep.subr.bf16.mxu0 0
    %1556 = vmatpush1.bf16.msra.mxu0 0
    %1557 = vmatprep.subr.bf16.mxu0 0
    %1558 = vmatpush1.bf16.msra.mxu0 0
    %1559 = vmatprep.subr.bf16.mxu0 0
    %1560 = vmatpush1.bf16.msra.mxu0 0
    %1561 = vmatprep.subr.bf16.mxu0 0
    %1562 = vmatpush1.bf16.msra.mxu0 0
    %1563 = vmatprep.subr.bf16.mxu0 0
    %1564 = vmatpush1.bf16.msra.mxu0 0
    %1565 = vmatprep.subr.bf16.mxu0 0
    %1566 = vmatpush1.bf16.msra.mxu0 0
    %1567 = vmatprep.subr.bf16.mxu0 0
    %1568 = vmatpush1.bf16.msra.mxu0 0
    %1569 = vmatprep.subr.bf16.mxu0 0
    %1570 = vmatpush1.bf16.msra.mxu0 0
    %1571 = vmatprep.subr.bf16.mxu0 0
    %1572 = vmatpush1.bf16.msra.mxu0 0
    %1573 = vmatprep.subr.bf16.mxu0 0
    %1574 = vmatpush1.bf16.msra.mxu0 0
    %1575 = vmatprep.subr.bf16.mxu0 0
    %1576 = vmatpush1.bf16.msra.mxu0 0
    %1577 = vmatprep.subr.bf16.mxu0 0
    %1578 = vmatpush1.bf16.msra.mxu0 0
    %1579 = vmatprep.subr.bf16.mxu0 0
    %1580 = vmatpush1.bf16.msra.mxu0 0
    %1581 = vmatprep.mubr.bf16.mxu0 0
    %1582 = vmatmul.mubr.bf16.gmra.mrb[0].mxu0 %v1547
    %v1583 = vpop.f32.mrb[0].mxu0
    %v1584 = vadd.f32 0.0, %v1583
    %v1585 = vpop.f32.mrb[0].mxu0
    %v1586 = vpop.f32.mrb[0].mxu0
    %v1587 = vpop.f32.mrb[0].mxu0
    %1588 = vdwg.mxu0
    %1590 = vrot.lane.b32.xlu0 %v1541, 32
    %v1591 = vpop.permute.xlu0 %1590
    %v1593 = vsel %vm241, %v1591, 0
    %1595 = vmatprep.subr.bf16.mxu0 0
    %1596 = vmatpush1.bf16.msra.mxu0 %v385
    %1597 = vmatprep.subr.bf16.mxu0 0
    %1598 = vmatpush1.bf16.msra.mxu0 %v386
    %1599 = vmatprep.subr.bf16.mxu0 0
    %1600 = vmatpush1.bf16.msra.mxu0 0
    %1601 = vmatprep.subr.bf16.mxu0 0
    %1602 = vmatpush1.bf16.msra.mxu0 0
    %1603 = vmatprep.subr.bf16.mxu0 0
    %1604 = vmatpush1.bf16.msra.mxu0 0
    %1605 = vmatprep.subr.bf16.mxu0 0
    %1606 = vmatpush1.bf16.msra.mxu0 0
    %1607 = vmatprep.subr.bf16.mxu0 0
    %1608 = vmatpush1.bf16.msra.mxu0 0
    %1609 = vmatprep.subr.bf16.mxu0 0
    %1610 = vmatpush1.bf16.msra.mxu0 0
    %1611 = vmatprep.subr.bf16.mxu0 0
    %1612 = vmatpush1.bf16.msra.mxu0 0
    %1613 = vmatprep.subr.bf16.mxu0 0
    %1614 = vmatpush1.bf16.msra.mxu0 0
    %1615 = vmatprep.subr.bf16.mxu0 0
    %1616 = vmatpush1.bf16.msra.mxu0 0
    %1617 = vmatprep.subr.bf16.mxu0 0
    %1618 = vmatpush1.bf16.msra.mxu0 0
    %1619 = vmatprep.subr.bf16.mxu0 0
    %1620 = vmatpush1.bf16.msra.mxu0 0
    %1621 = vmatprep.subr.bf16.mxu0 0
    %1622 = vmatpush1.bf16.msra.mxu0 0
    %1623 = vmatprep.subr.bf16.mxu0 0
    %1624 = vmatpush1.bf16.msra.mxu0 0
    %1625 = vmatprep.subr.bf16.mxu0 0
    %1626 = vmatpush1.bf16.msra.mxu0 0
    %1627 = vmatprep.mubr.bf16.mxu0 0
    %1628 = vmatmul.mubr.bf16.gmra.mrb[0].mxu0 %v1593
    %v1629 = vpop.f32.mrb[0].mxu0
    %v1630 = vadd.f32 %v1584, %v1629
    %v1631 = vpop.f32.mrb[0].mxu0
    %v1632 = vpop.f32.mrb[0].mxu0
    %v1633 = vpop.f32.mrb[0].mxu0
    %1634 = vdwg.mxu0
    %v1635 = vadd.f32 %v1630, %v227
    %v1636 = vxor.u32 %v1635, 2147483648
    %v1637 = vmul.f32 %v1636, 1.442695
    %v1638 = vpow.pop %v1637
    %v1639 = vadd.f32 %v1638, 1.0
    %v1640 = vrcp.pop %v1639
    %v1641 = vmul.f32 1.0, %v1640
    %v1642 = vmul.f32 %v1641, 2.0
    %v1643 = vsub.f32 %v1642, 1.0
    %v1644 = vmul.f32 %v1641, %v1453
    %1646 = vrot.lane.b32.xlu0 %v1643, 64
    %v1647 = vpop.permute.xlu0 %1646
    %v1649 = vmul.f32 %v1641, %v1647
    %1651 = vrot.lane.b32.xlu0 %v1649, 32
    %v1652 = vpop.permute.xlu0 %1651
    %v1654 = vadd.f32 %v1644, %v1652
    %v1655 = vmul.f32 %v1654, 2.0
    %v1656 = vxor.u32 %v1655, 2147483648
    %v1657 = vmul.f32 %v1656, 1.442695
    %v1658 = vpow.pop %v1657
    %v1659 = vadd.f32 %v1658, 1.0
    %v1660 = vrcp.pop %v1659
    %v1661 = vmul.f32 1.0, %v1660
    %v1662 = vmul.f32 %v1661, 2.0
    %v1663 = vsub.f32 %v1662, 1.0
    %1665 = vrot.lane.b32.xlu0 %v1663, 64
    %v1666 = vpop.permute.xlu0 %1665
    %v1668 = vmul.f32 %v1641, %v1666
    %1669 = vmatprep.subr.bf16.mxu0 0
    %1670 = vmatpush1.bf16.msra.mxu0 %v237
    %1671 = vmatprep.subr.bf16.mxu0 0
    %1672 = vmatpush1.bf16.msra.mxu0 %v238
    %1673 = vmatprep.subr.bf16.mxu0 0
    %1674 = vmatpush1.bf16.msra.mxu0 0
    %1675 = vmatprep.subr.bf16.mxu0 0
    %1676 = vmatpush1.bf16.msra.mxu0 0
    %1677 = vmatprep.subr.bf16.mxu0 0
    %1678 = vmatpush1.bf16.msra.mxu0 0
    %1679 = vmatprep.subr.bf16.mxu0 0
    %1680 = vmatpush1.bf16.msra.mxu0 0
    %1681 = vmatprep.subr.bf16.mxu0 0
    %1682 = vmatpush1.bf16.msra.mxu0 0
    %1683 = vmatprep.subr.bf16.mxu0 0
    %1684 = vmatpush1.bf16.msra.mxu0 0
    %1685 = vmatprep.subr.bf16.mxu0 0
    %1686 = vmatpush1.bf16.msra.mxu0 0
    %1687 = vmatprep.subr.bf16.mxu0 0
    %1688 = vmatpush1.bf16.msra.mxu0 0
    %1689 = vmatprep.subr.bf16.mxu0 0
    %1690 = vmatpush1.bf16.msra.mxu0 0
    %1691 = vmatprep.subr.bf16.mxu0 0
    %1692 = vmatpush1.bf16.msra.mxu0 0
    %1693 = vmatprep.subr.bf16.mxu0 0
    %1694 = vmatpush1.bf16.msra.mxu0 0
    %1695 = vmatprep.subr.bf16.mxu0 0
    %1696 = vmatpush1.bf16.msra.mxu0 0
    %1697 = vmatprep.subr.bf16.mxu0 0
    %1698 = vmatpush1.bf16.msra.mxu0 0
    %1699 = vmatprep.subr.bf16.mxu0 0
    %1700 = vmatpush1.bf16.msra.mxu0 0
    %1701 = vmatprep.mubr.bf16.mxu0 0
    %1702 = vmatmul.mubr.bf16.gmra.mrb[0].mxu0 %v1547
    %v1703 = vpop.f32.mrb[0].mxu0
    %v1704 = vadd.f32 %v207, %v1703
    %v1705 = vpop.f32.mrb[0].mxu0
    %v1706 = vpop.f32.mrb[0].mxu0
    %v1707 = vpop.f32.mrb[0].mxu0
    %1708 = vdwg.mxu0
    %v1709 = vxor.u32 %v1704, 2147483648
    %v1710 = vmul.f32 %v1709, 1.442695
    %v1711 = vpow.pop %v1710
    %v1712 = vadd.f32 %v1711, 1.0
    %v1713 = vrcp.pop %v1712
    %v1714 = vmul.f32 1.0, %v1713
    %v1715 = vmul.f32 %v1714, 2.0
    %v1716 = vsub.f32 %v1715, 1.0
    %v1717 = vmul.f32 %v1714, %v1526
    %1719 = vrot.lane.b32.xlu0 %v1716, 64
    %v1720 = vpop.permute.xlu0 %1719
    %v1722 = vmul.f32 %v1714, %v1720
    %1724 = vrot.lane.b32.xlu0 %v1722, 32
    %v1725 = vpop.permute.xlu0 %1724
    %v1727 = vadd.f32 %v1717, %v1725
    %v1728 = vmul.f32 %v1727, 2.0
    %v1729 = vxor.u32 %v1728, 2147483648
    %v1730 = vmul.f32 %v1729, 1.442695
    %v1731 = vpow.pop %v1730
    %v1732 = vadd.f32 %v1731, 1.0
    %v1733 = vrcp.pop %v1732
    %v1734 = vmul.f32 1.0, %v1733
    %v1735 = vmul.f32 %v1734, 2.0
    %v1736 = vsub.f32 %v1735, 1.0
    %1738 = vrot.lane.b32.xlu0 %v1736, 64
    %v1739 = vpop.permute.xlu0 %1738
    %v1741 = vmul.f32 %v1714, %v1739
    %v1742 = vpack.c.bf16 %v1668, %v1668
    %v1743 = vpack.c.bf16 %v1741, %v1741
    %1745 = vrot.lane.b32.xlu0 %v1743, 32
    %v1746 = vpop.permute.xlu0 %1745
    %v1748 = vsel %vm241, %v1746, 0
    %1750 = vmatprep.subr.bf16.mxu0 0
    %1751 = vmatpush1.bf16.msra.mxu0 %v330
    %1752 = vmatprep.subr.bf16.mxu0 0
    %1753 = vmatpush1.bf16.msra.mxu0 %v331
    %1754 = vmatprep.subr.bf16.mxu0 0
    %1755 = vmatpush1.bf16.msra.mxu0 0
    %1756 = vmatprep.subr.bf16.mxu0 0
    %1757 = vmatpush1.bf16.msra.mxu0 0
    %1758 = vmatprep.subr.bf16.mxu0 0
    %1759 = vmatpush1.bf16.msra.mxu0 0
    %1760 = vmatprep.subr.bf16.mxu0 0
    %1761 = vmatpush1.bf16.msra.mxu0 0
    %1762 = vmatprep.subr.bf16.mxu0 0
    %1763 = vmatpush1.bf16.msra.mxu0 0
    %1764 = vmatprep.subr.bf16.mxu0 0
    %1765 = vmatpush1.bf16.msra.mxu0 0
    %1766 = vmatprep.subr.bf16.mxu0 0
    %1767 = vmatpush1.bf16.msra.mxu0 0
    %1768 = vmatprep.subr.bf16.mxu0 0
    %1769 = vmatpush1.bf16.msra.mxu0 0
    %1770 = vmatprep.subr.bf16.mxu0 0
    %1771 = vmatpush1.bf16.msra.mxu0 0
    %1772 = vmatprep.subr.bf16.mxu0 0
    %1773 = vmatpush1.bf16.msra.mxu0 0
    %1774 = vmatprep.subr.bf16.mxu0 0
    %1775 = vmatpush1.bf16.msra.mxu0 0
    %1776 = vmatprep.subr.bf16.mxu0 0
    %1777 = vmatpush1.bf16.msra.mxu0 0
    %1778 = vmatprep.subr.bf16.mxu0 0
    %1779 = vmatpush1.bf16.msra.mxu0 0
    %1780 = vmatprep.subr.bf16.mxu0 0
    %1781 = vmatpush1.bf16.msra.mxu0 0
    %1782 = vmatprep.mubr.bf16.mxu0 0
    %1783 = vmatmul.mubr.bf16.gmra.mrb[0].mxu0 %v1748
    %v1784 = vpop.f32.mrb[0].mxu0
    %v1785 = vadd.f32 0.0, %v1784
    %v1786 = vpop.f32.mrb[0].mxu0
    %v1787 = vpop.f32.mrb[0].mxu0
    %v1788 = vpop.f32.mrb[0].mxu0
    %1789 = vdwg.mxu0
    %1791 = vrot.lane.b32.xlu0 %v1742, 32
    %v1792 = vpop.permute.xlu0 %1791
    %v1794 = vsel %vm241, %v1792, 0
    %1796 = vmatprep.subr.bf16.mxu0 0
    %1797 = vmatpush1.bf16.msra.mxu0 %v385
    %1798 = vmatprep.subr.bf16.mxu0 0
    %1799 = vmatpush1.bf16.msra.mxu0 %v386
    %1800 = vmatprep.subr.bf16.mxu0 0
    %1801 = vmatpush1.bf16.msra.mxu0 0
    %1802 = vmatprep.subr.bf16.mxu0 0
    %1803 = vmatpush1.bf16.msra.mxu0 0
    %1804 = vmatprep.subr.bf16.mxu0 0
    %1805 = vmatpush1.bf16.msra.mxu0 0
    %1806 = vmatprep.subr.bf16.mxu0 0
    %1807 = vmatpush1.bf16.msra.mxu0 0
    %1808 = vmatprep.subr.bf16.mxu0 0
    %1809 = vmatpush1.bf16.msra.mxu0 0
    %1810 = vmatprep.subr.bf16.mxu0 0
    %1811 = vmatpush1.bf16.msra.mxu0 0
    %1812 = vmatprep.subr.bf16.mxu0 0
    %1813 = vmatpush1.bf16.msra.mxu0 0
    %1814 = vmatprep.subr.bf16.mxu0 0
    %1815 = vmatpush1.bf16.msra.mxu0 0
    %1816 = vmatprep.subr.bf16.mxu0 0
    %1817 = vmatpush1.bf16.msra.mxu0 0
    %1818 = vmatprep.subr.bf16.mxu0 0
    %1819 = vmatpush1.bf16.msra.mxu0 0
    %1820 = vmatprep.subr.bf16.mxu0 0
    %1821 = vmatpush1.bf16.msra.mxu0 0
    %1822 = vmatprep.subr.bf16.mxu0 0
    %1823 = vmatpush1.bf16.msra.mxu0 0
    %1824 = vmatprep.subr.bf16.mxu0 0
    %1825 = vmatpush1.bf16.msra.mxu0 0
    %1826 = vmatprep.subr.bf16.mxu0 0
    %1827 = vmatpush1.bf16.msra.mxu0 0
    %1828 = vmatprep.mubr.bf16.mxu0 0
    %1829 = vmatmul.mubr.bf16.gmra.mrb[0].mxu0 %v1794
    %v1830 = vpop.f32.mrb[0].mxu0
    %v1831 = vadd.f32 %v1785, %v1830
    %v1832 = vpop.f32.mrb[0].mxu0
    %v1833 = vpop.f32.mrb[0].mxu0
    %v1834 = vpop.f32.mrb[0].mxu0
    %1835 = vdwg.mxu0
    %v1836 = vadd.f32 %v1831, %v227
    %v1837 = vxor.u32 %v1836, 2147483648
    %v1838 = vmul.f32 %v1837, 1.442695
    %v1839 = vpow.pop %v1838
    %v1840 = vadd.f32 %v1839, 1.0
    %v1841 = vrcp.pop %v1840
    %v1842 = vmul.f32 1.0, %v1841
    %v1843 = vmul.f32 %v1842, 2.0
    %v1844 = vsub.f32 %v1843, 1.0
    %v1845 = vmul.f32 %v1842, %v1654
    %1847 = vrot.lane.b32.xlu0 %v1844, 64
    %v1848 = vpop.permute.xlu0 %1847
    %v1850 = vmul.f32 %v1842, %v1848
    %1852 = vrot.lane.b32.xlu0 %v1850, 32
    %v1853 = vpop.permute.xlu0 %1852
    %v1855 = vadd.f32 %v1845, %v1853
    %v1856 = vmul.f32 %v1855, 2.0
    %v1857 = vxor.u32 %v1856, 2147483648
    %v1858 = vmul.f32 %v1857, 1.442695
    %v1859 = vpow.pop %v1858
    %v1860 = vadd.f32 %v1859, 1.0
    %v1861 = vrcp.pop %v1860
    %v1862 = vmul.f32 1.0, %v1861
    %v1863 = vmul.f32 %v1862, 2.0
    %v1864 = vsub.f32 %v1863, 1.0
    %1866 = vrot.lane.b32.xlu0 %v1864, 64
    %v1867 = vpop.permute.xlu0 %1866
    %v1869 = vmul.f32 %v1842, %v1867
    %1871 = vrot.lane.b32.xlu0 %v1869, 32
    %v1872 = vpop.permute.xlu0 %1871
    %v1874 = vsel %vm241, %v1872, 0.0
    %1875 = vadd.xlane.f32.xlu0 %v1874
    %v1876 = vpop.xlane.xlu0 %1875
    %v1877 = vrcp.pop 32.0
    %v1878 = vmul.f32 %v1876, %v1877
    %v1879 = vsub.f32 %v1869, %v1878
    %v1880 = vmul.f32 %v1879, %v1879
    %1882 = vrot.lane.b32.xlu0 %v1880, 32
    %v1883 = vpop.permute.xlu0 %1882
    %v1885 = vsel %vm241, %v1883, 0.0
    %1886 = vadd.xlane.f32.xlu0 %v1885
    %v1887 = vpop.xlane.xlu0 %1886
    %v1888 = vmul.f32 %v1887, %v1877
    %v1889 = vadd.f32 %v1888, 1e-05
    %v1890 = vrsqrt.pop %v1889
    %v1891 = vmul.f32 %v1879, %v1890
    %v1892 = vld [vmem:[%s7] sm:$0x1]
    %v1894 = vlaneseq
    %v1895 = vshrl.u32 %v1894, 7
    %v1896 = vsub.s32 0, %v1895
    %v1897 = vrot.slane %v1892, %v1896
    %1898 = vrot.lane.b32.xlu0 %v1897, 96
    %v1899 = vpop.permute.xlu0 %1898
    %v1901 = vmul.f32 %v1891, %v1899
    %v1902 = vld [vmem:[%s8] sm:$0x1]
    %v1904 = vlaneseq
    %v1905 = vshrl.u32 %v1904, 7
    %v1906 = vsub.s32 0, %v1905
    %v1907 = vrot.slane %v1902, %v1906
    %1908 = vrot.lane.b32.xlu0 %v1907, 96
    %v1909 = vpop.permute.xlu0 %1908
    %v1911 = vadd.f32 %v1901, %v1909
    %v1912 = vld [vmem:[%s9] sm:$0x1]
    %v1913 = vld [vmem:[#allocation2] sm:$0x1]
    %1915 = vset.pattern.permute.xlu0 0
    %1916 = vperm.xlu0 %1915, %v1913
    %v1917 = vpop.permute.xlu0 %1916
    %v1919 = vlaneseq
    %v1920 = vshrl.u32 %v1919, 7
    %v1921 = vsub.s32 0, %v1920
    %v1922 = vrot.slane %v1917, %v1921
    %1924 = vrot.lane.b32.xlu0 %v1911, 32
    %v1925 = vpop.permute.xlu0 %1924
    %v1927 = vsel %vm241, %v1912, 0
    %v1929 = vsel %vm241, %v1925, 0
    %1931 = vmatprep.subr.mxu0 0.0
    %1932 = vmatpush1.xpose.msra.mxu0 %v1929
    %1933 = vmatprep.subr.mxu0 0.0
    %1934 = vmatpush1.xpose.msra.mxu0 0.0
    %1935 = vmatprep.subr.mxu0 0.0
    %1936 = vmatpush1.xpose.msra.mxu0 0.0
    %1937 = vmatprep.subr.mxu0 0.0
    %1938 = vmatpush1.xpose.msra.mxu0 0.0
    %1939 = vmatprep.subr.mxu0 0.0
    %1940 = vmatpush1.xpose.msra.mxu0 0.0
    %1941 = vmatprep.subr.mxu0 0.0
    %1942 = vmatpush1.xpose.msra.mxu0 0.0
    %1943 = vmatprep.subr.mxu0 0.0
    %1944 = vmatpush1.xpose.msra.mxu0 0.0
    %1945 = vmatprep.subr.mxu0 0.0
    %1946 = vmatpush1.xpose.msra.mxu0 0.0
    %1947 = vmatprep.subr.mxu0 0.0
    %1948 = vmatpush1.xpose.msra.mxu0 0.0
    %1949 = vmatprep.subr.mxu0 0.0
    %1950 = vmatpush1.xpose.msra.mxu0 0.0
    %1951 = vmatprep.subr.mxu0 0.0
    %1952 = vmatpush1.xpose.msra.mxu0 0.0
    %1953 = vmatprep.subr.mxu0 0.0
    %1954 = vmatpush1.xpose.msra.mxu0 0.0
    %1955 = vmatprep.subr.mxu0 0.0
    %1956 = vmatpush1.xpose.msra.mxu0 0.0
    %1957 = vmatprep.subr.mxu0 0.0
    %1958 = vmatpush1.xpose.msra.mxu0 0.0
    %1959 = vmatprep.subr.mxu0 0.0
    %1960 = vmatpush1.xpose.msra.mxu0 0.0
    %1961 = vmatprep.subr.mxu0 0.0
    %1962 = vmatpush1.xpose.msra.mxu0 0.0
    %1963 = vmatprep.subr.mxu0 0.0
    %1964 = vmatpush1.xpose.msra.mxu0 0.0
    %1965 = vmatprep.subr.mxu0 0.0
    %1966 = vmatpush1.xpose.msra.mxu0 0.0
    %1967 = vmatprep.subr.mxu0 0.0
    %1968 = vmatpush1.xpose.msra.mxu0 0.0
    %1969 = vmatprep.subr.mxu0 0.0
    %1970 = vmatpush1.xpose.msra.mxu0 0.0
    %1971 = vmatprep.subr.mxu0 0.0
    %1972 = vmatpush1.xpose.msra.mxu0 0.0
    %1973 = vmatprep.subr.mxu0 0.0
    %1974 = vmatpush1.xpose.msra.mxu0 0.0
    %1975 = vmatprep.subr.mxu0 0.0
    %1976 = vmatpush1.xpose.msra.mxu0 0.0
    %1977 = vmatprep.subr.mxu0 0.0
    %1978 = vmatpush1.xpose.msra.mxu0 0.0
    %1979 = vmatprep.subr.mxu0 0.0
    %1980 = vmatpush1.xpose.msra.mxu0 0.0
    %1981 = vmatprep.subr.mxu0 0.0
    %1982 = vmatpush1.xpose.msra.mxu0 0.0
    %1983 = vmatprep.subr.mxu0 0.0
    %1984 = vmatpush1.xpose.msra.mxu0 0.0
    %1985 = vmatprep.subr.mxu0 0.0
    %1986 = vmatpush1.xpose.msra.mxu0 0.0
    %1987 = vmatprep.subr.mxu0 0.0
    %1988 = vmatpush1.xpose.msra.mxu0 0.0
    %1989 = vmatprep.subr.mxu0 0.0
    %1990 = vmatpush1.xpose.msra.mxu0 0.0
    %1991 = vmatprep.subr.mxu0 0.0
    %1992 = vmatpush1.xpose.msra.mxu0 0.0
    %1993 = vmatprep.subr.mxu0 0.0
    %1994 = vmatpush1.xpose.msra.mxu0 0.0
    %1995 = vmatprep.mubr.f32.mxu0 0.0
    %1996 = vmatmul.mubr.f32.gmra.mrb[0].mxu0 %v1927
    %v1997 = vpop.f32.mrb[0].mxu0
    %v1998 = vadd.f32 %v1922, %v1997
    %v1999 = vpop.f32.mrb[0].mxu0
    %2000 = vdwg.mxu0
    %v2001 = vxor.u32 %v1998, 2147483648
    %v2002 = vmul.f32 %v2001, 1.442695
    %v2003 = vpow.pop %v2002
    %v2004 = vadd.f32 %v2003, 1.0
    %v2005 = vrcp.pop %v2004
    %v2006 = vmul.f32 1.0, %v2005
    %vm2007 = vcmask 57344
    %2008 = vst.msk [vmem:[#allocation11] sm:$0x1] %vm2007, %v2006
    // Predicated region
    $region62: #{tpu_custom_call.1} parent=1 // pred_check
      _
    $region63: #{tpu_custom_call.1} parent=1 // pred_check_branch
      %2010 = sbr.rel (0) target = $region65
    $region64: #{tpu_custom_call.1} parent=1 // pred_region
      %s2012 = ssub.s32 16, 16
      %2013 = vsyncadd [#allocation5], %s2012
      %s2015 = sshll.u32 [#allocation11], 4
      %s2016 = int_to_ptr.vmem [resolvable:$true] %s2015
      %2018 = dma.vmem_to_hbm [thread:$0]  %s2016, 16, %s11, [#allocation5]
    $region65: #{tpu_custom_call.1} parent=1 // pred_fallthru
      _
    // Predicated region
    $region66: #{tpu_custom_call.1} parent=1 // pred_check
      _
    $region67: #{tpu_custom_call.1} parent=1 // pred_check_branch
      %2020 = sbr.rel (0) target = $region69
    $region68: #{tpu_custom_call.1} parent=1 // pred_region
      %2021 = dma.done [#allocation5], 16
    $region69: #{tpu_custom_call.1} parent=1 // pred_fallthru
      _
    %2022 = vsyncpa [#allocation4], 1
    %2023 = vsyncpa [#allocation7], 1
    %2024 = vsyncpa [#allocation10], 1
    %2025 = vsyncpa [#allocation5], 1

</llo_original>
